<compile_context>
chip_gen: v6e
topology: v6e:2x2x1
jax: 0.10.0
libtpu: 0.0.40
codegen_flags: <defaults>
</compile_context>

<pallas_src>
import jax
import jax.numpy as jnp
from jax import lax
from jax.experimental import pallas as pl
from jax.experimental.pallas import tpu as pltpu

# ---- config (stand-in for `config` in the PyTorch file) ----
DIM_MODEL = 32
DIM_INNER = 64
NUM_HEADS = 4
HEAD_DIM = DIM_MODEL // NUM_HEADS
LN_EPS = 1e-5          # nn.LayerNorm default
BATCH = 2
SEQ = 8                # target seq len
SRC = 8                # encoder / source seq len
NEG_INF = -1e9         # python float only; never used inside the kernel body


# --------------------------------------------------------------------------
# In-kernel helpers (pure jnp on values / static ref slices)
# --------------------------------------------------------------------------
def _layer_norm(x, gamma, beta):
    # One-pass stats: mean and E[x^2] share the cross-lane reduction work.
    mu = jnp.mean(x, axis=-1, keepdims=True)
    var = jnp.mean(x * x, axis=-1, keepdims=True) - mu * mu
    return (x - mu) * lax.rsqrt(var + LN_EPS) * gamma + beta


def _attn_core(q, k, v, amask, w_ref, wo_col, bo):
    """q:(M,D) k,v:(Mk,D) amask:(M,Mk) additive. Wo = w_ref[:, wo_col:wo_col+D].

    Per-head scores with the 1/sqrt(Dh) scale already folded into Wq; heads are
    static lane slices; per-head context is pushed straight through the
    matching Wo row block and accumulated (no lane concat)."""
    acc = None
    for h in range(NUM_HEADS):                       # static, unrolled
        lo, hi = h * HEAD_DIM, (h + 1) * HEAD_DIM
        # contract last dims of both operands -> no explicit K transpose
        s = lax.dot_general(q[:, lo:hi], k[:, lo:hi],
                            (((1,), (1,)), ((), ())),
                            preferred_element_type=jnp.float32)
        s = s + amask
        s = s - jnp.max(s, axis=-1, keepdims=True)
        p = jnp.exp(s)
        p = p / jnp.sum(p, axis=-1, keepdims=True)   # exact divide for parity
        ctx = jnp.dot(p, v[:, lo:hi], preferred_element_type=jnp.float32)
        part = jnp.dot(ctx, w_ref[lo:hi, wo_col:wo_col + DIM_MODEL],
                       preferred_element_type=jnp.float32)
        acc = part if acc is None else acc + part
    return acc + bo


# --------------------------------------------------------------------------
# Single fused decoder-layer kernel (one grid step, batch flattened into rows)
# --------------------------------------------------------------------------
def _decoder_layer_kernel(x_ref, e_ref, m1_ref, m2_ref,
                          w_ref, ffw_ref, vec_ref, o_ref):
    D = DIM_MODEL
    x = x_ref[...]                                   # (B*S, D)
    e = e_ref[...]                                   # (B*Sk, D)
    m1 = m1_ref[...]                                 # (B*S, B*S) additive
    m2 = m2_ref[...]                                 # (B*S, B*Sk) additive

    # ---- attn1: self-attention; fused QKV projection ----
    qkv1 = (jnp.dot(x, w_ref[:, 0:3 * D], preferred_element_type=jnp.float32)
            + vec_ref[0:1, :])
    a1 = _attn_core(qkv1[:, 0:D], qkv1[:, D:2 * D], qkv1[:, 2 * D:3 * D],
                    m1, w_ref, 3 * D, vec_ref[2:3, 0:D])
    # z = layer_norm2(attn1(x,x,x,tgt_mask) + x); dropout1 -> identity
    z = _layer_norm(a1 + x, vec_ref[4:5, 0:D], vec_ref[5:6, 0:D])

    # ---- attn2: cross-attention (q from z, k/v from e); fused KV projection ----
    q2 = (jnp.dot(z, w_ref[:, 4 * D:5 * D], preferred_element_type=jnp.float32)
          + vec_ref[1:2, 0:D])
    kv2 = (jnp.dot(e, w_ref[:, 5 * D:7 * D], preferred_element_type=jnp.float32)
           + vec_ref[1:2, D:3 * D])
    a2 = _attn_core(q2, kv2[:, 0:D], kv2[:, D:2 * D],
                    m2, w_ref, 7 * D, vec_ref[2:3, D:2 * D])
    # out = layer_norm3(attn2(z,e,e,inp_mask) + z); dropout2 -> identity
    out = _layer_norm(a2 + z, vec_ref[4:5, D:2 * D], vec_ref[5:6, D:2 * D])

    # ---- FeedForward: layer_norm(W2(SiLU(W1 out)) + out) ----
    h = (jnp.dot(out, ffw_ref[0:D, 0:DIM_INNER],
                 preferred_element_type=jnp.float32)
         + vec_ref[3:4, 0:DIM_INNER])
    h = h * jax.nn.sigmoid(h)                        # SiLU
    y = (jnp.dot(h, ffw_ref[:, DIM_INNER:DIM_INNER + D],
                 preferred_element_type=jnp.float32)
         + vec_ref[2:3, 2 * D:3 * D])
    o_ref[...] = _layer_norm(y + out, vec_ref[4:5, 2 * D:3 * D],
                             vec_ref[5:6, 2 * D:3 * D]).astype(o_ref.dtype)


# --------------------------------------------------------------------------
# Wrapper
# --------------------------------------------------------------------------
def _full_spec(shape):
    n = len(shape)
    return pl.BlockSpec(shape, lambda i, _n=n: (0,) * _n)


def _block_diag_additive(mask01):
    """(B, Sq, Sv) 0/1 mask -> (B*Sq, B*Sv) additive mask (0 keep / -1e9 drop),
    with cross-batch attention blocked (block-diagonal)."""
    B, Sq, Sv = mask01.shape
    keep = jnp.zeros((B, Sq, B, Sv), dtype=bool)
    keep = keep.at[jnp.arange(B), :, jnp.arange(B), :].set(mask01 > 0)
    return jnp.where(keep.reshape(B * Sq, B * Sv),
                     jnp.float32(0.0), jnp.float32(NEG_INF))


def decoder_layer(packed, x, e, inp_mask, tgt_mask):
    B, S, D = x.shape
    Sk = e.shape[1]
    M, Mk = B * S, B * Sk

    x2 = x.reshape(M, D)
    e2 = e.reshape(Mk, D)
    m_tgt = _block_diag_additive(tgt_mask)           # (M, M)
    m_inp = _block_diag_additive(inp_mask)           # (M, Mk)

    flops = 2 * (
        M * D * 3 * D                                          # attn1 qkv proj
        + NUM_HEADS * (2 * M * M * HEAD_DIM + M * HEAD_DIM * D)  # attn1 core
        + M * D * D + Mk * D * 2 * D                           # attn2 q / kv proj
        + NUM_HEADS * (2 * M * Mk * HEAD_DIM + M * HEAD_DIM * D)  # attn2 core
        + 2 * M * D * DIM_INNER                                # FFN
    )
    transcendentals = NUM_HEADS * (M * M + M * Mk) + M * DIM_INNER
    bytes_accessed = 4 * (x2.size + e2.size + m_tgt.size + m_inp.size
                          + sum(int(v.size) for v in packed.values()) + M * D)

    out = pl.pallas_call(
        _decoder_layer_kernel,
        out_shape=jax.ShapeDtypeStruct((M, D), x.dtype),
        grid=(1,),                                   # single step: no per-batch grid overhead
        in_specs=[
            _full_spec((M, D)),                      # x (flattened)
            _full_spec((Mk, D)),                     # e (flattened)
            _full_spec((M, M)),                      # additive tgt mask
            _full_spec((M, Mk)),                     # additive inp mask
            _full_spec(packed["slab_w"].shape),      # all attention weights
            _full_spec(packed["slab_ffw"].shape),    # FFN weights
            _full_spec(packed["slab_vec"].shape),    # biases + LN params
        ],
        out_specs=_full_spec((M, D)),
        compiler_params=pltpu.CompilerParams(
            dimension_semantics=("arbitrary",)),
        cost_estimate=pl.CostEstimate(flops=int(flops),
                                      transcendentals=int(transcendentals),
                                      bytes_accessed=int(bytes_accessed)),
    )(x2, e2, m_tgt, m_inp,
      packed["slab_w"], packed["slab_ffw"], packed["slab_vec"])
    return out.reshape(B, S, D)


# --------------------------------------------------------------------------
# Deterministic parameter init + packing into 3 resident slabs
# --------------------------------------------------------------------------
def _init_linear(key, din, dout):
    k1, k2 = jax.random.split(key)
    w = jax.random.normal(k1, (din, dout), jnp.float32) * 0.02
    b = jax.random.normal(k2, (1, dout), jnp.float32) * 0.02
    return w, b


def _init_attn(key):
    ks = jax.random.split(key, 4)
    p = {}
    for name, k in zip(("q", "k", "v", "o"), ks):
        w, b = _init_linear(k, DIM_MODEL, DIM_MODEL)
        p["w" + name], p["b" + name] = w, b
    return p


def init_params(key):
    k1, k2, k3, k4 = jax.random.split(key, 4)
    p = {
        "attn1": _init_attn(k1),
        "attn2": _init_attn(k2),
        "ln2_g": jnp.ones((1, DIM_MODEL), jnp.float32),
        "ln2_b": jnp.zeros((1, DIM_MODEL), jnp.float32),
        "ln3_g": jnp.ones((1, DIM_MODEL), jnp.float32),
        "ln3_b": jnp.zeros((1, DIM_MODEL), jnp.float32),
        "ff_ln_g": jnp.ones((1, DIM_MODEL), jnp.float32),
        "ff_ln_b": jnp.zeros((1, DIM_MODEL), jnp.float32),
    }
    p["ff_w1"], p["ff_b1"] = _init_linear(k3, DIM_MODEL, DIM_INNER)
    p["ff_w2"], p["ff_b2"] = _init_linear(k4, DIM_INNER, DIM_MODEL)
    return p


def pack_params(p):
    """Pack everything into 3 slabs; fold 1/sqrt(Dh) into the Q projections.

    slab_w   (D, 8D)  = [w1_q*s | w1_k | w1_v | w1_o | w2_q*s | w2_k | w2_v | w2_o]
    slab_ffw (64, 96) = [ff_w1 (rows 0:32, cols 0:64) | ff_w2 (cols 64:96)]
    slab_vec (8, 96)  = rows: b1_qkv, b2_qkv, [b1_o|b2_o|ff_b2], [ff_b1|0],
                              [ln2_g|ln3_g|ffln_g], [ln2_b|ln3_b|ffln_b], 0, 0
    """
    D, DI = DIM_MODEL, DIM_INNER
    scale = 1.0 / (HEAD_DIM ** 0.5)
    a1, a2 = p["attn1"], p["attn2"]

    w1_qkv = jnp.concatenate([a1["wq"] * scale, a1["wk"], a1["wv"]], axis=1)
    w2_qkv = jnp.concatenate([a2["wq"] * scale, a2["wk"], a2["wv"]], axis=1)
    slab_w = jnp.concatenate([w1_qkv, a1["wo"], w2_qkv, a2["wo"]], axis=1)

    slab_ffw = jnp.zeros((DI, DI + D), jnp.float32)
    slab_ffw = slab_ffw.at[:D, :DI].set(p["ff_w1"])
    slab_ffw = slab_ffw.at[:, DI:].set(p["ff_w2"])

    b1_qkv = jnp.concatenate([a1["bq"] * scale, a1["bk"], a1["bv"]], axis=1)
    b2_qkv = jnp.concatenate([a2["bq"] * scale, a2["bk"], a2["bv"]], axis=1)
    slab_vec = jnp.zeros((8, 3 * D), jnp.float32)
    slab_vec = slab_vec.at[0:1, :].set(b1_qkv)
    slab_vec = slab_vec.at[1:2, :].set(b2_qkv)
    slab_vec = slab_vec.at[2:3, 0:D].set(a1["bo"])
    slab_vec = slab_vec.at[2:3, D:2 * D].set(a2["bo"])
    slab_vec = slab_vec.at[2:3, 2 * D:3 * D].set(p["ff_b2"])
    slab_vec = slab_vec.at[3:4, 0:DI].set(p["ff_b1"])
    slab_vec = slab_vec.at[4:5, 0:D].set(p["ln2_g"])
    slab_vec = slab_vec.at[4:5, D:2 * D].set(p["ln3_g"])
    slab_vec = slab_vec.at[4:5, 2 * D:3 * D].set(p["ff_ln_g"])
    slab_vec = slab_vec.at[5:6, 0:D].set(p["ln2_b"])
    slab_vec = slab_vec.at[5:6, D:2 * D].set(p["ln3_b"])
    slab_vec = slab_vec.at[5:6, 2 * D:3 * D].set(p["ff_ln_b"])

    return dict(slab_w=slab_w, slab_ffw=slab_ffw, slab_vec=slab_vec)


if __name__ == "__main__":
    key = jax.random.PRNGKey(0)
    kx, ke, kp = jax.random.split(key, 3)

    x = jax.random.normal(kx, (BATCH, SEQ, DIM_MODEL), jnp.float32)
    e = jax.random.normal(ke, (BATCH, SRC, DIM_MODEL), jnp.float32)

    # causal target mask, broadcast over batch: (B, SEQ, SEQ), 1 = attend
    causal = jnp.tril(jnp.ones((SEQ, SEQ), jnp.float32))
    tgt_mask = jnp.broadcast_to(causal, (BATCH, SEQ, SEQ))

    # source padding mask: batch 0 keeps all SRC positions, batch 1 keeps 6
    lens = jnp.array([SRC, 6], jnp.int32)
    col = jnp.arange(SRC)[None, None, :]                      # (1, 1, SRC)
    inp_mask = (col < lens[:, None, None]).astype(jnp.float32)
    inp_mask = jnp.broadcast_to(inp_mask, (BATCH, SEQ, SRC))

    params = init_params(kp)
    packed = pack_params(params)

    out = decoder_layer(packed, x, e, inp_mask, tgt_mask)
    out = jax.block_until_ready(out)
    assert out.shape == (BATCH, SEQ, DIM_MODEL)
    assert bool(jnp.all(jnp.isfinite(out)))
    print("KERNEL_OK")
</pallas_src>

<mosaic_0001>
module attributes {stable_mosaic.version = 11 : i64} {
  func.func @_decoder_layer_kernel(%arg0: i32, %arg1: memref<16x32xf32, #tpu.memory_space<vmem>>, %arg2: memref<16x32xf32, #tpu.memory_space<vmem>>, %arg3: memref<16x16xf32, #tpu.memory_space<vmem>>, %arg4: memref<16x16xf32, #tpu.memory_space<vmem>>, %arg5: memref<32x256xf32, #tpu.memory_space<vmem>>, %arg6: memref<64x96xf32, #tpu.memory_space<vmem>>, %arg7: memref<8x96xf32, #tpu.memory_space<vmem>>, %arg8: memref<16x32xf32, #tpu.memory_space<vmem>>) attributes {dimension_semantics = [#tpu.dimension_semantics<arbitrary>], iteration_bounds = array<i64: 1>, scalar_prefetch = 0 : i64, scratch_operands = 0 : i64, tpu.core_type = #tpu.core_type<tc>, window_params = [{pipeline_mode = #tpu.pipeline_mode<synchronous>, transform_indices = @transform_0, window_bounds = array<i64: 16, 32>}, {pipeline_mode = #tpu.pipeline_mode<synchronous>, transform_indices = @transform_1, window_bounds = array<i64: 16, 32>}, {pipeline_mode = #tpu.pipeline_mode<synchronous>, transform_indices = @transform_2, window_bounds = array<i64: 16, 16>}, {pipeline_mode = #tpu.pipeline_mode<synchronous>, transform_indices = @transform_3, window_bounds = array<i64: 16, 16>}, {pipeline_mode = #tpu.pipeline_mode<synchronous>, transform_indices = @transform_4, window_bounds = array<i64: 32, 256>}, {pipeline_mode = #tpu.pipeline_mode<synchronous>, transform_indices = @transform_5, window_bounds = array<i64: 64, 96>}, {pipeline_mode = #tpu.pipeline_mode<synchronous>, transform_indices = @transform_6, window_bounds = array<i64: 8, 96>}, {pipeline_mode = #tpu.pipeline_mode<synchronous>, transform_indices = @transform_7, window_bounds = array<i64: 16, 32>}]} {
    %c0 = arith.constant 0 : index
    %c0_0 = arith.constant 0 : index
    %0 = vector.load %arg1[%c0, %c0_0] : memref<16x32xf32, #tpu.memory_space<vmem>>, vector<16x32xf32>
    %c0_1 = arith.constant 0 : index
    %c0_2 = arith.constant 0 : index
    %1 = vector.load %arg2[%c0_1, %c0_2] : memref<16x32xf32, #tpu.memory_space<vmem>>, vector<16x32xf32>
    %c0_3 = arith.constant 0 : index
    %c0_4 = arith.constant 0 : index
    %2 = vector.load %arg3[%c0_3, %c0_4] : memref<16x16xf32, #tpu.memory_space<vmem>>, vector<16x16xf32>
    %c0_5 = arith.constant 0 : index
    %c0_6 = arith.constant 0 : index
    %3 = vector.load %arg4[%c0_5, %c0_6] : memref<16x16xf32, #tpu.memory_space<vmem>>, vector<16x16xf32>
    %c0_7 = arith.constant 0 : index
    %c0_8 = arith.constant 0 : index
    %4 = vector.load %arg5[%c0_7, %c0_8] : memref<32x256xf32, #tpu.memory_space<vmem>>, vector<32x96xf32>
    %cst = arith.constant dense<0.000000e+00> : vector<16x96xf32>
    %5 = tpu.matmul %0, %4, %cst {dimension_numbers = #tpu.dot_dimension_numbers<[1], [0], [0], [1], [0, 0, 1, 1], [], []>} : vector<16x32xf32>, vector<32x96xf32>, vector<16x96xf32> -> vector<16x96xf32>
    %c0_9 = arith.constant 0 : index
    %c0_10 = arith.constant 0 : index
    %6 = vector.load %arg7[%c0_9, %c0_10] : memref<8x96xf32, #tpu.memory_space<vmem>>, vector<1x96xf32>
    %7 = vector.broadcast %6 : vector<1x96xf32> to vector<16x96xf32>
    %8 = arith.addf %5, %7 : vector<16x96xf32>
    %9 = vector.extract_strided_slice %8 {offsets = [0, 0], sizes = [16, 32], strides = [1, 1]} : vector<16x96xf32> to vector<16x32xf32>
    %10 = vector.extract_strided_slice %8 {offsets = [0, 32], sizes = [16, 32], strides = [1, 1]} : vector<16x96xf32> to vector<16x32xf32>
    %11 = vector.extract_strided_slice %8 {offsets = [0, 64], sizes = [16, 32], strides = [1, 1]} : vector<16x96xf32> to vector<16x32xf32>
    %c2 = arith.constant 2 : index
    %c0_11 = arith.constant 0 : index
    %12 = vector.load %arg7[%c2, %c0_11] : memref<8x96xf32, #tpu.memory_space<vmem>>, vector<1x32xf32>
    %13 = vector.extract_strided_slice %9 {offsets = [0, 0], sizes = [16, 8], strides = [1, 1]} : vector<16x32xf32> to vector<16x8xf32>
    %14 = vector.extract_strided_slice %10 {offsets = [0, 0], sizes = [16, 8], strides = [1, 1]} : vector<16x32xf32> to vector<16x8xf32>
    %cst_12 = arith.constant dense<0.000000e+00> : vector<16x16xf32>
    %15 = tpu.matmul %13, %14, %cst_12 {dimension_numbers = #tpu.dot_dimension_numbers<[1], [1], [0], [0], [0, 0, 1, 0], [], []>} : vector<16x8xf32>, vector<16x8xf32>, vector<16x16xf32> -> vector<16x16xf32>
    %16 = arith.addf %15, %2 : vector<16x16xf32>
    %cst_13 = arith.constant dense<0xFF800000> : vector<16xf32>
    %17 = vector.multi_reduction <maximumf>, %16, %cst_13 [1] : vector<16x16xf32> to vector<16xf32>
    %18 = vector.shape_cast %17 : vector<16xf32> to vector<16x1xf32>
    %19 = vector.broadcast %18 : vector<16x1xf32> to vector<16x16xf32>
    %20 = arith.subf %16, %19 : vector<16x16xf32>
    %21 = math.exp %20 : vector<16x16xf32>
    %cst_14 = arith.constant dense<0.000000e+00> : vector<16xf32>
    %22 = vector.multi_reduction <add>, %21, %cst_14 [1] : vector<16x16xf32> to vector<16xf32>
    %23 = vector.shape_cast %22 : vector<16xf32> to vector<16x1xf32>
    %24 = vector.broadcast %23 : vector<16x1xf32> to vector<16x16xf32>
    %25 = arith.divf %21, %24 : vector<16x16xf32>
    %26 = vector.extract_strided_slice %11 {offsets = [0, 0], sizes = [16, 8], strides = [1, 1]} : vector<16x32xf32> to vector<16x8xf32>
    %cst_15 = arith.constant dense<0.000000e+00> : vector<16x8xf32>
    %27 = tpu.matmul %25, %26, %cst_15 {dimension_numbers = #tpu.dot_dimension_numbers<[1], [0], [0], [1], [0, 0, 1, 1], [], []>} : vector<16x16xf32>, vector<16x8xf32>, vector<16x8xf32> -> vector<16x8xf32>
    %c0_16 = arith.constant 0 : index
    %c96 = arith.constant 96 : index
    %28 = vector.load %arg5[%c0_16, %c96] : memref<32x256xf32, #tpu.memory_space<vmem>>, vector<8x32xf32>
    %cst_17 = arith.constant dense<0.000000e+00> : vector<16x32xf32>
    %29 = tpu.matmul %27, %28, %cst_17 {dimension_numbers = #tpu.dot_dimension_numbers<[1], [0], [0], [1], [0, 0, 1, 1], [], []>} : vector<16x8xf32>, vector<8x32xf32>, vector<16x32xf32> -> vector<16x32xf32>
    %30 = vector.extract_strided_slice %9 {offsets = [0, 8], sizes = [16, 8], strides = [1, 1]} : vector<16x32xf32> to vector<16x8xf32>
    %31 = vector.extract_strided_slice %10 {offsets = [0, 8], sizes = [16, 8], strides = [1, 1]} : vector<16x32xf32> to vector<16x8xf32>
    %cst_18 = arith.constant dense<0.000000e+00> : vector<16x16xf32>
    %32 = tpu.matmul %30, %31, %cst_18 {dimension_numbers = #tpu.dot_dimension_numbers<[1], [1], [0], [0], [0, 0, 1, 0], [], []>} : vector<16x8xf32>, vector<16x8xf32>, vector<16x16xf32> -> vector<16x16xf32>
    %33 = arith.addf %32, %2 : vector<16x16xf32>
    %cst_19 = arith.constant dense<0xFF800000> : vector<16xf32>
    %34 = vector.multi_reduction <maximumf>, %33, %cst_19 [1] : vector<16x16xf32> to vector<16xf32>
    %35 = vector.shape_cast %34 : vector<16xf32> to vector<16x1xf32>
    %36 = vector.broadcast %35 : vector<16x1xf32> to vector<16x16xf32>
    %37 = arith.subf %33, %36 : vector<16x16xf32>
    %38 = math.exp %37 : vector<16x16xf32>
    %cst_20 = arith.constant dense<0.000000e+00> : vector<16xf32>
    %39 = vector.multi_reduction <add>, %38, %cst_20 [1] : vector<16x16xf32> to vector<16xf32>
    %40 = vector.shape_cast %39 : vector<16xf32> to vector<16x1xf32>
    %41 = vector.broadcast %40 : vector<16x1xf32> to vector<16x16xf32>
    %42 = arith.divf %38, %41 : vector<16x16xf32>
    %43 = vector.extract_strided_slice %11 {offsets = [0, 8], sizes = [16, 8], strides = [1, 1]} : vector<16x32xf32> to vector<16x8xf32>
    %cst_21 = arith.constant dense<0.000000e+00> : vector<16x8xf32>
    %44 = tpu.matmul %42, %43, %cst_21 {dimension_numbers = #tpu.dot_dimension_numbers<[1], [0], [0], [1], [0, 0, 1, 1], [], []>} : vector<16x16xf32>, vector<16x8xf32>, vector<16x8xf32> -> vector<16x8xf32>
    %c8 = arith.constant 8 : index
    %c96_22 = arith.constant 96 : index
    %45 = vector.load %arg5[%c8, %c96_22] : memref<32x256xf32, #tpu.memory_space<vmem>>, vector<8x32xf32>
    %cst_23 = arith.constant dense<0.000000e+00> : vector<16x32xf32>
    %46 = tpu.matmul %44, %45, %cst_23 {dimension_numbers = #tpu.dot_dimension_numbers<[1], [0], [0], [1], [0, 0, 1, 1], [], []>} : vector<16x8xf32>, vector<8x32xf32>, vector<16x32xf32> -> vector<16x32xf32>
    %47 = arith.addf %29, %46 : vector<16x32xf32>
    %48 = vector.extract_strided_slice %9 {offsets = [0, 16], sizes = [16, 8], strides = [1, 1]} : vector<16x32xf32> to vector<16x8xf32>
    %49 = vector.extract_strided_slice %10 {offsets = [0, 16], sizes = [16, 8], strides = [1, 1]} : vector<16x32xf32> to vector<16x8xf32>
    %cst_24 = arith.constant dense<0.000000e+00> : vector<16x16xf32>
    %50 = tpu.matmul %48, %49, %cst_24 {dimension_numbers = #tpu.dot_dimension_numbers<[1], [1], [0], [0], [0, 0, 1, 0], [], []>} : vector<16x8xf32>, vector<16x8xf32>, vector<16x16xf32> -> vector<16x16xf32>
    %51 = arith.addf %50, %2 : vector<16x16xf32>
    %cst_25 = arith.constant dense<0xFF800000> : vector<16xf32>
    %52 = vector.multi_reduction <maximumf>, %51, %cst_25 [1] : vector<16x16xf32> to vector<16xf32>
    %53 = vector.shape_cast %52 : vector<16xf32> to vector<16x1xf32>
    %54 = vector.broadcast %53 : vector<16x1xf32> to vector<16x16xf32>
    %55 = arith.subf %51, %54 : vector<16x16xf32>
    %56 = math.exp %55 : vector<16x16xf32>
    %cst_26 = arith.constant dense<0.000000e+00> : vector<16xf32>
    %57 = vector.multi_reduction <add>, %56, %cst_26 [1] : vector<16x16xf32> to vector<16xf32>
    %58 = vector.shape_cast %57 : vector<16xf32> to vector<16x1xf32>
    %59 = vector.broadcast %58 : vector<16x1xf32> to vector<16x16xf32>
    %60 = arith.divf %56, %59 : vector<16x16xf32>
    %61 = vector.extract_strided_slice %11 {offsets = [0, 16], sizes = [16, 8], strides = [1, 1]} : vector<16x32xf32> to vector<16x8xf32>
    %cst_27 = arith.constant dense<0.000000e+00> : vector<16x8xf32>
    %62 = tpu.matmul %60, %61, %cst_27 {dimension_numbers = #tpu.dot_dimension_numbers<[1], [0], [0], [1], [0, 0, 1, 1], [], []>} : vector<16x16xf32>, vector<16x8xf32>, vector<16x8xf32> -> vector<16x8xf32>
    %c16 = arith.constant 16 : index
    %c96_28 = arith.constant 96 : index
    %63 = vector.load %arg5[%c16, %c96_28] : memref<32x256xf32, #tpu.memory_space<vmem>>, vector<8x32xf32>
    %cst_29 = arith.constant dense<0.000000e+00> : vector<16x32xf32>
    %64 = tpu.matmul %62, %63, %cst_29 {dimension_numbers = #tpu.dot_dimension_numbers<[1], [0], [0], [1], [0, 0, 1, 1], [], []>} : vector<16x8xf32>, vector<8x32xf32>, vector<16x32xf32> -> vector<16x32xf32>
    %65 = arith.addf %47, %64 : vector<16x32xf32>
    %66 = vector.extract_strided_slice %9 {offsets = [0, 24], sizes = [16, 8], strides = [1, 1]} : vector<16x32xf32> to vector<16x8xf32>
    %67 = vector.extract_strided_slice %10 {offsets = [0, 24], sizes = [16, 8], strides = [1, 1]} : vector<16x32xf32> to vector<16x8xf32>
    %cst_30 = arith.constant dense<0.000000e+00> : vector<16x16xf32>
    %68 = tpu.matmul %66, %67, %cst_30 {dimension_numbers = #tpu.dot_dimension_numbers<[1], [1], [0], [0], [0, 0, 1, 0], [], []>} : vector<16x8xf32>, vector<16x8xf32>, vector<16x16xf32> -> vector<16x16xf32>
    %69 = arith.addf %68, %2 : vector<16x16xf32>
    %cst_31 = arith.constant dense<0xFF800000> : vector<16xf32>
    %70 = vector.multi_reduction <maximumf>, %69, %cst_31 [1] : vector<16x16xf32> to vector<16xf32>
    %71 = vector.shape_cast %70 : vector<16xf32> to vector<16x1xf32>
    %72 = vector.broadcast %71 : vector<16x1xf32> to vector<16x16xf32>
    %73 = arith.subf %69, %72 : vector<16x16xf32>
    %74 = math.exp %73 : vector<16x16xf32>
    %cst_32 = arith.constant dense<0.000000e+00> : vector<16xf32>
    %75 = vector.multi_reduction <add>, %74, %cst_32 [1] : vector<16x16xf32> to vector<16xf32>
    %76 = vector.shape_cast %75 : vector<16xf32> to vector<16x1xf32>
    %77 = vector.broadcast %76 : vector<16x1xf32> to vector<16x16xf32>
    %78 = arith.divf %74, %77 : vector<16x16xf32>
    %79 = vector.extract_strided_slice %11 {offsets = [0, 24], sizes = [16, 8], strides = [1, 1]} : vector<16x32xf32> to vector<16x8xf32>
    %cst_33 = arith.constant dense<0.000000e+00> : vector<16x8xf32>
    %80 = tpu.matmul %78, %79, %cst_33 {dimension_numbers = #tpu.dot_dimension_numbers<[1], [0], [0], [1], [0, 0, 1, 1], [], []>} : vector<16x16xf32>, vector<16x8xf32>, vector<16x8xf32> -> vector<16x8xf32>
    %c24 = arith.constant 24 : index
    %c96_34 = arith.constant 96 : index
    %81 = vector.load %arg5[%c24, %c96_34] : memref<32x256xf32, #tpu.memory_space<vmem>>, vector<8x32xf32>
    %cst_35 = arith.constant dense<0.000000e+00> : vector<16x32xf32>
    %82 = tpu.matmul %80, %81, %cst_35 {dimension_numbers = #tpu.dot_dimension_numbers<[1], [0], [0], [1], [0, 0, 1, 1], [], []>} : vector<16x8xf32>, vector<8x32xf32>, vector<16x32xf32> -> vector<16x32xf32>
    %83 = arith.addf %65, %82 : vector<16x32xf32>
    %84 = vector.broadcast %12 : vector<1x32xf32> to vector<16x32xf32>
    %85 = arith.addf %83, %84 : vector<16x32xf32>
    %86 = arith.addf %85, %0 : vector<16x32xf32>
    %c4 = arith.constant 4 : index
    %c0_36 = arith.constant 0 : index
    %87 = vector.load %arg7[%c4, %c0_36] : memref<8x96xf32, #tpu.memory_space<vmem>>, vector<1x32xf32>
    %c5 = arith.constant 5 : index
    %c0_37 = arith.constant 0 : index
    %88 = vector.load %arg7[%c5, %c0_37] : memref<8x96xf32, #tpu.memory_space<vmem>>, vector<1x32xf32>
    %cst_38 = arith.constant dense<0.000000e+00> : vector<16xf32>
    %89 = vector.multi_reduction <add>, %86, %cst_38 [1] : vector<16x32xf32> to vector<16xf32>
    %90 = vector.shape_cast %89 : vector<16xf32> to vector<16x1xf32>
    %cst_39 = arith.constant 3.200000e+01 : f32
    %91 = vector.broadcast %cst_39 : f32 to vector<16x1xf32>
    %92 = arith.divf %90, %91 : vector<16x1xf32>
    %93 = arith.mulf %86, %86 : vector<16x32xf32>
    %cst_40 = arith.constant dense<0.000000e+00> : vector<16xf32>
    %94 = vector.multi_reduction <add>, %93, %cst_40 [1] : vector<16x32xf32> to vector<16xf32>
    %95 = vector.shape_cast %94 : vector<16xf32> to vector<16x1xf32>
    %cst_41 = arith.constant 3.200000e+01 : f32
    %96 = vector.broadcast %cst_41 : f32 to vector<16x1xf32>
    %97 = arith.divf %95, %96 : vector<16x1xf32>
    %98 = arith.mulf %92, %92 : vector<16x1xf32>
    %99 = arith.subf %97, %98 : vector<16x1xf32>
    %100 = vector.broadcast %92 : vector<16x1xf32> to vector<16x32xf32>
    %101 = arith.subf %86, %100 : vector<16x32xf32>
    %cst_42 = arith.constant 9.99999974E-6 : f32
    %102 = vector.broadcast %cst_42 : f32 to vector<16x1xf32>
    %103 = arith.addf %99, %102 : vector<16x1xf32>
    %104 = math.rsqrt %103 : vector<16x1xf32>
    %105 = vector.broadcast %104 : vector<16x1xf32> to vector<16x32xf32>
    %106 = arith.mulf %101, %105 : vector<16x32xf32>
    %107 = vector.broadcast %87 : vector<1x32xf32> to vector<16x32xf32>
    %108 = arith.mulf %106, %107 : vector<16x32xf32>
    %109 = vector.broadcast %88 : vector<1x32xf32> to vector<16x32xf32>
    %110 = arith.addf %108, %109 : vector<16x32xf32>
    %c0_43 = arith.constant 0 : index
    %c128 = arith.constant 128 : index
    %111 = vector.load %arg5[%c0_43, %c128] : memref<32x256xf32, #tpu.memory_space<vmem>>, vector<32x32xf32>
    %cst_44 = arith.constant dense<0.000000e+00> : vector<16x32xf32>
    %112 = tpu.matmul %110, %111, %cst_44 {dimension_numbers = #tpu.dot_dimension_numbers<[1], [0], [0], [1], [0, 0, 1, 1], [], []>} : vector<16x32xf32>, vector<32x32xf32>, vector<16x32xf32> -> vector<16x32xf32>
    %c1 = arith.constant 1 : index
    %c0_45 = arith.constant 0 : index
    %113 = vector.load %arg7[%c1, %c0_45] : memref<8x96xf32, #tpu.memory_space<vmem>>, vector<1x32xf32>
    %114 = vector.broadcast %113 : vector<1x32xf32> to vector<16x32xf32>
    %115 = arith.addf %112, %114 : vector<16x32xf32>
    %c0_46 = arith.constant 0 : index
    %c160 = arith.constant 160 : index
    %116 = vector.load %arg5[%c0_46, %c160] : memref<32x256xf32, #tpu.memory_space<vmem>>, vector<32x64xf32>
    %cst_47 = arith.constant dense<0.000000e+00> : vector<16x64xf32>
    %117 = tpu.matmul %1, %116, %cst_47 {dimension_numbers = #tpu.dot_dimension_numbers<[1], [0], [0], [1], [0, 0, 1, 1], [], []>} : vector<16x32xf32>, vector<32x64xf32>, vector<16x64xf32> -> vector<16x64xf32>
    %c1_48 = arith.constant 1 : index
    %c32 = arith.constant 32 : index
    %118 = vector.load %arg7[%c1_48, %c32] : memref<8x96xf32, #tpu.memory_space<vmem>>, vector<1x64xf32>
    %119 = vector.broadcast %118 : vector<1x64xf32> to vector<16x64xf32>
    %120 = arith.addf %117, %119 : vector<16x64xf32>
    %121 = vector.extract_strided_slice %120 {offsets = [0, 0], sizes = [16, 32], strides = [1, 1]} : vector<16x64xf32> to vector<16x32xf32>
    %122 = vector.extract_strided_slice %120 {offsets = [0, 32], sizes = [16, 32], strides = [1, 1]} : vector<16x64xf32> to vector<16x32xf32>
    %c2_49 = arith.constant 2 : index
    %c32_50 = arith.constant 32 : index
    %123 = vector.load %arg7[%c2_49, %c32_50] : memref<8x96xf32, #tpu.memory_space<vmem>>, vector<1x32xf32>
    %124 = vector.extract_strided_slice %115 {offsets = [0, 0], sizes = [16, 8], strides = [1, 1]} : vector<16x32xf32> to vector<16x8xf32>
    %125 = vector.extract_strided_slice %121 {offsets = [0, 0], sizes = [16, 8], strides = [1, 1]} : vector<16x32xf32> to vector<16x8xf32>
    %cst_51 = arith.constant dense<0.000000e+00> : vector<16x16xf32>
    %126 = tpu.matmul %124, %125, %cst_51 {dimension_numbers = #tpu.dot_dimension_numbers<[1], [1], [0], [0], [0, 0, 1, 0], [], []>} : vector<16x8xf32>, vector<16x8xf32>, vector<16x16xf32> -> vector<16x16xf32>
    %127 = arith.addf %126, %3 : vector<16x16xf32>
    %cst_52 = arith.constant dense<0xFF800000> : vector<16xf32>
    %128 = vector.multi_reduction <maximumf>, %127, %cst_52 [1] : vector<16x16xf32> to vector<16xf32>
    %129 = vector.shape_cast %128 : vector<16xf32> to vector<16x1xf32>
    %130 = vector.broadcast %129 : vector<16x1xf32> to vector<16x16xf32>
    %131 = arith.subf %127, %130 : vector<16x16xf32>
    %132 = math.exp %131 : vector<16x16xf32>
    %cst_53 = arith.constant dense<0.000000e+00> : vector<16xf32>
    %133 = vector.multi_reduction <add>, %132, %cst_53 [1] : vector<16x16xf32> to vector<16xf32>
    %134 = vector.shape_cast %133 : vector<16xf32> to vector<16x1xf32>
    %135 = vector.broadcast %134 : vector<16x1xf32> to vector<16x16xf32>
    %136 = arith.divf %132, %135 : vector<16x16xf32>
    %137 = vector.extract_strided_slice %122 {offsets = [0, 0], sizes = [16, 8], strides = [1, 1]} : vector<16x32xf32> to vector<16x8xf32>
    %cst_54 = arith.constant dense<0.000000e+00> : vector<16x8xf32>
    %138 = tpu.matmul %136, %137, %cst_54 {dimension_numbers = #tpu.dot_dimension_numbers<[1], [0], [0], [1], [0, 0, 1, 1], [], []>} : vector<16x16xf32>, vector<16x8xf32>, vector<16x8xf32> -> vector<16x8xf32>
    %c0_55 = arith.constant 0 : index
    %c224 = arith.constant 224 : index
    %139 = vector.load %arg5[%c0_55, %c224] : memref<32x256xf32, #tpu.memory_space<vmem>>, vector<8x32xf32>
    %cst_56 = arith.constant dense<0.000000e+00> : vector<16x32xf32>
    %140 = tpu.matmul %138, %139, %cst_56 {dimension_numbers = #tpu.dot_dimension_numbers<[1], [0], [0], [1], [0, 0, 1, 1], [], []>} : vector<16x8xf32>, vector<8x32xf32>, vector<16x32xf32> -> vector<16x32xf32>
    %141 = vector.extract_strided_slice %115 {offsets = [0, 8], sizes = [16, 8], strides = [1, 1]} : vector<16x32xf32> to vector<16x8xf32>
    %142 = vector.extract_strided_slice %121 {offsets = [0, 8], sizes = [16, 8], strides = [1, 1]} : vector<16x32xf32> to vector<16x8xf32>
    %cst_57 = arith.constant dense<0.000000e+00> : vector<16x16xf32>
    %143 = tpu.matmul %141, %142, %cst_57 {dimension_numbers = #tpu.dot_dimension_numbers<[1], [1], [0], [0], [0, 0, 1, 0], [], []>} : vector<16x8xf32>, vector<16x8xf32>, vector<16x16xf32> -> vector<16x16xf32>
    %144 = arith.addf %143, %3 : vector<16x16xf32>
    %cst_58 = arith.constant dense<0xFF800000> : vector<16xf32>
    %145 = vector.multi_reduction <maximumf>, %144, %cst_58 [1] : vector<16x16xf32> to vector<16xf32>
    %146 = vector.shape_cast %145 : vector<16xf32> to vector<16x1xf32>
    %147 = vector.broadcast %146 : vector<16x1xf32> to vector<16x16xf32>
    %148 = arith.subf %144, %147 : vector<16x16xf32>
    %149 = math.exp %148 : vector<16x16xf32>
    %cst_59 = arith.constant dense<0.000000e+00> : vector<16xf32>
    %150 = vector.multi_reduction <add>, %149, %cst_59 [1] : vector<16x16xf32> to vector<16xf32>
    %151 = vector.shape_cast %150 : vector<16xf32> to vector<16x1xf32>
    %152 = vector.broadcast %151 : vector<16x1xf32> to vector<16x16xf32>
    %153 = arith.divf %149, %152 : vector<16x16xf32>
    %154 = vector.extract_strided_slice %122 {offsets = [0, 8], sizes = [16, 8], strides = [1, 1]} : vector<16x32xf32> to vector<16x8xf32>
    %cst_60 = arith.constant dense<0.000000e+00> : vector<16x8xf32>
    %155 = tpu.matmul %153, %154, %cst_60 {dimension_numbers = #tpu.dot_dimension_numbers<[1], [0], [0], [1], [0, 0, 1, 1], [], []>} : vector<16x16xf32>, vector<16x8xf32>, vector<16x8xf32> -> vector<16x8xf32>
    %c8_61 = arith.constant 8 : index
    %c224_62 = arith.constant 224 : index
    %156 = vector.load %arg5[%c8_61, %c224_62] : memref<32x256xf32, #tpu.memory_space<vmem>>, vector<8x32xf32>
    %cst_63 = arith.constant dense<0.000000e+00> : vector<16x32xf32>
    %157 = tpu.matmul %155, %156, %cst_63 {dimension_numbers = #tpu.dot_dimension_numbers<[1], [0], [0], [1], [0, 0, 1, 1], [], []>} : vector<16x8xf32>, vector<8x32xf32>, vector<16x32xf32> -> vector<16x32xf32>
    %158 = arith.addf %140, %157 : vector<16x32xf32>
    %159 = vector.extract_strided_slice %115 {offsets = [0, 16], sizes = [16, 8], strides = [1, 1]} : vector<16x32xf32> to vector<16x8xf32>
    %160 = vector.extract_strided_slice %121 {offsets = [0, 16], sizes = [16, 8], strides = [1, 1]} : vector<16x32xf32> to vector<16x8xf32>
    %cst_64 = arith.constant dense<0.000000e+00> : vector<16x16xf32>
    %161 = tpu.matmul %159, %160, %cst_64 {dimension_numbers = #tpu.dot_dimension_numbers<[1], [1], [0], [0], [0, 0, 1, 0], [], []>} : vector<16x8xf32>, vector<16x8xf32>, vector<16x16xf32> -> vector<16x16xf32>
    %162 = arith.addf %161, %3 : vector<16x16xf32>
    %cst_65 = arith.constant dense<0xFF800000> : vector<16xf32>
    %163 = vector.multi_reduction <maximumf>, %162, %cst_65 [1] : vector<16x16xf32> to vector<16xf32>
    %164 = vector.shape_cast %163 : vector<16xf32> to vector<16x1xf32>
    %165 = vector.broadcast %164 : vector<16x1xf32> to vector<16x16xf32>
    %166 = arith.subf %162, %165 : vector<16x16xf32>
    %167 = math.exp %166 : vector<16x16xf32>
    %cst_66 = arith.constant dense<0.000000e+00> : vector<16xf32>
    %168 = vector.multi_reduction <add>, %167, %cst_66 [1] : vector<16x16xf32> to vector<16xf32>
    %169 = vector.shape_cast %168 : vector<16xf32> to vector<16x1xf32>
    %170 = vector.broadcast %169 : vector<16x1xf32> to vector<16x16xf32>
    %171 = arith.divf %167, %170 : vector<16x16xf32>
    %172 = vector.extract_strided_slice %122 {offsets = [0, 16], sizes = [16, 8], strides = [1, 1]} : vector<16x32xf32> to vector<16x8xf32>
    %cst_67 = arith.constant dense<0.000000e+00> : vector<16x8xf32>
    %173 = tpu.matmul %171, %172, %cst_67 {dimension_numbers = #tpu.dot_dimension_numbers<[1], [0], [0], [1], [0, 0, 1, 1], [], []>} : vector<16x16xf32>, vector<16x8xf32>, vector<16x8xf32> -> vector<16x8xf32>
    %c16_68 = arith.constant 16 : index
    %c224_69 = arith.constant 224 : index
    %174 = vector.load %arg5[%c16_68, %c224_69] : memref<32x256xf32, #tpu.memory_space<vmem>>, vector<8x32xf32>
    %cst_70 = arith.constant dense<0.000000e+00> : vector<16x32xf32>
    %175 = tpu.matmul %173, %174, %cst_70 {dimension_numbers = #tpu.dot_dimension_numbers<[1], [0], [0], [1], [0, 0, 1, 1], [], []>} : vector<16x8xf32>, vector<8x32xf32>, vector<16x32xf32> -> vector<16x32xf32>
    %176 = arith.addf %158, %175 : vector<16x32xf32>
    %177 = vector.extract_strided_slice %115 {offsets = [0, 24], sizes = [16, 8], strides = [1, 1]} : vector<16x32xf32> to vector<16x8xf32>
    %178 = vector.extract_strided_slice %121 {offsets = [0, 24], sizes = [16, 8], strides = [1, 1]} : vector<16x32xf32> to vector<16x8xf32>
    %cst_71 = arith.constant dense<0.000000e+00> : vector<16x16xf32>
    %179 = tpu.matmul %177, %178, %cst_71 {dimension_numbers = #tpu.dot_dimension_numbers<[1], [1], [0], [0], [0, 0, 1, 0], [], []>} : vector<16x8xf32>, vector<16x8xf32>, vector<16x16xf32> -> vector<16x16xf32>
    %180 = arith.addf %179, %3 : vector<16x16xf32>
    %cst_72 = arith.constant dense<0xFF800000> : vector<16xf32>
    %181 = vector.multi_reduction <maximumf>, %180, %cst_72 [1] : vector<16x16xf32> to vector<16xf32>
    %182 = vector.shape_cast %181 : vector<16xf32> to vector<16x1xf32>
    %183 = vector.broadcast %182 : vector<16x1xf32> to vector<16x16xf32>
    %184 = arith.subf %180, %183 : vector<16x16xf32>
    %185 = math.exp %184 : vector<16x16xf32>
    %cst_73 = arith.constant dense<0.000000e+00> : vector<16xf32>
    %186 = vector.multi_reduction <add>, %185, %cst_73 [1] : vector<16x16xf32> to vector<16xf32>
    %187 = vector.shape_cast %186 : vector<16xf32> to vector<16x1xf32>
    %188 = vector.broadcast %187 : vector<16x1xf32> to vector<16x16xf32>
    %189 = arith.divf %185, %188 : vector<16x16xf32>
    %190 = vector.extract_strided_slice %122 {offsets = [0, 24], sizes = [16, 8], strides = [1, 1]} : vector<16x32xf32> to vector<16x8xf32>
    %cst_74 = arith.constant dense<0.000000e+00> : vector<16x8xf32>
    %191 = tpu.matmul %189, %190, %cst_74 {dimension_numbers = #tpu.dot_dimension_numbers<[1], [0], [0], [1], [0, 0, 1, 1], [], []>} : vector<16x16xf32>, vector<16x8xf32>, vector<16x8xf32> -> vector<16x8xf32>
    %c24_75 = arith.constant 24 : index
    %c224_76 = arith.constant 224 : index
    %192 = vector.load %arg5[%c24_75, %c224_76] : memref<32x256xf32, #tpu.memory_space<vmem>>, vector<8x32xf32>
    %cst_77 = arith.constant dense<0.000000e+00> : vector<16x32xf32>
    %193 = tpu.matmul %191, %192, %cst_77 {dimension_numbers = #tpu.dot_dimension_numbers<[1], [0], [0], [1], [0, 0, 1, 1], [], []>} : vector<16x8xf32>, vector<8x32xf32>, vector<16x32xf32> -> vector<16x32xf32>
    %194 = arith.addf %176, %193 : vector<16x32xf32>
    %195 = vector.broadcast %123 : vector<1x32xf32> to vector<16x32xf32>
    %196 = arith.addf %194, %195 : vector<16x32xf32>
    %197 = arith.addf %196, %110 : vector<16x32xf32>
    %c4_78 = arith.constant 4 : index
    %c32_79 = arith.constant 32 : index
    %198 = vector.load %arg7[%c4_78, %c32_79] : memref<8x96xf32, #tpu.memory_space<vmem>>, vector<1x32xf32>
    %c5_80 = arith.constant 5 : index
    %c32_81 = arith.constant 32 : index
    %199 = vector.load %arg7[%c5_80, %c32_81] : memref<8x96xf32, #tpu.memory_space<vmem>>, vector<1x32xf32>
    %cst_82 = arith.constant dense<0.000000e+00> : vector<16xf32>
    %200 = vector.multi_reduction <add>, %197, %cst_82 [1] : vector<16x32xf32> to vector<16xf32>
    %201 = vector.shape_cast %200 : vector<16xf32> to vector<16x1xf32>
    %cst_83 = arith.constant 3.200000e+01 : f32
    %202 = vector.broadcast %cst_83 : f32 to vector<16x1xf32>
    %203 = arith.divf %201, %202 : vector<16x1xf32>
    %204 = arith.mulf %197, %197 : vector<16x32xf32>
    %cst_84 = arith.constant dense<0.000000e+00> : vector<16xf32>
    %205 = vector.multi_reduction <add>, %204, %cst_84 [1] : vector<16x32xf32> to vector<16xf32>
    %206 = vector.shape_cast %205 : vector<16xf32> to vector<16x1xf32>
    %cst_85 = arith.constant 3.200000e+01 : f32
    %207 = vector.broadcast %cst_85 : f32 to vector<16x1xf32>
    %208 = arith.divf %206, %207 : vector<16x1xf32>
    %209 = arith.mulf %203, %203 : vector<16x1xf32>
    %210 = arith.subf %208, %209 : vector<16x1xf32>
    %211 = vector.broadcast %203 : vector<16x1xf32> to vector<16x32xf32>
    %212 = arith.subf %197, %211 : vector<16x32xf32>
    %cst_86 = arith.constant 9.99999974E-6 : f32
    %213 = vector.broadcast %cst_86 : f32 to vector<16x1xf32>
    %214 = arith.addf %210, %213 : vector<16x1xf32>
    %215 = math.rsqrt %214 : vector<16x1xf32>
    %216 = vector.broadcast %215 : vector<16x1xf32> to vector<16x32xf32>
    %217 = arith.mulf %212, %216 : vector<16x32xf32>
    %218 = vector.broadcast %198 : vector<1x32xf32> to vector<16x32xf32>
    %219 = arith.mulf %217, %218 : vector<16x32xf32>
    %220 = vector.broadcast %199 : vector<1x32xf32> to vector<16x32xf32>
    %221 = arith.addf %219, %220 : vector<16x32xf32>
    %c0_87 = arith.constant 0 : index
    %c0_88 = arith.constant 0 : index
    %222 = vector.load %arg6[%c0_87, %c0_88] : memref<64x96xf32, #tpu.memory_space<vmem>>, vector<32x64xf32>
    %cst_89 = arith.constant dense<0.000000e+00> : vector<16x64xf32>
    %223 = tpu.matmul %221, %222, %cst_89 {dimension_numbers = #tpu.dot_dimension_numbers<[1], [0], [0], [1], [0, 0, 1, 1], [], []>} : vector<16x32xf32>, vector<32x64xf32>, vector<16x64xf32> -> vector<16x64xf32>
    %c3 = arith.constant 3 : index
    %c0_90 = arith.constant 0 : index
    %224 = vector.load %arg7[%c3, %c0_90] : memref<8x96xf32, #tpu.memory_space<vmem>>, vector<1x64xf32>
    %225 = vector.broadcast %224 : vector<1x64xf32> to vector<16x64xf32>
    %226 = arith.addf %223, %225 : vector<16x64xf32>
    %227 = arith.negf %226 : vector<16x64xf32>
    %228 = math.exp %227 : vector<16x64xf32>
    %cst_91 = arith.constant 1.000000e+00 : f32
    %229 = vector.broadcast %cst_91 : f32 to vector<16x64xf32>
    %230 = arith.addf %229, %228 : vector<16x64xf32>
    %231 = arith.divf %229, %230 : vector<16x64xf32>
    %232 = arith.mulf %226, %231 : vector<16x64xf32>
    %c0_92 = arith.constant 0 : index
    %c64 = arith.constant 64 : index
    %233 = vector.load %arg6[%c0_92, %c64] : memref<64x96xf32, #tpu.memory_space<vmem>>, vector<64x32xf32>
    %cst_93 = arith.constant dense<0.000000e+00> : vector<16x32xf32>
    %234 = tpu.matmul %232, %233, %cst_93 {dimension_numbers = #tpu.dot_dimension_numbers<[1], [0], [0], [1], [0, 0, 1, 1], [], []>} : vector<16x64xf32>, vector<64x32xf32>, vector<16x32xf32> -> vector<16x32xf32>
    %c2_94 = arith.constant 2 : index
    %c64_95 = arith.constant 64 : index
    %235 = vector.load %arg7[%c2_94, %c64_95] : memref<8x96xf32, #tpu.memory_space<vmem>>, vector<1x32xf32>
    %236 = vector.broadcast %235 : vector<1x32xf32> to vector<16x32xf32>
    %237 = arith.addf %234, %236 : vector<16x32xf32>
    %238 = arith.addf %237, %221 : vector<16x32xf32>
    %c4_96 = arith.constant 4 : index
    %c64_97 = arith.constant 64 : index
    %239 = vector.load %arg7[%c4_96, %c64_97] : memref<8x96xf32, #tpu.memory_space<vmem>>, vector<1x32xf32>
    %c5_98 = arith.constant 5 : index
    %c64_99 = arith.constant 64 : index
    %240 = vector.load %arg7[%c5_98, %c64_99] : memref<8x96xf32, #tpu.memory_space<vmem>>, vector<1x32xf32>
    %cst_100 = arith.constant dense<0.000000e+00> : vector<16xf32>
    %241 = vector.multi_reduction <add>, %238, %cst_100 [1] : vector<16x32xf32> to vector<16xf32>
    %242 = vector.shape_cast %241 : vector<16xf32> to vector<16x1xf32>
    %cst_101 = arith.constant 3.200000e+01 : f32
    %243 = vector.broadcast %cst_101 : f32 to vector<16x1xf32>
    %244 = arith.divf %242, %243 : vector<16x1xf32>
    %245 = arith.mulf %238, %238 : vector<16x32xf32>
    %cst_102 = arith.constant dense<0.000000e+00> : vector<16xf32>
    %246 = vector.multi_reduction <add>, %245, %cst_102 [1] : vector<16x32xf32> to vector<16xf32>
    %247 = vector.shape_cast %246 : vector<16xf32> to vector<16x1xf32>
    %cst_103 = arith.constant 3.200000e+01 : f32
    %248 = vector.broadcast %cst_103 : f32 to vector<16x1xf32>
    %249 = arith.divf %247, %248 : vector<16x1xf32>
    %250 = arith.mulf %244, %244 : vector<16x1xf32>
    %251 = arith.subf %249, %250 : vector<16x1xf32>
    %252 = vector.broadcast %244 : vector<16x1xf32> to vector<16x32xf32>
    %253 = arith.subf %238, %252 : vector<16x32xf32>
    %cst_104 = arith.constant 9.99999974E-6 : f32
    %254 = vector.broadcast %cst_104 : f32 to vector<16x1xf32>
    %255 = arith.addf %251, %254 : vector<16x1xf32>
    %256 = math.rsqrt %255 : vector<16x1xf32>
    %257 = vector.broadcast %256 : vector<16x1xf32> to vector<16x32xf32>
    %258 = arith.mulf %253, %257 : vector<16x32xf32>
    %259 = vector.broadcast %239 : vector<1x32xf32> to vector<16x32xf32>
    %260 = arith.mulf %258, %259 : vector<16x32xf32>
    %261 = vector.broadcast %240 : vector<1x32xf32> to vector<16x32xf32>
    %262 = arith.addf %260, %261 : vector<16x32xf32>
    %c0_105 = arith.constant 0 : index
    %c0_106 = arith.constant 0 : index
    %263 = vector.load %arg8[%c0_105, %c0_106] : memref<16x32xf32, #tpu.memory_space<vmem>>, vector<16x32xf32>
    tpu.vector_store %arg8[%c0_105, %c0_106], %262 {strides = array<i32>} : memref<16x32xf32, #tpu.memory_space<vmem>>, vector<16x32xf32>,
    return
  }
  func.func @transform_0(%arg0: i32) -> (i32, i32) {
    %c0_i32 = arith.constant 0 : i32
    %c0_i32_0 = arith.constant 0 : i32
    %c0_i32_1 = arith.constant 0 : i32
    return %c0_i32, %c0_i32_0 : i32, i32
  }
  func.func @transform_1(%arg0: i32) -> (i32, i32) {
    %c0_i32 = arith.constant 0 : i32
    %c0_i32_0 = arith.constant 0 : i32
    %c0_i32_1 = arith.constant 0 : i32
    return %c0_i32, %c0_i32_0 : i32, i32
  }
  func.func @transform_2(%arg0: i32) -> (i32, i32) {
    %c0_i32 = arith.constant 0 : i32
    %c0_i32_0 = arith.constant 0 : i32
    %c0_i32_1 = arith.constant 0 : i32
    return %c0_i32, %c0_i32_0 : i32, i32
  }
  func.func @transform_3(%arg0: i32) -> (i32, i32) {
    %c0_i32 = arith.constant 0 : i32
    %c0_i32_0 = arith.constant 0 : i32
    %c0_i32_1 = arith.constant 0 : i32
    return %c0_i32, %c0_i32_0 : i32, i32
  }
  func.func @transform_4(%arg0: i32) -> (i32, i32) {
    %c0_i32 = arith.constant 0 : i32
    %c0_i32_0 = arith.constant 0 : i32
    %c0_i32_1 = arith.constant 0 : i32
    return %c0_i32, %c0_i32_0 : i32, i32
  }
  func.func @transform_5(%arg0: i32) -> (i32, i32) {
    %c0_i32 = arith.constant 0 : i32
    %c0_i32_0 = arith.constant 0 : i32
    %c0_i32_1 = arith.constant 0 : i32
    return %c0_i32, %c0_i32_0 : i32, i32
  }
  func.func @transform_6(%arg0: i32) -> (i32, i32) {
    %c0_i32 = arith.constant 0 : i32
    %c0_i32_0 = arith.constant 0 : i32
    %c0_i32_1 = arith.constant 0 : i32
    return %c0_i32, %c0_i32_0 : i32, i32
  }
  func.func @transform_7(%arg0: i32) -> (i32, i32) {
    %c0_i32 = arith.constant 0 : i32
    %c0_i32_0 = arith.constant 0 : i32
    %c0_i32_1 = arith.constant 0 : i32
    return %c0_i32, %c0_i32_0 : i32, i32
  }
}

</mosaic_0001>

<llo_original>
// kernel: tpu_custom_call.1
$region0: #{tpu_custom_call.1}
  #allocation0 [shape = 'u32[]', space=smem, size = 0x4, offset = 0x4, fixed_abs, tag = 'smem constant byte address 0x4 - core index']
  #allocation1 [shape = 'u32[144,128]{1,0:T(1,128)}', space=vmem, size = 0x12000, scoped, tag = 'internal scratch']
  %s0 = inlined_call_operand.hbm [shape: f32[16,32], index: 0, kind: input, shape index: {}]
  %s1 = inlined_call_operand.hbm [shape: f32[16,32], index: 1, kind: input, shape index: {}]
  %s2 = inlined_call_operand.hbm [shape: f32[16,16], index: 2, kind: input, shape index: {}]
  %s3 = inlined_call_operand.hbm [shape: f32[16,16], index: 3, kind: input, shape index: {}]
  %s4 = inlined_call_operand.hbm [shape: f32[32,256], index: 4, kind: input, shape index: {}]
  %s5 = inlined_call_operand.hbm [shape: f32[64,96], index: 5, kind: input, shape index: {}]
  %s6 = inlined_call_operand.vmem [shape: f32[8,96], index: 6, kind: input, shape index: {}]
  %s7 = inlined_call_operand.hbm [shape: f32[16,32], index: 7, kind: output, shape index: {}]
  %s8 = sld [smem:[#allocation0]]
  $region62: #{tpu_custom_call.1} parent=0
    _
  %s10 = ssub.s32 1, %s8
  %s11 = scalar_select 0, %s10, %s8
  $region1: #{tpu_custom_call.1} parent=0
    #allocation2 [shape = 'u8[8192]{0}', space=vmem, size = 0x2000, scoped, tag = 'input window, operand 0, single buffered']
    #allocation3 [shape = 's32[1]{0}', space=sflag, size = 0x4, scoped, tag = 'scoped memory for tpu_custom_call.1']
    #allocation4 [shape = 's32[1]{0}', space=sflag, size = 0x4, scoped, tag = 'scoped memory for tpu_custom_call.1']
    #allocation5 [shape = 'u8[8192]{0}', space=vmem, size = 0x2000, scoped, tag = 'input window, operand 1, single buffered']
    #allocation6 [shape = 's32[1]{0}', space=sflag, size = 0x4, scoped, tag = 'scoped memory for tpu_custom_call.1']
    #allocation7 [shape = 'u8[8192]{0}', space=vmem, size = 0x2000, scoped, tag = 'input window, operand 2, single buffered']
    #allocation8 [shape = 'u8[8192]{0}', space=vmem, size = 0x2000, scoped, tag = 'input window, operand 3, single buffered']
    #allocation9 [shape = 's32[1]{0}', space=sflag, size = 0x4, scoped, tag = 'scoped memory for tpu_custom_call.1']
    #allocation10 [shape = 'u8[32768]{0}', space=vmem, size = 0x8000, scoped, tag = 'input window, operand 4, single buffered']
    #allocation11 [shape = 'u8[32768]{0}', space=vmem, size = 0x8000, scoped, tag = 'input window, operand 5, single buffered']
    #allocation12 [shape = 's32[1]{0}', space=sflag, size = 0x4, scoped, tag = 'scoped memory for tpu_custom_call.1']
    #allocation13 [shape = 'u8[8192]{0}', space=vmem, size = 0x2000, scoped, tag = 'output window, operand 0, single buffered']
    %12 = vsyncpa [#allocation3], 0
    %13 = vsyncpa [#allocation6], 0
    %14 = vsyncpa [#allocation9], 0
    %15 = vsyncpa [#allocation12], 0
    %16 = vsyncpa [#allocation4], 0
    // Predicated region
    $region2: #{tpu_custom_call.1} parent=1 // pred_check
      _
    $region3: #{tpu_custom_call.1} parent=1 // pred_check_branch
      %18 = sbr.rel (0) target = $region5
    $region4: #{tpu_custom_call.1} parent=1 // pred_region
      %s20 = ssub.s32 256, 256
      %21 = vsyncadd [#allocation3], %s20
      %s22 = sshll.u32 [#allocation2], 4
      %s23 = int_to_ptr.vmem [resolvable:$true] %s22
      %28 = dma.hbm_to_vmem [thread:$0]  %s0, 256, %s23, [#allocation3], 128, 128, 8
    $region5: #{tpu_custom_call.1} parent=1 // pred_fallthru
      _
    // Predicated region
    $region6: #{tpu_custom_call.1} parent=1 // pred_check
      _
    $region7: #{tpu_custom_call.1} parent=1 // pred_check_branch
      %30 = sbr.rel (0) target = $region9
    $region8: #{tpu_custom_call.1} parent=1 // pred_region
      %s32 = ssub.s32 256, 256
      %33 = vsyncadd [#allocation6], %s32
      %s34 = sshll.u32 [#allocation5], 4
      %s35 = int_to_ptr.vmem [resolvable:$true] %s34
      %40 = dma.hbm_to_vmem [thread:$0]  %s1, 256, %s35, [#allocation6], 128, 128, 8
    $region9: #{tpu_custom_call.1} parent=1 // pred_fallthru
      _
    // Predicated region
    $region10: #{tpu_custom_call.1} parent=1 // pred_check
      _
    $region11: #{tpu_custom_call.1} parent=1 // pred_check_branch
      %42 = sbr.rel (0) target = $region13
    $region12: #{tpu_custom_call.1} parent=1 // pred_region
      %s44 = ssub.s32 256, 256
      %45 = vsyncadd [#allocation6], %s44
      %s46 = sshll.u32 [#allocation7], 4
      %s47 = int_to_ptr.vmem [resolvable:$true] %s46
      %52 = dma.hbm_to_vmem [thread:$0]  %s2, 256, %s47, [#allocation6], 128, 128, 8
    $region13: #{tpu_custom_call.1} parent=1 // pred_fallthru
      _
    // Predicated region
    $region14: #{tpu_custom_call.1} parent=1 // pred_check
      _
    $region15: #{tpu_custom_call.1} parent=1 // pred_check_branch
      %54 = sbr.rel (0) target = $region17
    $region16: #{tpu_custom_call.1} parent=1 // pred_region
      %s56 = ssub.s32 256, 256
      %57 = vsyncadd [#allocation9], %s56
      %s58 = sshll.u32 [#allocation8], 4
      %s59 = int_to_ptr.vmem [resolvable:$true] %s58
      %64 = dma.hbm_to_vmem [thread:$0]  %s3, 256, %s59, [#allocation9], 128, 128, 8
    $region17: #{tpu_custom_call.1} parent=1 // pred_fallthru
      _
    // Predicated region
    $region18: #{tpu_custom_call.1} parent=1 // pred_check
      _
    $region19: #{tpu_custom_call.1} parent=1 // pred_check_branch
      %66 = sbr.rel (0) target = $region21
    $region20: #{tpu_custom_call.1} parent=1 // pred_region
      %s68 = ssub.s32 1024, 1024
      %69 = vsyncadd [#allocation9], %s68
      %s70 = sshll.u32 [#allocation10], 4
      %s71 = int_to_ptr.vmem [resolvable:$true] %s70
      %76 = dma.hbm_to_vmem [thread:$0]  %s4, 1024, %s71, [#allocation9], 256, 256, 16
    $region21: #{tpu_custom_call.1} parent=1 // pred_fallthru
      _
    // Predicated region
    $region22: #{tpu_custom_call.1} parent=1 // pred_check
      _
    $region23: #{tpu_custom_call.1} parent=1 // pred_check_branch
      %78 = sbr.rel (0) target = $region25
    $region24: #{tpu_custom_call.1} parent=1 // pred_region
      %s80 = ssub.s32 1024, 1024
      %81 = vsyncadd [#allocation12], %s80
      %s82 = sshll.u32 [#allocation11], 4
      %s83 = int_to_ptr.vmem [resolvable:$true] %s82
      %88 = dma.hbm_to_vmem [thread:$0]  %s5, 1024, %s83, [#allocation12], 128, 128, 8
    $region25: #{tpu_custom_call.1} parent=1 // pred_fallthru
      _
    // Predicated region
    $region26: #{tpu_custom_call.1} parent=1 // pred_check
      _
    $region27: #{tpu_custom_call.1} parent=1 // pred_check_branch
      %90 = sbr.rel (0) target = $region29
    $region28: #{tpu_custom_call.1} parent=1 // pred_region
      _
    $region29: #{tpu_custom_call.1} parent=1 // pred_fallthru
      _
    // Predicated region
    $region30: #{tpu_custom_call.1} parent=1 // pred_check
      _
    $region31: #{tpu_custom_call.1} parent=1 // pred_check_branch
      %92 = sbr.rel (0) target = $region33
    $region32: #{tpu_custom_call.1} parent=1 // pred_region
      %93 = dma.done [#allocation3], 256
    $region33: #{tpu_custom_call.1} parent=1 // pred_fallthru
      _
    // Predicated region
    $region34: #{tpu_custom_call.1} parent=1 // pred_check
      _
    $region35: #{tpu_custom_call.1} parent=1 // pred_check_branch
      %95 = sbr.rel (0) target = $region37
    $region36: #{tpu_custom_call.1} parent=1 // pred_region
      %96 = dma.done [#allocation6], 256
    $region37: #{tpu_custom_call.1} parent=1 // pred_fallthru
      _
    // Predicated region
    $region38: #{tpu_custom_call.1} parent=1 // pred_check
      _
    $region39: #{tpu_custom_call.1} parent=1 // pred_check_branch
      %98 = sbr.rel (0) target = $region41
    $region40: #{tpu_custom_call.1} parent=1 // pred_region
      %99 = dma.done [#allocation6], 256
    $region41: #{tpu_custom_call.1} parent=1 // pred_fallthru
      _
    // Predicated region
    $region42: #{tpu_custom_call.1} parent=1 // pred_check
      _
    $region43: #{tpu_custom_call.1} parent=1 // pred_check_branch
      %101 = sbr.rel (0) target = $region45
    $region44: #{tpu_custom_call.1} parent=1 // pred_region
      %102 = dma.done [#allocation9], 256
    $region45: #{tpu_custom_call.1} parent=1 // pred_fallthru
      _
    // Predicated region
    $region46: #{tpu_custom_call.1} parent=1 // pred_check
      _
    $region47: #{tpu_custom_call.1} parent=1 // pred_check_branch
      %104 = sbr.rel (0) target = $region49
    $region48: #{tpu_custom_call.1} parent=1 // pred_region
      %105 = dma.done [#allocation9], 1024
    $region49: #{tpu_custom_call.1} parent=1 // pred_fallthru
      _
    // Predicated region
    $region50: #{tpu_custom_call.1} parent=1 // pred_check
      _
    $region51: #{tpu_custom_call.1} parent=1 // pred_check_branch
      %107 = sbr.rel (0) target = $region53
    $region52: #{tpu_custom_call.1} parent=1 // pred_region
      %108 = dma.done [#allocation12], 1024
    $region53: #{tpu_custom_call.1} parent=1 // pred_fallthru
      _
    %v109 = vld [vmem:[#allocation2] sm:$0xff]
    %v110 = vld [vmem:[#allocation2 + $0x8] sm:$0xff]
    %v111 = vld [vmem:[#allocation5] sm:$0xff]
    %v112 = vld [vmem:[#allocation5 + $0x8] sm:$0xff]
    %v113 = vld [vmem:[#allocation7] sm:$0xff]
    %v114 = vld [vmem:[#allocation7 + $0x8] sm:$0xff]
    %v115 = vld [vmem:[#allocation8] sm:$0xff]
    %v116 = vld [vmem:[#allocation8 + $0x8] sm:$0xff]
    %v117 = vld [vmem:[#allocation10] sm:$0xff]
    %v118 = vld [vmem:[#allocation10 + $0x10] sm:$0xff]
    %v119 = vld [vmem:[#allocation10 + $0x20] sm:$0xff]
    %v120 = vld [vmem:[#allocation10 + $0x30] sm:$0xff]
    %v121 = vld [vmem:[%s6] sm:$0x1]
    %v122 = vlaneseq
    %v123 = vshrl.u32 %v122, 7
    %v124 = vsub.s32 0, %v123
    %v125 = vrot.slane %v121, %v124
    %vm126 = vcmask 261120
    %v128 = vsel %vm126, %v109, 0
    %v131 = vsel %vm126, %v110, 0
    %133 = vmatprep.subr.mxu0 0.0
    %134 = vmatpush1.msra.mxu0 0.0
    %135 = vmatprep.subr.mxu0 0.0
    %136 = vmatpush1.msra.mxu0 0.0
    %137 = vmatprep.subr.mxu0 0.0
    %138 = vmatpush1.msra.mxu0 0.0
    %139 = vmatprep.subr.mxu0 0.0
    %140 = vmatpush1.msra.mxu0 0.0
    %141 = vmatprep.subr.mxu0 0.0
    %142 = vmatpush1.msra.mxu0 0.0
    %143 = vmatprep.subr.mxu0 0.0
    %144 = vmatpush1.msra.mxu0 0.0
    %145 = vmatprep.subr.mxu0 0.0
    %146 = vmatpush1.msra.mxu0 0.0
    %147 = vmatprep.subr.mxu0 0.0
    %148 = vmatpush1.msra.mxu0 0.0
    %149 = vmatprep.subr.mxu0 0.0
    %150 = vmatpush1.msra.mxu0 0.0
    %151 = vmatprep.subr.mxu0 0.0
    %152 = vmatpush1.msra.mxu0 0.0
    %153 = vmatprep.subr.mxu0 0.0
    %154 = vmatpush1.msra.mxu0 0.0
    %155 = vmatprep.subr.mxu0 0.0
    %156 = vmatpush1.msra.mxu0 0.0
    %157 = vmatprep.subr.mxu0 0.0
    %158 = vmatpush1.msra.mxu0 %v120
    %159 = vmatprep.subr.mxu0 0.0
    %160 = vmatpush1.msra.mxu0 %v119
    %161 = vmatprep.subr.mxu0 0.0
    %162 = vmatpush1.msra.mxu0 %v118
    %163 = vmatprep.subr.mxu0 0.0
    %164 = vmatpush1.msra.mxu0 %v117
    %165 = vmatprep.subr.mxu0 0.0
    %166 = vmatpush2.msra.mxu0 0.0
    %167 = vmatprep.subr.mxu0 0.0
    %168 = vmatpush2.msra.mxu0 0.0
    %169 = vmatprep.subr.mxu0 0.0
    %170 = vmatpush2.msra.mxu0 0.0
    %171 = vmatprep.subr.mxu0 0.0
    %172 = vmatpush2.msra.mxu0 0.0
    %173 = vmatprep.subr.mxu0 0.0
    %174 = vmatpush2.msra.mxu0 0.0
    %175 = vmatprep.subr.mxu0 0.0
    %176 = vmatpush2.msra.mxu0 0.0
    %177 = vmatprep.subr.mxu0 0.0
    %178 = vmatpush2.msra.mxu0 0.0
    %179 = vmatprep.subr.mxu0 0.0
    %180 = vmatpush2.msra.mxu0 0.0
    %181 = vmatprep.subr.mxu0 0.0
    %182 = vmatpush2.msra.mxu0 0.0
    %183 = vmatprep.subr.mxu0 0.0
    %184 = vmatpush2.msra.mxu0 0.0
    %185 = vmatprep.subr.mxu0 0.0
    %186 = vmatpush2.msra.mxu0 0.0
    %187 = vmatprep.subr.mxu0 0.0
    %188 = vmatpush2.msra.mxu0 0.0
    %189 = vmatprep.subr.mxu0 0.0
    %190 = vmatpush2.msra.mxu0 0.0
    %191 = vmatprep.subr.mxu0 0.0
    %192 = vmatpush2.msra.mxu0 0.0
    %193 = vmatprep.subr.mxu0 0.0
    %194 = vmatpush2.msra.mxu0 0.0
    %195 = vmatprep.subr.mxu0 0.0
    %196 = vmatpush2.msra.mxu0 0.0
    %197 = vmatprep.mubr.f32.mxu0 0.0
    %198 = vmatmul.mubr.f32.gmra.mxu0 %v128
    %v199 = vpop.f32.mrf.mxu0
    %v200 = vadd.f32 %v125, %v199
    %v201 = vpop.f32.mrf.mxu0
    %202 = vmatprep.mubr.f32.mxu0 0.0
    %203 = vmatmul.mubr.f32.gmra.mxu0 %v131
    %v204 = vpop.f32.mrf.mxu0
    %v205 = vadd.f32 %v125, %v204
    %v206 = vpop.f32.mrf.mxu0
    %207 = vdwg.mxu0
    %v208 = vld [vmem:[%s6 + $0x2] sm:$0x1]
    %211 = vrot.lane.b32.xlu0 %v200, 96
    %v212 = vpop.permute.xlu0 %211
    %213 = vrot.lane.b32.xlu0 %v205, 96
    %v214 = vpop.permute.xlu0 %213
    %vm215 = vcmask 64512
    %v216 = vsel %vm215, %v200, 0
    %v218 = vsel %vm215, %v205, 0
    %v220 = vsel %vm215, %v212, 0
    %v222 = vsel %vm215, %v214, 0
    %224 = vmatprep.subr.mxu0 0.0
    %225 = vmatpush1.xpose.msra.mxu0 0.0
    %226 = vmatprep.subr.mxu0 0.0
    %227 = vmatpush1.xpose.msra.mxu0 0.0
    %228 = vmatprep.subr.mxu0 0.0
    %229 = vmatpush1.xpose.msra.mxu0 0.0
    %230 = vmatprep.subr.mxu0 0.0
    %231 = vmatpush1.xpose.msra.mxu0 0.0
    %232 = vmatprep.subr.mxu0 0.0
    %233 = vmatpush1.xpose.msra.mxu0 0.0
    %234 = vmatprep.subr.mxu0 0.0
    %235 = vmatpush1.xpose.msra.mxu0 0.0
    %236 = vmatprep.subr.mxu0 0.0
    %237 = vmatpush1.xpose.msra.mxu0 0.0
    %238 = vmatprep.subr.mxu0 0.0
    %239 = vmatpush1.xpose.msra.mxu0 0.0
    %240 = vmatprep.subr.mxu0 0.0
    %241 = vmatpush1.xpose.msra.mxu0 0.0
    %242 = vmatprep.subr.mxu0 0.0
    %243 = vmatpush1.xpose.msra.mxu0 0.0
    %244 = vmatprep.subr.mxu0 0.0
    %245 = vmatpush1.xpose.msra.mxu0 0.0
    %246 = vmatprep.subr.mxu0 0.0
    %247 = vmatpush1.xpose.msra.mxu0 0.0
    %248 = vmatprep.subr.mxu0 0.0
    %249 = vmatpush1.xpose.msra.mxu0 0.0
    %250 = vmatprep.subr.mxu0 0.0
    %251 = vmatpush1.xpose.msra.mxu0 0.0
    %252 = vmatprep.subr.mxu0 0.0
    %253 = vmatpush1.xpose.msra.mxu0 %v222
    %254 = vmatprep.subr.mxu0 0.0
    %255 = vmatpush1.xpose.msra.mxu0 %v220
    %256 = vmatprep.subr.mxu0 0.0
    %257 = vmatpush2.xpose.msra.mxu0 0.0
    %258 = vmatprep.subr.mxu0 0.0
    %259 = vmatpush2.xpose.msra.mxu0 0.0
    %260 = vmatprep.subr.mxu0 0.0
    %261 = vmatpush2.xpose.msra.mxu0 0.0
    %262 = vmatprep.subr.mxu0 0.0
    %263 = vmatpush2.xpose.msra.mxu0 0.0
    %264 = vmatprep.subr.mxu0 0.0
    %265 = vmatpush2.xpose.msra.mxu0 0.0
    %266 = vmatprep.subr.mxu0 0.0
    %267 = vmatpush2.xpose.msra.mxu0 0.0
    %268 = vmatprep.subr.mxu0 0.0
    %269 = vmatpush2.xpose.msra.mxu0 0.0
    %270 = vmatprep.subr.mxu0 0.0
    %271 = vmatpush2.xpose.msra.mxu0 0.0
    %272 = vmatprep.subr.mxu0 0.0
    %273 = vmatpush2.xpose.msra.mxu0 0.0
    %274 = vmatprep.subr.mxu0 0.0
    %275 = vmatpush2.xpose.msra.mxu0 0.0
    %276 = vmatprep.subr.mxu0 0.0
    %277 = vmatpush2.xpose.msra.mxu0 0.0
    %278 = vmatprep.subr.mxu0 0.0
    %279 = vmatpush2.xpose.msra.mxu0 0.0
    %280 = vmatprep.subr.mxu0 0.0
    %281 = vmatpush2.xpose.msra.mxu0 0.0
    %282 = vmatprep.subr.mxu0 0.0
    %283 = vmatpush2.xpose.msra.mxu0 0.0
    %284 = vmatprep.subr.mxu0 0.0
    %285 = vmatpush2.xpose.msra.mxu0 0.0
    %286 = vmatprep.subr.mxu0 0.0
    %287 = vmatpush2.xpose.msra.mxu0 0.0
    %288 = vmatprep.mubr.f32.mxu0 0.0
    %289 = vmatmul.mubr.f32.gmra.mxu0 %v216
    %v290 = vpop.f32.mrf.mxu0
    %v291 = vadd.f32 %v113, %v290
    %v292 = vpop.f32.mrf.mxu0
    %293 = vmatprep.mubr.f32.mxu0 0.0
    %294 = vmatmul.mubr.f32.gmra.mxu0 %v218
    %v295 = vpop.f32.mrf.mxu0
    %v296 = vadd.f32 %v114, %v295
    %v297 = vpop.f32.mrf.mxu0
    %298 = vdwg.mxu0
    %vm299 = vcmask 130048
    %v300 = vsel %vm299, %v291, -inf
    %301 = vmax.xlane.f32.xlu0 %v300
    %v302 = vpop.xlane.xlu0 %301
    %v303 = vsel %vm299, %v296, -inf
    %304 = vmax.xlane.f32.xlu0 %v303
    %v305 = vpop.xlane.xlu0 %304
    %v306 = vsub.f32 %v291, %v302
    %v307 = vsub.f32 %v296, %v305
    %v308 = vmul.f32 %v306, 1.442695
    %v309 = vpow.pop %v308
    %v310 = vmul.f32 %v307, 1.442695
    %v311 = vpow.pop %v310
    %v312 = vsel %vm299, %v309, 0.0
    %313 = vadd.xlane.f32.xlu0 %v312
    %v314 = vpop.xlane.xlu0 %313
    %v315 = vsel %vm299, %v311, 0.0
    %316 = vadd.xlane.f32.xlu0 %v315
    %v317 = vpop.xlane.xlu0 %316
    %v318 = vrcp.pop %v314
    %v319 = vmul.f32 %v309, %v318
    %v320 = vrcp.pop %v317
    %v321 = vmul.f32 %v311, %v320
    %322 = vrot.lane.b32.xlu0 %v200, 64
    %v323 = vpop.permute.xlu0 %322
    %324 = vrot.lane.b32.xlu0 %v205, 64
    %v325 = vpop.permute.xlu0 %324
    %v329 = vsel %vm299, %v319, 0
    %v332 = vsel %vm299, %v321, 0
    %334 = vmatprep.subr.mxu0 0.0
    %335 = vmatpush1.msra.mxu0 0.0
    %336 = vmatprep.subr.mxu0 0.0
    %337 = vmatpush1.msra.mxu0 0.0
    %338 = vmatprep.subr.mxu0 0.0
    %339 = vmatpush1.msra.mxu0 0.0
    %340 = vmatprep.subr.mxu0 0.0
    %341 = vmatpush1.msra.mxu0 0.0
    %342 = vmatprep.subr.mxu0 0.0
    %343 = vmatpush1.msra.mxu0 0.0
    %344 = vmatprep.subr.mxu0 0.0
    %345 = vmatpush1.msra.mxu0 0.0
    %346 = vmatprep.subr.mxu0 0.0
    %347 = vmatpush1.msra.mxu0 0.0
    %348 = vmatprep.subr.mxu0 0.0
    %349 = vmatpush1.msra.mxu0 0.0
    %350 = vmatprep.subr.mxu0 0.0
    %351 = vmatpush1.msra.mxu0 0.0
    %352 = vmatprep.subr.mxu0 0.0
    %353 = vmatpush1.msra.mxu0 0.0
    %354 = vmatprep.subr.mxu0 0.0
    %355 = vmatpush1.msra.mxu0 0.0
    %356 = vmatprep.subr.mxu0 0.0
    %357 = vmatpush1.msra.mxu0 0.0
    %358 = vmatprep.subr.mxu0 0.0
    %359 = vmatpush1.msra.mxu0 0.0
    %360 = vmatprep.subr.mxu0 0.0
    %361 = vmatpush1.msra.mxu0 0.0
    %362 = vmatprep.subr.mxu0 0.0
    %363 = vmatpush1.msra.mxu0 %v325
    %364 = vmatprep.subr.mxu0 0.0
    %365 = vmatpush1.msra.mxu0 %v323
    %366 = vmatprep.subr.mxu0 0.0
    %367 = vmatpush2.msra.mxu0 0.0
    %368 = vmatprep.subr.mxu0 0.0
    %369 = vmatpush2.msra.mxu0 0.0
    %370 = vmatprep.subr.mxu0 0.0
    %371 = vmatpush2.msra.mxu0 0.0
    %372 = vmatprep.subr.mxu0 0.0
    %373 = vmatpush2.msra.mxu0 0.0
    %374 = vmatprep.subr.mxu0 0.0
    %375 = vmatpush2.msra.mxu0 0.0
    %376 = vmatprep.subr.mxu0 0.0
    %377 = vmatpush2.msra.mxu0 0.0
    %378 = vmatprep.subr.mxu0 0.0
    %379 = vmatpush2.msra.mxu0 0.0
    %380 = vmatprep.subr.mxu0 0.0
    %381 = vmatpush2.msra.mxu0 0.0
    %382 = vmatprep.subr.mxu0 0.0
    %383 = vmatpush2.msra.mxu0 0.0
    %384 = vmatprep.subr.mxu0 0.0
    %385 = vmatpush2.msra.mxu0 0.0
    %386 = vmatprep.subr.mxu0 0.0
    %387 = vmatpush2.msra.mxu0 0.0
    %388 = vmatprep.subr.mxu0 0.0
    %389 = vmatpush2.msra.mxu0 0.0
    %390 = vmatprep.subr.mxu0 0.0
    %391 = vmatpush2.msra.mxu0 0.0
    %392 = vmatprep.subr.mxu0 0.0
    %393 = vmatpush2.msra.mxu0 0.0
    %394 = vmatprep.subr.mxu0 0.0
    %395 = vmatpush2.msra.mxu0 0.0
    %396 = vmatprep.subr.mxu0 0.0
    %397 = vmatpush2.msra.mxu0 0.0
    %398 = vmatprep.mubr.f32.mxu0 0.0
    %399 = vmatmul.mubr.f32.gmra.mxu0 %v329
    %v400 = vpop.f32.mrf.mxu0
    %v401 = vadd.f32 0.0, %v400
    %v402 = vpop.f32.mrf.mxu0
    %403 = vmatprep.mubr.f32.mxu0 0.0
    %404 = vmatmul.mubr.f32.gmra.mxu0 %v332
    %v405 = vpop.f32.mrf.mxu0
    %v406 = vadd.f32 0.0, %v405
    %v407 = vpop.f32.mrf.mxu0
    %408 = vdwg.mxu0
    %v409 = vld [vmem:[#allocation10] sm:$0xff]
    %410 = vrot.lane.b32.xlu0 %v200, 120
    %v411 = vpop.permute.xlu0 %410
    %412 = vrot.lane.b32.xlu0 %v205, 120
    %v413 = vpop.permute.xlu0 %412
    %414 = vrot.lane.b32.xlu0 %v200, 88
    %v415 = vpop.permute.xlu0 %414
    %416 = vrot.lane.b32.xlu0 %v205, 88
    %v417 = vpop.permute.xlu0 %416
    %v418 = vsel %vm215, %v411, 0
    %v420 = vsel %vm215, %v413, 0
    %v422 = vsel %vm215, %v415, 0
    %v424 = vsel %vm215, %v417, 0
    %426 = vmatprep.subr.mxu0 0.0
    %427 = vmatpush1.xpose.msra.mxu0 0.0
    %428 = vmatprep.subr.mxu0 0.0
    %429 = vmatpush1.xpose.msra.mxu0 0.0
    %430 = vmatprep.subr.mxu0 0.0
    %431 = vmatpush1.xpose.msra.mxu0 0.0
    %432 = vmatprep.subr.mxu0 0.0
    %433 = vmatpush1.xpose.msra.mxu0 0.0
    %434 = vmatprep.subr.mxu0 0.0
    %435 = vmatpush1.xpose.msra.mxu0 0.0
    %436 = vmatprep.subr.mxu0 0.0
    %437 = vmatpush1.xpose.msra.mxu0 0.0
    %438 = vmatprep.subr.mxu0 0.0
    %439 = vmatpush1.xpose.msra.mxu0 0.0
    %440 = vmatprep.subr.mxu0 0.0
    %441 = vmatpush1.xpose.msra.mxu0 0.0
    %442 = vmatprep.subr.mxu0 0.0
    %443 = vmatpush1.xpose.msra.mxu0 0.0
    %444 = vmatprep.subr.mxu0 0.0
    %445 = vmatpush1.xpose.msra.mxu0 0.0
    %446 = vmatprep.subr.mxu0 0.0
    %447 = vmatpush1.xpose.msra.mxu0 0.0
    %448 = vmatprep.subr.mxu0 0.0
    %449 = vmatpush1.xpose.msra.mxu0 0.0
    %450 = vmatprep.subr.mxu0 0.0
    %451 = vmatpush1.xpose.msra.mxu0 0.0
    %452 = vmatprep.subr.mxu0 0.0
    %453 = vmatpush1.xpose.msra.mxu0 0.0
    %454 = vmatprep.subr.mxu0 0.0
    %455 = vmatpush1.xpose.msra.mxu0 %v424
    %456 = vmatprep.subr.mxu0 0.0
    %457 = vmatpush1.xpose.msra.mxu0 %v422
    %458 = vmatprep.subr.mxu0 0.0
    %459 = vmatpush2.xpose.msra.mxu0 0.0
    %460 = vmatprep.subr.mxu0 0.0
    %461 = vmatpush2.xpose.msra.mxu0 0.0
    %462 = vmatprep.subr.mxu0 0.0
    %463 = vmatpush2.xpose.msra.mxu0 0.0
    %464 = vmatprep.subr.mxu0 0.0
    %465 = vmatpush2.xpose.msra.mxu0 0.0
    %466 = vmatprep.subr.mxu0 0.0
    %467 = vmatpush2.xpose.msra.mxu0 0.0
    %468 = vmatprep.subr.mxu0 0.0
    %469 = vmatpush2.xpose.msra.mxu0 0.0
    %470 = vmatprep.subr.mxu0 0.0
    %471 = vmatpush2.xpose.msra.mxu0 0.0
    %472 = vmatprep.subr.mxu0 0.0
    %473 = vmatpush2.xpose.msra.mxu0 0.0
    %474 = vmatprep.subr.mxu0 0.0
    %475 = vmatpush2.xpose.msra.mxu0 0.0
    %476 = vmatprep.subr.mxu0 0.0
    %477 = vmatpush2.xpose.msra.mxu0 0.0
    %478 = vmatprep.subr.mxu0 0.0
    %479 = vmatpush2.xpose.msra.mxu0 0.0
    %480 = vmatprep.subr.mxu0 0.0
    %481 = vmatpush2.xpose.msra.mxu0 0.0
    %482 = vmatprep.subr.mxu0 0.0
    %483 = vmatpush2.xpose.msra.mxu0 0.0
    %484 = vmatprep.subr.mxu0 0.0
    %485 = vmatpush2.xpose.msra.mxu0 0.0
    %486 = vmatprep.subr.mxu0 0.0
    %487 = vmatpush2.xpose.msra.mxu0 0.0
    %488 = vmatprep.subr.mxu0 0.0
    %489 = vmatpush2.xpose.msra.mxu0 0.0
    %490 = vmatprep.mubr.f32.mxu0 0.0
    %491 = vmatmul.mubr.f32.gmra.mxu0 %v418
    %v492 = vpop.f32.mrf.mxu0
    %v493 = vadd.f32 %v113, %v492
    %v494 = vpop.f32.mrf.mxu0
    %495 = vmatprep.mubr.f32.mxu0 0.0
    %496 = vmatmul.mubr.f32.gmra.mxu0 %v420
    %v497 = vpop.f32.mrf.mxu0
    %v498 = vadd.f32 %v114, %v497
    %v499 = vpop.f32.mrf.mxu0
    %500 = vdwg.mxu0
    %v501 = vsel %vm299, %v493, -inf
    %502 = vmax.xlane.f32.xlu0 %v501
    %v503 = vpop.xlane.xlu0 %502
    %v504 = vsel %vm299, %v498, -inf
    %505 = vmax.xlane.f32.xlu0 %v504
    %v506 = vpop.xlane.xlu0 %505
    %v507 = vsub.f32 %v493, %v503
    %v508 = vsub.f32 %v498, %v506
    %v509 = vmul.f32 %v507, 1.442695
    %v510 = vpow.pop %v509
    %v511 = vmul.f32 %v508, 1.442695
    %v512 = vpow.pop %v511
    %v513 = vsel %vm299, %v510, 0.0
    %514 = vadd.xlane.f32.xlu0 %v513
    %v515 = vpop.xlane.xlu0 %514
    %v516 = vsel %vm299, %v512, 0.0
    %517 = vadd.xlane.f32.xlu0 %v516
    %v518 = vpop.xlane.xlu0 %517
    %v519 = vrcp.pop %v515
    %v520 = vmul.f32 %v510, %v519
    %v521 = vrcp.pop %v518
    %v522 = vmul.f32 %v512, %v521
    %523 = vrot.lane.b32.xlu0 %v200, 56
    %v524 = vpop.permute.xlu0 %523
    %525 = vrot.lane.b32.xlu0 %v205, 56
    %v526 = vpop.permute.xlu0 %525
    %v530 = vsel %vm299, %v520, 0
    %v533 = vsel %vm299, %v522, 0
    %535 = vmatprep.subr.mxu0 0.0
    %536 = vmatpush1.msra.mxu0 0.0
    %537 = vmatprep.subr.mxu0 0.0
    %538 = vmatpush1.msra.mxu0 0.0
    %539 = vmatprep.subr.mxu0 0.0
    %540 = vmatpush1.msra.mxu0 0.0
    %541 = vmatprep.subr.mxu0 0.0
    %542 = vmatpush1.msra.mxu0 0.0
    %543 = vmatprep.subr.mxu0 0.0
    %544 = vmatpush1.msra.mxu0 0.0
    %545 = vmatprep.subr.mxu0 0.0
    %546 = vmatpush1.msra.mxu0 0.0
    %547 = vmatprep.subr.mxu0 0.0
    %548 = vmatpush1.msra.mxu0 0.0
    %549 = vmatprep.subr.mxu0 0.0
    %550 = vmatpush1.msra.mxu0 0.0
    %551 = vmatprep.subr.mxu0 0.0
    %552 = vmatpush1.msra.mxu0 0.0
    %553 = vmatprep.subr.mxu0 0.0
    %554 = vmatpush1.msra.mxu0 0.0
    %555 = vmatprep.subr.mxu0 0.0
    %556 = vmatpush1.msra.mxu0 0.0
    %557 = vmatprep.subr.mxu0 0.0
    %558 = vmatpush1.msra.mxu0 0.0
    %559 = vmatprep.subr.mxu0 0.0
    %560 = vmatpush1.msra.mxu0 0.0
    %561 = vmatprep.subr.mxu0 0.0
    %562 = vmatpush1.msra.mxu0 0.0
    %563 = vmatprep.subr.mxu0 0.0
    %564 = vmatpush1.msra.mxu0 %v526
    %565 = vmatprep.subr.mxu0 0.0
    %566 = vmatpush1.msra.mxu0 %v524
    %567 = vmatprep.subr.mxu0 0.0
    %568 = vmatpush2.msra.mxu0 0.0
    %569 = vmatprep.subr.mxu0 0.0
    %570 = vmatpush2.msra.mxu0 0.0
    %571 = vmatprep.subr.mxu0 0.0
    %572 = vmatpush2.msra.mxu0 0.0
    %573 = vmatprep.subr.mxu0 0.0
    %574 = vmatpush2.msra.mxu0 0.0
    %575 = vmatprep.subr.mxu0 0.0
    %576 = vmatpush2.msra.mxu0 0.0
    %577 = vmatprep.subr.mxu0 0.0
    %578 = vmatpush2.msra.mxu0 0.0
    %579 = vmatprep.subr.mxu0 0.0
    %580 = vmatpush2.msra.mxu0 0.0
    %581 = vmatprep.subr.mxu0 0.0
    %582 = vmatpush2.msra.mxu0 0.0
    %583 = vmatprep.subr.mxu0 0.0
    %584 = vmatpush2.msra.mxu0 0.0
    %585 = vmatprep.subr.mxu0 0.0
    %586 = vmatpush2.msra.mxu0 0.0
    %587 = vmatprep.subr.mxu0 0.0
    %588 = vmatpush2.msra.mxu0 0.0
    %589 = vmatprep.subr.mxu0 0.0
    %590 = vmatpush2.msra.mxu0 0.0
    %591 = vmatprep.subr.mxu0 0.0
    %592 = vmatpush2.msra.mxu0 0.0
    %593 = vmatprep.subr.mxu0 0.0
    %594 = vmatpush2.msra.mxu0 0.0
    %595 = vmatprep.subr.mxu0 0.0
    %596 = vmatpush2.msra.mxu0 0.0
    %597 = vmatprep.subr.mxu0 0.0
    %598 = vmatpush2.msra.mxu0 0.0
    %599 = vmatprep.mubr.f32.mxu0 0.0
    %600 = vmatmul.mubr.f32.gmra.mxu0 %v530
    %v601 = vpop.f32.mrf.mxu0
    %v602 = vadd.f32 0.0, %v601
    %v603 = vpop.f32.mrf.mxu0
    %604 = vmatprep.mubr.f32.mxu0 0.0
    %605 = vmatmul.mubr.f32.gmra.mxu0 %v533
    %v606 = vpop.f32.mrf.mxu0
    %v607 = vadd.f32 0.0, %v606
    %v608 = vpop.f32.mrf.mxu0
    %609 = vdwg.mxu0
    %v610 = vld [vmem:[#allocation10 + $0x10] sm:$0xff]
    %612 = vrot.lane.b32.xlu0 %v610, 32
    %v613 = vpop.permute.xlu0 %612
    %v616 = vsel %vm215, %v602, 0
    %v619 = vsel %vm215, %v607, 0
    %621 = vmatprep.subr.mxu0 0.0
    %622 = vmatpush1.msra.mxu0 0.0
    %623 = vmatprep.subr.mxu0 0.0
    %624 = vmatpush1.msra.mxu0 0.0
    %625 = vmatprep.subr.mxu0 0.0
    %626 = vmatpush1.msra.mxu0 0.0
    %627 = vmatprep.subr.mxu0 0.0
    %628 = vmatpush1.msra.mxu0 0.0
    %629 = vmatprep.subr.mxu0 0.0
    %630 = vmatpush1.msra.mxu0 0.0
    %631 = vmatprep.subr.mxu0 0.0
    %632 = vmatpush1.msra.mxu0 0.0
    %633 = vmatprep.subr.mxu0 0.0
    %634 = vmatpush1.msra.mxu0 0.0
    %635 = vmatprep.subr.mxu0 0.0
    %636 = vmatpush1.msra.mxu0 0.0
    %637 = vmatprep.subr.mxu0 0.0
    %638 = vmatpush1.msra.mxu0 0.0
    %639 = vmatprep.subr.mxu0 0.0
    %640 = vmatpush1.msra.mxu0 0.0
    %641 = vmatprep.subr.mxu0 0.0
    %642 = vmatpush1.msra.mxu0 0.0
    %643 = vmatprep.subr.mxu0 0.0
    %644 = vmatpush1.msra.mxu0 0.0
    %645 = vmatprep.subr.mxu0 0.0
    %646 = vmatpush1.msra.mxu0 0.0
    %647 = vmatprep.subr.mxu0 0.0
    %648 = vmatpush1.msra.mxu0 0.0
    %649 = vmatprep.subr.mxu0 0.0
    %650 = vmatpush1.msra.mxu0 0.0
    %651 = vmatprep.subr.mxu0 0.0
    %652 = vmatpush1.msra.mxu0 %v613
    %653 = vmatprep.subr.mxu0 0.0
    %654 = vmatpush2.msra.mxu0 0.0
    %655 = vmatprep.subr.mxu0 0.0
    %656 = vmatpush2.msra.mxu0 0.0
    %657 = vmatprep.subr.mxu0 0.0
    %658 = vmatpush2.msra.mxu0 0.0
    %659 = vmatprep.subr.mxu0 0.0
    %660 = vmatpush2.msra.mxu0 0.0
    %661 = vmatprep.subr.mxu0 0.0
    %662 = vmatpush2.msra.mxu0 0.0
    %663 = vmatprep.subr.mxu0 0.0
    %664 = vmatpush2.msra.mxu0 0.0
    %665 = vmatprep.subr.mxu0 0.0
    %666 = vmatpush2.msra.mxu0 0.0
    %667 = vmatprep.subr.mxu0 0.0
    %668 = vmatpush2.msra.mxu0 0.0
    %669 = vmatprep.subr.mxu0 0.0
    %670 = vmatpush2.msra.mxu0 0.0
    %671 = vmatprep.subr.mxu0 0.0
    %672 = vmatpush2.msra.mxu0 0.0
    %673 = vmatprep.subr.mxu0 0.0
    %674 = vmatpush2.msra.mxu0 0.0
    %675 = vmatprep.subr.mxu0 0.0
    %676 = vmatpush2.msra.mxu0 0.0
    %677 = vmatprep.subr.mxu0 0.0
    %678 = vmatpush2.msra.mxu0 0.0
    %679 = vmatprep.subr.mxu0 0.0
    %680 = vmatpush2.msra.mxu0 0.0
    %681 = vmatprep.subr.mxu0 0.0
    %682 = vmatpush2.msra.mxu0 0.0
    %683 = vmatprep.subr.mxu0 0.0
    %684 = vmatpush2.msra.mxu0 0.0
    %685 = vmatprep.mubr.f32.mxu0 0.0
    %686 = vmatmul.mubr.f32.gmra.mxu0 %v616
    %v687 = vpop.f32.mrf.mxu0
    %v688 = vadd.f32 0.0, %v687
    %v689 = vpop.f32.mrf.mxu0
    %690 = vmatprep.mubr.f32.mxu0 0.0
    %691 = vmatmul.mubr.f32.gmra.mxu0 %v619
    %v692 = vpop.f32.mrf.mxu0
    %v693 = vadd.f32 0.0, %v692
    %v694 = vpop.f32.mrf.mxu0
    %695 = vdwg.mxu0
    %697 = vrot.lane.b32.xlu0 %v409, 32
    %v698 = vpop.permute.xlu0 %697
    %v701 = vsel %vm215, %v401, 0
    %v704 = vsel %vm215, %v406, 0
    %706 = vmatprep.subr.mxu0 0.0
    %707 = vmatpush1.msra.mxu0 0.0
    %708 = vmatprep.subr.mxu0 0.0
    %709 = vmatpush1.msra.mxu0 0.0
    %710 = vmatprep.subr.mxu0 0.0
    %711 = vmatpush1.msra.mxu0 0.0
    %712 = vmatprep.subr.mxu0 0.0
    %713 = vmatpush1.msra.mxu0 0.0
    %714 = vmatprep.subr.mxu0 0.0
    %715 = vmatpush1.msra.mxu0 0.0
    %716 = vmatprep.subr.mxu0 0.0
    %717 = vmatpush1.msra.mxu0 0.0
    %718 = vmatprep.subr.mxu0 0.0
    %719 = vmatpush1.msra.mxu0 0.0
    %720 = vmatprep.subr.mxu0 0.0
    %721 = vmatpush1.msra.mxu0 0.0
    %722 = vmatprep.subr.mxu0 0.0
    %723 = vmatpush1.msra.mxu0 0.0
    %724 = vmatprep.subr.mxu0 0.0
    %725 = vmatpush1.msra.mxu0 0.0
    %726 = vmatprep.subr.mxu0 0.0
    %727 = vmatpush1.msra.mxu0 0.0
    %728 = vmatprep.subr.mxu0 0.0
    %729 = vmatpush1.msra.mxu0 0.0
    %730 = vmatprep.subr.mxu0 0.0
    %731 = vmatpush1.msra.mxu0 0.0
    %732 = vmatprep.subr.mxu0 0.0
    %733 = vmatpush1.msra.mxu0 0.0
    %734 = vmatprep.subr.mxu0 0.0
    %735 = vmatpush1.msra.mxu0 0.0
    %736 = vmatprep.subr.mxu0 0.0
    %737 = vmatpush1.msra.mxu0 %v698
    %738 = vmatprep.subr.mxu0 0.0
    %739 = vmatpush2.msra.mxu0 0.0
    %740 = vmatprep.subr.mxu0 0.0
    %741 = vmatpush2.msra.mxu0 0.0
    %742 = vmatprep.subr.mxu0 0.0
    %743 = vmatpush2.msra.mxu0 0.0
    %744 = vmatprep.subr.mxu0 0.0
    %745 = vmatpush2.msra.mxu0 0.0
    %746 = vmatprep.subr.mxu0 0.0
    %747 = vmatpush2.msra.mxu0 0.0
    %748 = vmatprep.subr.mxu0 0.0
    %749 = vmatpush2.msra.mxu0 0.0
    %750 = vmatprep.subr.mxu0 0.0
    %751 = vmatpush2.msra.mxu0 0.0
    %752 = vmatprep.subr.mxu0 0.0
    %753 = vmatpush2.msra.mxu0 0.0
    %754 = vmatprep.subr.mxu0 0.0
    %755 = vmatpush2.msra.mxu0 0.0
    %756 = vmatprep.subr.mxu0 0.0
    %757 = vmatpush2.msra.mxu0 0.0
    %758 = vmatprep.subr.mxu0 0.0
    %759 = vmatpush2.msra.mxu0 0.0
    %760 = vmatprep.subr.mxu0 0.0
    %761 = vmatpush2.msra.mxu0 0.0
    %762 = vmatprep.subr.mxu0 0.0
    %763 = vmatpush2.msra.mxu0 0.0
    %764 = vmatprep.subr.mxu0 0.0
    %765 = vmatpush2.msra.mxu0 0.0
    %766 = vmatprep.subr.mxu0 0.0
    %767 = vmatpush2.msra.mxu0 0.0
    %768 = vmatprep.subr.mxu0 0.0
    %769 = vmatpush2.msra.mxu0 0.0
    %770 = vmatprep.mubr.f32.mxu0 0.0
    %771 = vmatmul.mubr.f32.gmra.mxu0 %v701
    %v772 = vpop.f32.mrf.mxu0
    %v773 = vadd.f32 %v688, %v772
    %v774 = vpop.f32.mrf.mxu0
    %775 = vmatprep.mubr.f32.mxu0 0.0
    %776 = vmatmul.mubr.f32.gmra.mxu0 %v704
    %v777 = vpop.f32.mrf.mxu0
    %v778 = vadd.f32 %v693, %v777
    %v779 = vpop.f32.mrf.mxu0
    %780 = vdwg.mxu0
    %781 = vrot.lane.b32.xlu0 %v200, 112
    %v782 = vpop.permute.xlu0 %781
    %783 = vrot.lane.b32.xlu0 %v205, 112
    %v784 = vpop.permute.xlu0 %783
    %785 = vrot.lane.b32.xlu0 %v200, 80
    %v786 = vpop.permute.xlu0 %785
    %787 = vrot.lane.b32.xlu0 %v205, 80
    %v788 = vpop.permute.xlu0 %787
    %v789 = vsel %vm215, %v782, 0
    %v791 = vsel %vm215, %v784, 0
    %v793 = vsel %vm215, %v786, 0
    %v795 = vsel %vm215, %v788, 0
    %797 = vmatprep.subr.mxu0 0.0
    %798 = vmatpush1.xpose.msra.mxu0 0.0
    %799 = vmatprep.subr.mxu0 0.0
    %800 = vmatpush1.xpose.msra.mxu0 0.0
    %801 = vmatprep.subr.mxu0 0.0
    %802 = vmatpush1.xpose.msra.mxu0 0.0
    %803 = vmatprep.subr.mxu0 0.0
    %804 = vmatpush1.xpose.msra.mxu0 0.0
    %805 = vmatprep.subr.mxu0 0.0
    %806 = vmatpush1.xpose.msra.mxu0 0.0
    %807 = vmatprep.subr.mxu0 0.0
    %808 = vmatpush1.xpose.msra.mxu0 0.0
    %809 = vmatprep.subr.mxu0 0.0
    %810 = vmatpush1.xpose.msra.mxu0 0.0
    %811 = vmatprep.subr.mxu0 0.0
    %812 = vmatpush1.xpose.msra.mxu0 0.0
    %813 = vmatprep.subr.mxu0 0.0
    %814 = vmatpush1.xpose.msra.mxu0 0.0
    %815 = vmatprep.subr.mxu0 0.0
    %816 = vmatpush1.xpose.msra.mxu0 0.0
    %817 = vmatprep.subr.mxu0 0.0
    %818 = vmatpush1.xpose.msra.mxu0 0.0
    %819 = vmatprep.subr.mxu0 0.0
    %820 = vmatpush1.xpose.msra.mxu0 0.0
    %821 = vmatprep.subr.mxu0 0.0
    %822 = vmatpush1.xpose.msra.mxu0 0.0
    %823 = vmatprep.subr.mxu0 0.0
    %824 = vmatpush1.xpose.msra.mxu0 0.0
    %825 = vmatprep.subr.mxu0 0.0
    %826 = vmatpush1.xpose.msra.mxu0 %v795
    %827 = vmatprep.subr.mxu0 0.0
    %828 = vmatpush1.xpose.msra.mxu0 %v793
    %829 = vmatprep.subr.mxu0 0.0
    %830 = vmatpush2.xpose.msra.mxu0 0.0
    %831 = vmatprep.subr.mxu0 0.0
    %832 = vmatpush2.xpose.msra.mxu0 0.0
    %833 = vmatprep.subr.mxu0 0.0
    %834 = vmatpush2.xpose.msra.mxu0 0.0
    %835 = vmatprep.subr.mxu0 0.0
    %836 = vmatpush2.xpose.msra.mxu0 0.0
    %837 = vmatprep.subr.mxu0 0.0
    %838 = vmatpush2.xpose.msra.mxu0 0.0
    %839 = vmatprep.subr.mxu0 0.0
    %840 = vmatpush2.xpose.msra.mxu0 0.0
    %841 = vmatprep.subr.mxu0 0.0
    %842 = vmatpush2.xpose.msra.mxu0 0.0
    %843 = vmatprep.subr.mxu0 0.0
    %844 = vmatpush2.xpose.msra.mxu0 0.0
    %845 = vmatprep.subr.mxu0 0.0
    %846 = vmatpush2.xpose.msra.mxu0 0.0
    %847 = vmatprep.subr.mxu0 0.0
    %848 = vmatpush2.xpose.msra.mxu0 0.0
    %849 = vmatprep.subr.mxu0 0.0
    %850 = vmatpush2.xpose.msra.mxu0 0.0
    %851 = vmatprep.subr.mxu0 0.0
    %852 = vmatpush2.xpose.msra.mxu0 0.0
    %853 = vmatprep.subr.mxu0 0.0
    %854 = vmatpush2.xpose.msra.mxu0 0.0
    %855 = vmatprep.subr.mxu0 0.0
    %856 = vmatpush2.xpose.msra.mxu0 0.0
    %857 = vmatprep.subr.mxu0 0.0
    %858 = vmatpush2.xpose.msra.mxu0 0.0
    %859 = vmatprep.subr.mxu0 0.0
    %860 = vmatpush2.xpose.msra.mxu0 0.0
    %861 = vmatprep.mubr.f32.mxu0 0.0
    %862 = vmatmul.mubr.f32.gmra.mxu0 %v789
    %v863 = vpop.f32.mrf.mxu0
    %v864 = vadd.f32 %v113, %v863
    %v865 = vpop.f32.mrf.mxu0
    %866 = vmatprep.mubr.f32.mxu0 0.0
    %867 = vmatmul.mubr.f32.gmra.mxu0 %v791
    %v868 = vpop.f32.mrf.mxu0
    %v869 = vadd.f32 %v114, %v868
    %v870 = vpop.f32.mrf.mxu0
    %871 = vdwg.mxu0
    %v872 = vsel %vm299, %v864, -inf
    %873 = vmax.xlane.f32.xlu0 %v872
    %v874 = vpop.xlane.xlu0 %873
    %v875 = vsel %vm299, %v869, -inf
    %876 = vmax.xlane.f32.xlu0 %v875
    %v877 = vpop.xlane.xlu0 %876
    %v878 = vsub.f32 %v864, %v874
    %v879 = vsub.f32 %v869, %v877
    %v880 = vmul.f32 %v878, 1.442695
    %v881 = vpow.pop %v880
    %v882 = vmul.f32 %v879, 1.442695
    %v883 = vpow.pop %v882
    %v884 = vsel %vm299, %v881, 0.0
    %885 = vadd.xlane.f32.xlu0 %v884
    %v886 = vpop.xlane.xlu0 %885
    %v887 = vsel %vm299, %v883, 0.0
    %888 = vadd.xlane.f32.xlu0 %v887
    %v889 = vpop.xlane.xlu0 %888
    %v890 = vrcp.pop %v886
    %v891 = vmul.f32 %v881, %v890
    %v892 = vrcp.pop %v889
    %v893 = vmul.f32 %v883, %v892
    %894 = vrot.lane.b32.xlu0 %v200, 48
    %v895 = vpop.permute.xlu0 %894
    %896 = vrot.lane.b32.xlu0 %v205, 48
    %v897 = vpop.permute.xlu0 %896
    %v901 = vsel %vm299, %v891, 0
    %v904 = vsel %vm299, %v893, 0
    %906 = vmatprep.subr.mxu0 0.0
    %907 = vmatpush1.msra.mxu0 0.0
    %908 = vmatprep.subr.mxu0 0.0
    %909 = vmatpush1.msra.mxu0 0.0
    %910 = vmatprep.subr.mxu0 0.0
    %911 = vmatpush1.msra.mxu0 0.0
    %912 = vmatprep.subr.mxu0 0.0
    %913 = vmatpush1.msra.mxu0 0.0
    %914 = vmatprep.subr.mxu0 0.0
    %915 = vmatpush1.msra.mxu0 0.0
    %916 = vmatprep.subr.mxu0 0.0
    %917 = vmatpush1.msra.mxu0 0.0
    %918 = vmatprep.subr.mxu0 0.0
    %919 = vmatpush1.msra.mxu0 0.0
    %920 = vmatprep.subr.mxu0 0.0
    %921 = vmatpush1.msra.mxu0 0.0
    %922 = vmatprep.subr.mxu0 0.0
    %923 = vmatpush1.msra.mxu0 0.0
    %924 = vmatprep.subr.mxu0 0.0
    %925 = vmatpush1.msra.mxu0 0.0
    %926 = vmatprep.subr.mxu0 0.0
    %927 = vmatpush1.msra.mxu0 0.0
    %928 = vmatprep.subr.mxu0 0.0
    %929 = vmatpush1.msra.mxu0 0.0
    %930 = vmatprep.subr.mxu0 0.0
    %931 = vmatpush1.msra.mxu0 0.0
    %932 = vmatprep.subr.mxu0 0.0
    %933 = vmatpush1.msra.mxu0 0.0
    %934 = vmatprep.subr.mxu0 0.0
    %935 = vmatpush1.msra.mxu0 %v897
    %936 = vmatprep.subr.mxu0 0.0
    %937 = vmatpush1.msra.mxu0 %v895
    %938 = vmatprep.subr.mxu0 0.0
    %939 = vmatpush2.msra.mxu0 0.0
    %940 = vmatprep.subr.mxu0 0.0
    %941 = vmatpush2.msra.mxu0 0.0
    %942 = vmatprep.subr.mxu0 0.0
    %943 = vmatpush2.msra.mxu0 0.0
    %944 = vmatprep.subr.mxu0 0.0
    %945 = vmatpush2.msra.mxu0 0.0
    %946 = vmatprep.subr.mxu0 0.0
    %947 = vmatpush2.msra.mxu0 0.0
    %948 = vmatprep.subr.mxu0 0.0
    %949 = vmatpush2.msra.mxu0 0.0
    %950 = vmatprep.subr.mxu0 0.0
    %951 = vmatpush2.msra.mxu0 0.0
    %952 = vmatprep.subr.mxu0 0.0
    %953 = vmatpush2.msra.mxu0 0.0
    %954 = vmatprep.subr.mxu0 0.0
    %955 = vmatpush2.msra.mxu0 0.0
    %956 = vmatprep.subr.mxu0 0.0
    %957 = vmatpush2.msra.mxu0 0.0
    %958 = vmatprep.subr.mxu0 0.0
    %959 = vmatpush2.msra.mxu0 0.0
    %960 = vmatprep.subr.mxu0 0.0
    %961 = vmatpush2.msra.mxu0 0.0
    %962 = vmatprep.subr.mxu0 0.0
    %963 = vmatpush2.msra.mxu0 0.0
    %964 = vmatprep.subr.mxu0 0.0
    %965 = vmatpush2.msra.mxu0 0.0
    %966 = vmatprep.subr.mxu0 0.0
    %967 = vmatpush2.msra.mxu0 0.0
    %968 = vmatprep.subr.mxu0 0.0
    %969 = vmatpush2.msra.mxu0 0.0
    %970 = vmatprep.mubr.f32.mxu0 0.0
    %971 = vmatmul.mubr.f32.gmra.mxu0 %v901
    %v972 = vpop.f32.mrf.mxu0
    %v973 = vadd.f32 0.0, %v972
    %v974 = vpop.f32.mrf.mxu0
    %975 = vmatprep.mubr.f32.mxu0 0.0
    %976 = vmatmul.mubr.f32.gmra.mxu0 %v904
    %v977 = vpop.f32.mrf.mxu0
    %v978 = vadd.f32 0.0, %v977
    %v979 = vpop.f32.mrf.mxu0
    %980 = vdwg.mxu0
    %v981 = vld [vmem:[#allocation10 + $0x20] sm:$0xff]
    %983 = vrot.lane.b32.xlu0 %v981, 32
    %v984 = vpop.permute.xlu0 %983
    %v987 = vsel %vm215, %v973, 0
    %v990 = vsel %vm215, %v978, 0
    %992 = vmatprep.subr.mxu0 0.0
    %993 = vmatpush1.msra.mxu0 0.0
    %994 = vmatprep.subr.mxu0 0.0
    %995 = vmatpush1.msra.mxu0 0.0
    %996 = vmatprep.subr.mxu0 0.0
    %997 = vmatpush1.msra.mxu0 0.0
    %998 = vmatprep.subr.mxu0 0.0
    %999 = vmatpush1.msra.mxu0 0.0
    %1000 = vmatprep.subr.mxu0 0.0
    %1001 = vmatpush1.msra.mxu0 0.0
    %1002 = vmatprep.subr.mxu0 0.0
    %1003 = vmatpush1.msra.mxu0 0.0
    %1004 = vmatprep.subr.mxu0 0.0
    %1005 = vmatpush1.msra.mxu0 0.0
    %1006 = vmatprep.subr.mxu0 0.0
    %1007 = vmatpush1.msra.mxu0 0.0
    %1008 = vmatprep.subr.mxu0 0.0
    %1009 = vmatpush1.msra.mxu0 0.0
    %1010 = vmatprep.subr.mxu0 0.0
    %1011 = vmatpush1.msra.mxu0 0.0
    %1012 = vmatprep.subr.mxu0 0.0
    %1013 = vmatpush1.msra.mxu0 0.0
    %1014 = vmatprep.subr.mxu0 0.0
    %1015 = vmatpush1.msra.mxu0 0.0
    %1016 = vmatprep.subr.mxu0 0.0
    %1017 = vmatpush1.msra.mxu0 0.0
    %1018 = vmatprep.subr.mxu0 0.0
    %1019 = vmatpush1.msra.mxu0 0.0
    %1020 = vmatprep.subr.mxu0 0.0
    %1021 = vmatpush1.msra.mxu0 0.0
    %1022 = vmatprep.subr.mxu0 0.0
    %1023 = vmatpush1.msra.mxu0 %v984
    %1024 = vmatprep.subr.mxu0 0.0
    %1025 = vmatpush2.msra.mxu0 0.0
    %1026 = vmatprep.subr.mxu0 0.0
    %1027 = vmatpush2.msra.mxu0 0.0
    %1028 = vmatprep.subr.mxu0 0.0
    %1029 = vmatpush2.msra.mxu0 0.0
    %1030 = vmatprep.subr.mxu0 0.0
    %1031 = vmatpush2.msra.mxu0 0.0
    %1032 = vmatprep.subr.mxu0 0.0
    %1033 = vmatpush2.msra.mxu0 0.0
    %1034 = vmatprep.subr.mxu0 0.0
    %1035 = vmatpush2.msra.mxu0 0.0
    %1036 = vmatprep.subr.mxu0 0.0
    %1037 = vmatpush2.msra.mxu0 0.0
    %1038 = vmatprep.subr.mxu0 0.0
    %1039 = vmatpush2.msra.mxu0 0.0
    %1040 = vmatprep.subr.mxu0 0.0
    %1041 = vmatpush2.msra.mxu0 0.0
    %1042 = vmatprep.subr.mxu0 0.0
    %1043 = vmatpush2.msra.mxu0 0.0
    %1044 = vmatprep.subr.mxu0 0.0
    %1045 = vmatpush2.msra.mxu0 0.0
    %1046 = vmatprep.subr.mxu0 0.0
    %1047 = vmatpush2.msra.mxu0 0.0
    %1048 = vmatprep.subr.mxu0 0.0
    %1049 = vmatpush2.msra.mxu0 0.0
    %1050 = vmatprep.subr.mxu0 0.0
    %1051 = vmatpush2.msra.mxu0 0.0
    %1052 = vmatprep.subr.mxu0 0.0
    %1053 = vmatpush2.msra.mxu0 0.0
    %1054 = vmatprep.subr.mxu0 0.0
    %1055 = vmatpush2.msra.mxu0 0.0
    %1056 = vmatprep.mubr.f32.mxu0 0.0
    %1057 = vmatmul.mubr.f32.gmra.mxu0 %v987
    %v1058 = vpop.f32.mrf.mxu0
    %v1059 = vadd.f32 0.0, %v1058
    %v1060 = vpop.f32.mrf.mxu0
    %1061 = vmatprep.mubr.f32.mxu0 0.0
    %1062 = vmatmul.mubr.f32.gmra.mxu0 %v990
    %v1063 = vpop.f32.mrf.mxu0
    %v1064 = vadd.f32 0.0, %v1063
    %v1065 = vpop.f32.mrf.mxu0
    %1066 = vdwg.mxu0
    %v1067 = vadd.f32 %v773, %v1059
    %v1068 = vadd.f32 %v778, %v1064
    %1069 = vrot.lane.b32.xlu0 %v200, 104
    %v1070 = vpop.permute.xlu0 %1069
    %1071 = vrot.lane.b32.xlu0 %v205, 104
    %v1072 = vpop.permute.xlu0 %1071
    %1073 = vrot.lane.b32.xlu0 %v200, 72
    %v1074 = vpop.permute.xlu0 %1073
    %1075 = vrot.lane.b32.xlu0 %v205, 72
    %v1076 = vpop.permute.xlu0 %1075
    %v1077 = vsel %vm215, %v1070, 0
    %v1079 = vsel %vm215, %v1072, 0
    %v1081 = vsel %vm215, %v1074, 0
    %v1083 = vsel %vm215, %v1076, 0
    %1085 = vmatprep.subr.mxu0 0.0
    %1086 = vmatpush1.xpose.msra.mxu0 0.0
    %1087 = vmatprep.subr.mxu0 0.0
    %1088 = vmatpush1.xpose.msra.mxu0 0.0
    %1089 = vmatprep.subr.mxu0 0.0
    %1090 = vmatpush1.xpose.msra.mxu0 0.0
    %1091 = vmatprep.subr.mxu0 0.0
    %1092 = vmatpush1.xpose.msra.mxu0 0.0
    %1093 = vmatprep.subr.mxu0 0.0
    %1094 = vmatpush1.xpose.msra.mxu0 0.0
    %1095 = vmatprep.subr.mxu0 0.0
    %1096 = vmatpush1.xpose.msra.mxu0 0.0
    %1097 = vmatprep.subr.mxu0 0.0
    %1098 = vmatpush1.xpose.msra.mxu0 0.0
    %1099 = vmatprep.subr.mxu0 0.0
    %1100 = vmatpush1.xpose.msra.mxu0 0.0
    %1101 = vmatprep.subr.mxu0 0.0
    %1102 = vmatpush1.xpose.msra.mxu0 0.0
    %1103 = vmatprep.subr.mxu0 0.0
    %1104 = vmatpush1.xpose.msra.mxu0 0.0
    %1105 = vmatprep.subr.mxu0 0.0
    %1106 = vmatpush1.xpose.msra.mxu0 0.0
    %1107 = vmatprep.subr.mxu0 0.0
    %1108 = vmatpush1.xpose.msra.mxu0 0.0
    %1109 = vmatprep.subr.mxu0 0.0
    %1110 = vmatpush1.xpose.msra.mxu0 0.0
    %1111 = vmatprep.subr.mxu0 0.0
    %1112 = vmatpush1.xpose.msra.mxu0 0.0
    %1113 = vmatprep.subr.mxu0 0.0
    %1114 = vmatpush1.xpose.msra.mxu0 %v1083
    %1115 = vmatprep.subr.mxu0 0.0
    %1116 = vmatpush1.xpose.msra.mxu0 %v1081
    %1117 = vmatprep.subr.mxu0 0.0
    %1118 = vmatpush2.xpose.msra.mxu0 0.0
    %1119 = vmatprep.subr.mxu0 0.0
    %1120 = vmatpush2.xpose.msra.mxu0 0.0
    %1121 = vmatprep.subr.mxu0 0.0
    %1122 = vmatpush2.xpose.msra.mxu0 0.0
    %1123 = vmatprep.subr.mxu0 0.0
    %1124 = vmatpush2.xpose.msra.mxu0 0.0
    %1125 = vmatprep.subr.mxu0 0.0
    %1126 = vmatpush2.xpose.msra.mxu0 0.0
    %1127 = vmatprep.subr.mxu0 0.0
    %1128 = vmatpush2.xpose.msra.mxu0 0.0
    %1129 = vmatprep.subr.mxu0 0.0
    %1130 = vmatpush2.xpose.msra.mxu0 0.0
    %1131 = vmatprep.subr.mxu0 0.0
    %1132 = vmatpush2.xpose.msra.mxu0 0.0
    %1133 = vmatprep.subr.mxu0 0.0
    %1134 = vmatpush2.xpose.msra.mxu0 0.0
    %1135 = vmatprep.subr.mxu0 0.0
    %1136 = vmatpush2.xpose.msra.mxu0 0.0
    %1137 = vmatprep.subr.mxu0 0.0
    %1138 = vmatpush2.xpose.msra.mxu0 0.0
    %1139 = vmatprep.subr.mxu0 0.0
    %1140 = vmatpush2.xpose.msra.mxu0 0.0
    %1141 = vmatprep.subr.mxu0 0.0
    %1142 = vmatpush2.xpose.msra.mxu0 0.0
    %1143 = vmatprep.subr.mxu0 0.0
    %1144 = vmatpush2.xpose.msra.mxu0 0.0
    %1145 = vmatprep.subr.mxu0 0.0
    %1146 = vmatpush2.xpose.msra.mxu0 0.0
    %1147 = vmatprep.subr.mxu0 0.0
    %1148 = vmatpush2.xpose.msra.mxu0 0.0
    %1149 = vmatprep.mubr.f32.mxu0 0.0
    %1150 = vmatmul.mubr.f32.gmra.mxu0 %v1077
    %v1151 = vpop.f32.mrf.mxu0
    %v1152 = vadd.f32 %v113, %v1151
    %v1153 = vpop.f32.mrf.mxu0
    %1154 = vmatprep.mubr.f32.mxu0 0.0
    %1155 = vmatmul.mubr.f32.gmra.mxu0 %v1079
    %v1156 = vpop.f32.mrf.mxu0
    %v1157 = vadd.f32 %v114, %v1156
    %v1158 = vpop.f32.mrf.mxu0
    %1159 = vdwg.mxu0
    %v1160 = vsel %vm299, %v1152, -inf
    %1161 = vmax.xlane.f32.xlu0 %v1160
    %v1162 = vpop.xlane.xlu0 %1161
    %v1163 = vsel %vm299, %v1157, -inf
    %1164 = vmax.xlane.f32.xlu0 %v1163
    %v1165 = vpop.xlane.xlu0 %1164
    %v1166 = vsub.f32 %v1152, %v1162
    %v1167 = vsub.f32 %v1157, %v1165
    %v1168 = vmul.f32 %v1166, 1.442695
    %v1169 = vpow.pop %v1168
    %v1170 = vmul.f32 %v1167, 1.442695
    %v1171 = vpow.pop %v1170
    %v1172 = vsel %vm299, %v1169, 0.0
    %1173 = vadd.xlane.f32.xlu0 %v1172
    %v1174 = vpop.xlane.xlu0 %1173
    %v1175 = vsel %vm299, %v1171, 0.0
    %1176 = vadd.xlane.f32.xlu0 %v1175
    %v1177 = vpop.xlane.xlu0 %1176
    %v1178 = vrcp.pop %v1174
    %v1179 = vmul.f32 %v1169, %v1178
    %v1180 = vrcp.pop %v1177
    %v1181 = vmul.f32 %v1171, %v1180
    %1182 = vrot.lane.b32.xlu0 %v200, 40
    %v1183 = vpop.permute.xlu0 %1182
    %1184 = vrot.lane.b32.xlu0 %v205, 40
    %v1185 = vpop.permute.xlu0 %1184
    %v1189 = vsel %vm299, %v1179, 0
    %v1192 = vsel %vm299, %v1181, 0
    %1194 = vmatprep.subr.mxu0 0.0
    %1195 = vmatpush1.msra.mxu0 0.0
    %1196 = vmatprep.subr.mxu0 0.0
    %1197 = vmatpush1.msra.mxu0 0.0
    %1198 = vmatprep.subr.mxu0 0.0
    %1199 = vmatpush1.msra.mxu0 0.0
    %1200 = vmatprep.subr.mxu0 0.0
    %1201 = vmatpush1.msra.mxu0 0.0
    %1202 = vmatprep.subr.mxu0 0.0
    %1203 = vmatpush1.msra.mxu0 0.0
    %1204 = vmatprep.subr.mxu0 0.0
    %1205 = vmatpush1.msra.mxu0 0.0
    %1206 = vmatprep.subr.mxu0 0.0
    %1207 = vmatpush1.msra.mxu0 0.0
    %1208 = vmatprep.subr.mxu0 0.0
    %1209 = vmatpush1.msra.mxu0 0.0
    %1210 = vmatprep.subr.mxu0 0.0
    %1211 = vmatpush1.msra.mxu0 0.0
    %1212 = vmatprep.subr.mxu0 0.0
    %1213 = vmatpush1.msra.mxu0 0.0
    %1214 = vmatprep.subr.mxu0 0.0
    %1215 = vmatpush1.msra.mxu0 0.0
    %1216 = vmatprep.subr.mxu0 0.0
    %1217 = vmatpush1.msra.mxu0 0.0
    %1218 = vmatprep.subr.mxu0 0.0
    %1219 = vmatpush1.msra.mxu0 0.0
    %1220 = vmatprep.subr.mxu0 0.0
    %1221 = vmatpush1.msra.mxu0 0.0
    %1222 = vmatprep.subr.mxu0 0.0
    %1223 = vmatpush1.msra.mxu0 %v1185
    %1224 = vmatprep.subr.mxu0 0.0
    %1225 = vmatpush1.msra.mxu0 %v1183
    %1226 = vmatprep.subr.mxu0 0.0
    %1227 = vmatpush2.msra.mxu0 0.0
    %1228 = vmatprep.subr.mxu0 0.0
    %1229 = vmatpush2.msra.mxu0 0.0
    %1230 = vmatprep.subr.mxu0 0.0
    %1231 = vmatpush2.msra.mxu0 0.0
    %1232 = vmatprep.subr.mxu0 0.0
    %1233 = vmatpush2.msra.mxu0 0.0
    %1234 = vmatprep.subr.mxu0 0.0
    %1235 = vmatpush2.msra.mxu0 0.0
    %1236 = vmatprep.subr.mxu0 0.0
    %1237 = vmatpush2.msra.mxu0 0.0
    %1238 = vmatprep.subr.mxu0 0.0
    %1239 = vmatpush2.msra.mxu0 0.0
    %1240 = vmatprep.subr.mxu0 0.0
    %1241 = vmatpush2.msra.mxu0 0.0
    %1242 = vmatprep.subr.mxu0 0.0
    %1243 = vmatpush2.msra.mxu0 0.0
    %1244 = vmatprep.subr.mxu0 0.0
    %1245 = vmatpush2.msra.mxu0 0.0
    %1246 = vmatprep.subr.mxu0 0.0
    %1247 = vmatpush2.msra.mxu0 0.0
    %1248 = vmatprep.subr.mxu0 0.0
    %1249 = vmatpush2.msra.mxu0 0.0
    %1250 = vmatprep.subr.mxu0 0.0
    %1251 = vmatpush2.msra.mxu0 0.0
    %1252 = vmatprep.subr.mxu0 0.0
    %1253 = vmatpush2.msra.mxu0 0.0
    %1254 = vmatprep.subr.mxu0 0.0
    %1255 = vmatpush2.msra.mxu0 0.0
    %1256 = vmatprep.subr.mxu0 0.0
    %1257 = vmatpush2.msra.mxu0 0.0
    %1258 = vmatprep.mubr.f32.mxu0 0.0
    %1259 = vmatmul.mubr.f32.gmra.mxu0 %v1189
    %v1260 = vpop.f32.mrf.mxu0
    %v1261 = vadd.f32 0.0, %v1260
    %v1262 = vpop.f32.mrf.mxu0
    %1263 = vmatprep.mubr.f32.mxu0 0.0
    %1264 = vmatmul.mubr.f32.gmra.mxu0 %v1192
    %v1265 = vpop.f32.mrf.mxu0
    %v1266 = vadd.f32 0.0, %v1265
    %v1267 = vpop.f32.mrf.mxu0
    %1268 = vdwg.mxu0
    %1270 = vrot.lane.b32.xlu0 %v120, 32
    %v1271 = vpop.permute.xlu0 %1270
    %v1274 = vsel %vm215, %v1261, 0
    %v1277 = vsel %vm215, %v1266, 0
    %1279 = vmatprep.subr.mxu0 0.0
    %1280 = vmatpush1.msra.mxu0 0.0
    %1281 = vmatprep.subr.mxu0 0.0
    %1282 = vmatpush1.msra.mxu0 0.0
    %1283 = vmatprep.subr.mxu0 0.0
    %1284 = vmatpush1.msra.mxu0 0.0
    %1285 = vmatprep.subr.mxu0 0.0
    %1286 = vmatpush1.msra.mxu0 0.0
    %1287 = vmatprep.subr.mxu0 0.0
    %1288 = vmatpush1.msra.mxu0 0.0
    %1289 = vmatprep.subr.mxu0 0.0
    %1290 = vmatpush1.msra.mxu0 0.0
    %1291 = vmatprep.subr.mxu0 0.0
    %1292 = vmatpush1.msra.mxu0 0.0
    %1293 = vmatprep.subr.mxu0 0.0
    %1294 = vmatpush1.msra.mxu0 0.0
    %1295 = vmatprep.subr.mxu0 0.0
    %1296 = vmatpush1.msra.mxu0 0.0
    %1297 = vmatprep.subr.mxu0 0.0
    %1298 = vmatpush1.msra.mxu0 0.0
    %1299 = vmatprep.subr.mxu0 0.0
    %1300 = vmatpush1.msra.mxu0 0.0
    %1301 = vmatprep.subr.mxu0 0.0
    %1302 = vmatpush1.msra.mxu0 0.0
    %1303 = vmatprep.subr.mxu0 0.0
    %1304 = vmatpush1.msra.mxu0 0.0
    %1305 = vmatprep.subr.mxu0 0.0
    %1306 = vmatpush1.msra.mxu0 0.0
    %1307 = vmatprep.subr.mxu0 0.0
    %1308 = vmatpush1.msra.mxu0 0.0
    %1309 = vmatprep.subr.mxu0 0.0
    %1310 = vmatpush1.msra.mxu0 %v1271
    %1311 = vmatprep.subr.mxu0 0.0
    %1312 = vmatpush2.msra.mxu0 0.0
    %1313 = vmatprep.subr.mxu0 0.0
    %1314 = vmatpush2.msra.mxu0 0.0
    %1315 = vmatprep.subr.mxu0 0.0
    %1316 = vmatpush2.msra.mxu0 0.0
    %1317 = vmatprep.subr.mxu0 0.0
    %1318 = vmatpush2.msra.mxu0 0.0
    %1319 = vmatprep.subr.mxu0 0.0
    %1320 = vmatpush2.msra.mxu0 0.0
    %1321 = vmatprep.subr.mxu0 0.0
    %1322 = vmatpush2.msra.mxu0 0.0
    %1323 = vmatprep.subr.mxu0 0.0
    %1324 = vmatpush2.msra.mxu0 0.0
    %1325 = vmatprep.subr.mxu0 0.0
    %1326 = vmatpush2.msra.mxu0 0.0
    %1327 = vmatprep.subr.mxu0 0.0
    %1328 = vmatpush2.msra.mxu0 0.0
    %1329 = vmatprep.subr.mxu0 0.0
    %1330 = vmatpush2.msra.mxu0 0.0
    %1331 = vmatprep.subr.mxu0 0.0
    %1332 = vmatpush2.msra.mxu0 0.0
    %1333 = vmatprep.subr.mxu0 0.0
    %1334 = vmatpush2.msra.mxu0 0.0
    %1335 = vmatprep.subr.mxu0 0.0
    %1336 = vmatpush2.msra.mxu0 0.0
    %1337 = vmatprep.subr.mxu0 0.0
    %1338 = vmatpush2.msra.mxu0 0.0
    %1339 = vmatprep.subr.mxu0 0.0
    %1340 = vmatpush2.msra.mxu0 0.0
    %1341 = vmatprep.subr.mxu0 0.0
    %1342 = vmatpush2.msra.mxu0 0.0
    %1343 = vmatprep.mubr.f32.mxu0 0.0
    %1344 = vmatmul.mubr.f32.gmra.mxu0 %v1274
    %v1345 = vpop.f32.mrf.mxu0
    %v1346 = vadd.f32 0.0, %v1345
    %v1347 = vpop.f32.mrf.mxu0
    %1348 = vmatprep.mubr.f32.mxu0 0.0
    %1349 = vmatmul.mubr.f32.gmra.mxu0 %v1277
    %v1350 = vpop.f32.mrf.mxu0
    %v1351 = vadd.f32 0.0, %v1350
    %v1352 = vpop.f32.mrf.mxu0
    %1353 = vdwg.mxu0
    %v1354 = vadd.f32 %v1067, %v1346
    %v1355 = vadd.f32 %v1068, %v1351
    %v1356 = vlaneseq
    %v1357 = vshrl.u32 %v1356, 7
    %v1358 = vsub.s32 0, %v1357
    %v1359 = vrot.slane %v208, %v1358
    %v1360 = vadd.f32 %v1354, %v1359
    %v1361 = vadd.f32 %v1355, %v1359
    %v1362 = vadd.f32 %v1360, %v109
    %v1363 = vadd.f32 %v1361, %v110
    %v1364 = vld [vmem:[%s6 + $0x4] sm:$0x1]
    %v1365 = vld [vmem:[%s6 + $0x5] sm:$0x1]
    %v1366 = vsel %vm126, %v1362, 0.0
    %1367 = vadd.xlane.f32.xlu0 %v1366
    %v1368 = vpop.xlane.xlu0 %1367
    %v1369 = vsel %vm126, %v1363, 0.0
    %1370 = vadd.xlane.f32.xlu0 %v1369
    %v1371 = vpop.xlane.xlu0 %1370
    %v1372 = vrcp.pop 32.0
    %v1373 = vmul.f32 %v1368, %v1372
    %v1374 = vmul.f32 %v1371, %v1372
    %v1375 = vmul.f32 %v1362, %v1362
    %v1376 = vmul.f32 %v1363, %v1363
    %v1377 = vsel %vm126, %v1375, 0.0
    %1378 = vadd.xlane.f32.xlu0 %v1377
    %v1379 = vpop.xlane.xlu0 %1378
    %v1380 = vsel %vm126, %v1376, 0.0
    %1381 = vadd.xlane.f32.xlu0 %v1380
    %v1382 = vpop.xlane.xlu0 %1381
    %v1383 = vmul.f32 %v1379, %v1372
    %v1384 = vmul.f32 %v1382, %v1372
    %v1385 = vmul.f32 %v1373, %v1373
    %v1386 = vmul.f32 %v1374, %v1374
    %v1387 = vsub.f32 %v1383, %v1385
    %v1388 = vsub.f32 %v1384, %v1386
    %v1389 = vsub.f32 %v1362, %v1373
    %v1390 = vsub.f32 %v1363, %v1374
    %v1391 = vadd.f32 %v1387, 1e-05
    %v1392 = vadd.f32 %v1388, 1e-05
    %v1393 = vrsqrt.pop %v1391
    %v1394 = vrsqrt.pop %v1392
    %v1395 = vmul.f32 %v1389, %v1393
    %v1396 = vmul.f32 %v1390, %v1394
    %v1397 = vlaneseq
    %v1398 = vshrl.u32 %v1397, 7
    %v1399 = vsub.s32 0, %v1398
    %v1400 = vrot.slane %v1364, %v1399
    %v1401 = vmul.f32 %v1395, %v1400
    %v1402 = vmul.f32 %v1396, %v1400
    %v1403 = vlaneseq
    %v1404 = vshrl.u32 %v1403, 7
    %v1405 = vsub.s32 0, %v1404
    %v1406 = vrot.slane %v1365, %v1405
    %v1407 = vadd.f32 %v1401, %v1406
    %v1408 = vadd.f32 %v1402, %v1406
    %v1409 = vld [vmem:[#allocation10 + $0x8] sm:$0xff]
    %v1410 = vld [vmem:[#allocation10 + $0x18] sm:$0xff]
    %v1411 = vld [vmem:[#allocation10 + $0x28] sm:$0xff]
    %v1412 = vld [vmem:[#allocation10 + $0x38] sm:$0xff]
    %v1413 = vld [vmem:[%s6 + $0x1] sm:$0x1]
    %v1414 = vlaneseq
    %v1415 = vshrl.u32 %v1414, 7
    %v1416 = vsub.s32 0, %v1415
    %v1417 = vrot.slane %v1413, %v1416
    %v1419 = vsel %vm126, %v1407, 0
    %v1422 = vsel %vm126, %v1408, 0
    %1424 = vmatprep.subr.mxu0 0.0
    %1425 = vmatpush1.msra.mxu0 0.0
    %1426 = vmatprep.subr.mxu0 0.0
    %1427 = vmatpush1.msra.mxu0 0.0
    %1428 = vmatprep.subr.mxu0 0.0
    %1429 = vmatpush1.msra.mxu0 0.0
    %1430 = vmatprep.subr.mxu0 0.0
    %1431 = vmatpush1.msra.mxu0 0.0
    %1432 = vmatprep.subr.mxu0 0.0
    %1433 = vmatpush1.msra.mxu0 0.0
    %1434 = vmatprep.subr.mxu0 0.0
    %1435 = vmatpush1.msra.mxu0 0.0
    %1436 = vmatprep.subr.mxu0 0.0
    %1437 = vmatpush1.msra.mxu0 0.0
    %1438 = vmatprep.subr.mxu0 0.0
    %1439 = vmatpush1.msra.mxu0 0.0
    %1440 = vmatprep.subr.mxu0 0.0
    %1441 = vmatpush1.msra.mxu0 0.0
    %1442 = vmatprep.subr.mxu0 0.0
    %1443 = vmatpush1.msra.mxu0 0.0
    %1444 = vmatprep.subr.mxu0 0.0
    %1445 = vmatpush1.msra.mxu0 0.0
    %1446 = vmatprep.subr.mxu0 0.0
    %1447 = vmatpush1.msra.mxu0 0.0
    %1448 = vmatprep.subr.mxu0 0.0
    %1449 = vmatpush1.msra.mxu0 %v1412
    %1450 = vmatprep.subr.mxu0 0.0
    %1451 = vmatpush1.msra.mxu0 %v1411
    %1452 = vmatprep.subr.mxu0 0.0
    %1453 = vmatpush1.msra.mxu0 %v1410
    %1454 = vmatprep.subr.mxu0 0.0
    %1455 = vmatpush1.msra.mxu0 %v1409
    %1456 = vmatprep.subr.mxu0 0.0
    %1457 = vmatpush2.msra.mxu0 0.0
    %1458 = vmatprep.subr.mxu0 0.0
    %1459 = vmatpush2.msra.mxu0 0.0
    %1460 = vmatprep.subr.mxu0 0.0
    %1461 = vmatpush2.msra.mxu0 0.0
    %1462 = vmatprep.subr.mxu0 0.0
    %1463 = vmatpush2.msra.mxu0 0.0
    %1464 = vmatprep.subr.mxu0 0.0
    %1465 = vmatpush2.msra.mxu0 0.0
    %1466 = vmatprep.subr.mxu0 0.0
    %1467 = vmatpush2.msra.mxu0 0.0
    %1468 = vmatprep.subr.mxu0 0.0
    %1469 = vmatpush2.msra.mxu0 0.0
    %1470 = vmatprep.subr.mxu0 0.0
    %1471 = vmatpush2.msra.mxu0 0.0
    %1472 = vmatprep.subr.mxu0 0.0
    %1473 = vmatpush2.msra.mxu0 0.0
    %1474 = vmatprep.subr.mxu0 0.0
    %1475 = vmatpush2.msra.mxu0 0.0
    %1476 = vmatprep.subr.mxu0 0.0
    %1477 = vmatpush2.msra.mxu0 0.0
    %1478 = vmatprep.subr.mxu0 0.0
    %1479 = vmatpush2.msra.mxu0 0.0
    %1480 = vmatprep.subr.mxu0 0.0
    %1481 = vmatpush2.msra.mxu0 0.0
    %1482 = vmatprep.subr.mxu0 0.0
    %1483 = vmatpush2.msra.mxu0 0.0
    %1484 = vmatprep.subr.mxu0 0.0
    %1485 = vmatpush2.msra.mxu0 0.0
    %1486 = vmatprep.subr.mxu0 0.0
    %1487 = vmatpush2.msra.mxu0 0.0
    %1488 = vmatprep.mubr.f32.mxu0 0.0
    %1489 = vmatmul.mubr.f32.gmra.mxu0 %v1419
    %v1490 = vpop.f32.mrf.mxu0
    %v1491 = vadd.f32 %v1417, %v1490
    %v1492 = vpop.f32.mrf.mxu0
    %1493 = vmatprep.mubr.f32.mxu0 0.0
    %1494 = vmatmul.mubr.f32.gmra.mxu0 %v1422
    %v1495 = vpop.f32.mrf.mxu0
    %v1496 = vadd.f32 %v1417, %v1495
    %v1497 = vpop.f32.mrf.mxu0
    %1498 = vdwg.mxu0
    %1503 = vrot.lane.b32.xlu0 %v1409, 96
    %v1504 = vpop.permute.xlu0 %1503
    %1505 = vrot.lane.b32.xlu0 %v1410, 96
    %v1506 = vpop.permute.xlu0 %1505
    %1507 = vrot.lane.b32.xlu0 %v1411, 96
    %v1508 = vpop.permute.xlu0 %1507
    %1509 = vrot.lane.b32.xlu0 %v1412, 96
    %v1510 = vpop.permute.xlu0 %1509
    %1516 = vrot.lane.b32.xlu0 %v1417, 96
    %v1517 = vpop.permute.xlu0 %1516
    %v1520 = vsel %vm126, %v111, 0
    %v1523 = vsel %vm126, %v112, 0
    %1525 = vmatprep.subr.mxu0 0.0
    %1526 = vmatpush1.msra.mxu0 0.0
    %1527 = vmatprep.subr.mxu0 0.0
    %1528 = vmatpush1.msra.mxu0 0.0
    %1529 = vmatprep.subr.mxu0 0.0
    %1530 = vmatpush1.msra.mxu0 0.0
    %1531 = vmatprep.subr.mxu0 0.0
    %1532 = vmatpush1.msra.mxu0 0.0
    %1533 = vmatprep.subr.mxu0 0.0
    %1534 = vmatpush1.msra.mxu0 0.0
    %1535 = vmatprep.subr.mxu0 0.0
    %1536 = vmatpush1.msra.mxu0 0.0
    %1537 = vmatprep.subr.mxu0 0.0
    %1538 = vmatpush1.msra.mxu0 0.0
    %1539 = vmatprep.subr.mxu0 0.0
    %1540 = vmatpush1.msra.mxu0 0.0
    %1541 = vmatprep.subr.mxu0 0.0
    %1542 = vmatpush1.msra.mxu0 0.0
    %1543 = vmatprep.subr.mxu0 0.0
    %1544 = vmatpush1.msra.mxu0 0.0
    %1545 = vmatprep.subr.mxu0 0.0
    %1546 = vmatpush1.msra.mxu0 0.0
    %1547 = vmatprep.subr.mxu0 0.0
    %1548 = vmatpush1.msra.mxu0 0.0
    %1549 = vmatprep.subr.mxu0 0.0
    %1550 = vmatpush1.msra.mxu0 %v1510
    %1551 = vmatprep.subr.mxu0 0.0
    %1552 = vmatpush1.msra.mxu0 %v1508
    %1553 = vmatprep.subr.mxu0 0.0
    %1554 = vmatpush1.msra.mxu0 %v1506
    %1555 = vmatprep.subr.mxu0 0.0
    %1556 = vmatpush1.msra.mxu0 %v1504
    %1557 = vmatprep.subr.mxu0 0.0
    %1558 = vmatpush2.msra.mxu0 0.0
    %1559 = vmatprep.subr.mxu0 0.0
    %1560 = vmatpush2.msra.mxu0 0.0
    %1561 = vmatprep.subr.mxu0 0.0
    %1562 = vmatpush2.msra.mxu0 0.0
    %1563 = vmatprep.subr.mxu0 0.0
    %1564 = vmatpush2.msra.mxu0 0.0
    %1565 = vmatprep.subr.mxu0 0.0
    %1566 = vmatpush2.msra.mxu0 0.0
    %1567 = vmatprep.subr.mxu0 0.0
    %1568 = vmatpush2.msra.mxu0 0.0
    %1569 = vmatprep.subr.mxu0 0.0
    %1570 = vmatpush2.msra.mxu0 0.0
    %1571 = vmatprep.subr.mxu0 0.0
    %1572 = vmatpush2.msra.mxu0 0.0
    %1573 = vmatprep.subr.mxu0 0.0
    %1574 = vmatpush2.msra.mxu0 0.0
    %1575 = vmatprep.subr.mxu0 0.0
    %1576 = vmatpush2.msra.mxu0 0.0
    %1577 = vmatprep.subr.mxu0 0.0
    %1578 = vmatpush2.msra.mxu0 0.0
    %1579 = vmatprep.subr.mxu0 0.0
    %1580 = vmatpush2.msra.mxu0 0.0
    %1581 = vmatprep.subr.mxu0 0.0
    %1582 = vmatpush2.msra.mxu0 0.0
    %1583 = vmatprep.subr.mxu0 0.0
    %1584 = vmatpush2.msra.mxu0 0.0
    %1585 = vmatprep.subr.mxu0 0.0
    %1586 = vmatpush2.msra.mxu0 0.0
    %1587 = vmatprep.subr.mxu0 0.0
    %1588 = vmatpush2.msra.mxu0 0.0
    %1589 = vmatprep.mubr.f32.mxu0 0.0
    %1590 = vmatmul.mubr.f32.gmra.mxu0 %v1520
    %v1591 = vpop.f32.mrf.mxu0
    %v1592 = vadd.f32 %v1517, %v1591
    %v1593 = vpop.f32.mrf.mxu0
    %1594 = vmatprep.mubr.f32.mxu0 0.0
    %1595 = vmatmul.mubr.f32.gmra.mxu0 %v1523
    %v1596 = vpop.f32.mrf.mxu0
    %v1597 = vadd.f32 %v1517, %v1596
    %v1598 = vpop.f32.mrf.mxu0
    %1599 = vdwg.mxu0
    %v1601 = vsel %vm215, %v1491, 0
    %v1604 = vsel %vm215, %v1496, 0
    %v1607 = vsel %vm215, %v1592, 0
    %v1610 = vsel %vm215, %v1597, 0
    %1612 = vmatprep.subr.mxu0 0.0
    %1613 = vmatpush1.xpose.msra.mxu0 0.0
    %1614 = vmatprep.subr.mxu0 0.0
    %1615 = vmatpush1.xpose.msra.mxu0 0.0
    %1616 = vmatprep.subr.mxu0 0.0
    %1617 = vmatpush1.xpose.msra.mxu0 0.0
    %1618 = vmatprep.subr.mxu0 0.0
    %1619 = vmatpush1.xpose.msra.mxu0 0.0
    %1620 = vmatprep.subr.mxu0 0.0
    %1621 = vmatpush1.xpose.msra.mxu0 0.0
    %1622 = vmatprep.subr.mxu0 0.0
    %1623 = vmatpush1.xpose.msra.mxu0 0.0
    %1624 = vmatprep.subr.mxu0 0.0
    %1625 = vmatpush1.xpose.msra.mxu0 0.0
    %1626 = vmatprep.subr.mxu0 0.0
    %1627 = vmatpush1.xpose.msra.mxu0 0.0
    %1628 = vmatprep.subr.mxu0 0.0
    %1629 = vmatpush1.xpose.msra.mxu0 0.0
    %1630 = vmatprep.subr.mxu0 0.0
    %1631 = vmatpush1.xpose.msra.mxu0 0.0
    %1632 = vmatprep.subr.mxu0 0.0
    %1633 = vmatpush1.xpose.msra.mxu0 0.0
    %1634 = vmatprep.subr.mxu0 0.0
    %1635 = vmatpush1.xpose.msra.mxu0 0.0
    %1636 = vmatprep.subr.mxu0 0.0
    %1637 = vmatpush1.xpose.msra.mxu0 0.0
    %1638 = vmatprep.subr.mxu0 0.0
    %1639 = vmatpush1.xpose.msra.mxu0 0.0
    %1640 = vmatprep.subr.mxu0 0.0
    %1641 = vmatpush1.xpose.msra.mxu0 %v1610
    %1642 = vmatprep.subr.mxu0 0.0
    %1643 = vmatpush1.xpose.msra.mxu0 %v1607
    %1644 = vmatprep.subr.mxu0 0.0
    %1645 = vmatpush2.xpose.msra.mxu0 0.0
    %1646 = vmatprep.subr.mxu0 0.0
    %1647 = vmatpush2.xpose.msra.mxu0 0.0
    %1648 = vmatprep.subr.mxu0 0.0
    %1649 = vmatpush2.xpose.msra.mxu0 0.0
    %1650 = vmatprep.subr.mxu0 0.0
    %1651 = vmatpush2.xpose.msra.mxu0 0.0
    %1652 = vmatprep.subr.mxu0 0.0
    %1653 = vmatpush2.xpose.msra.mxu0 0.0
    %1654 = vmatprep.subr.mxu0 0.0
    %1655 = vmatpush2.xpose.msra.mxu0 0.0
    %1656 = vmatprep.subr.mxu0 0.0
    %1657 = vmatpush2.xpose.msra.mxu0 0.0
    %1658 = vmatprep.subr.mxu0 0.0
    %1659 = vmatpush2.xpose.msra.mxu0 0.0
    %1660 = vmatprep.subr.mxu0 0.0
    %1661 = vmatpush2.xpose.msra.mxu0 0.0
    %1662 = vmatprep.subr.mxu0 0.0
    %1663 = vmatpush2.xpose.msra.mxu0 0.0
    %1664 = vmatprep.subr.mxu0 0.0
    %1665 = vmatpush2.xpose.msra.mxu0 0.0
    %1666 = vmatprep.subr.mxu0 0.0
    %1667 = vmatpush2.xpose.msra.mxu0 0.0
    %1668 = vmatprep.subr.mxu0 0.0
    %1669 = vmatpush2.xpose.msra.mxu0 0.0
    %1670 = vmatprep.subr.mxu0 0.0
    %1671 = vmatpush2.xpose.msra.mxu0 0.0
    %1672 = vmatprep.subr.mxu0 0.0
    %1673 = vmatpush2.xpose.msra.mxu0 0.0
    %1674 = vmatprep.subr.mxu0 0.0
    %1675 = vmatpush2.xpose.msra.mxu0 0.0
    %1676 = vmatprep.mubr.f32.mxu0 0.0
    %1677 = vmatmul.mubr.f32.gmra.mxu0 %v1601
    %v1678 = vpop.f32.mrf.mxu0
    %v1679 = vadd.f32 %v115, %v1678
    %v1680 = vpop.f32.mrf.mxu0
    %1681 = vmatprep.mubr.f32.mxu0 0.0
    %1682 = vmatmul.mubr.f32.gmra.mxu0 %v1604
    %v1683 = vpop.f32.mrf.mxu0
    %v1684 = vadd.f32 %v116, %v1683
    %v1685 = vpop.f32.mrf.mxu0
    %1686 = vdwg.mxu0
    %v1687 = vsel %vm299, %v1679, -inf
    %1688 = vmax.xlane.f32.xlu0 %v1687
    %v1689 = vpop.xlane.xlu0 %1688
    %v1690 = vsel %vm299, %v1684, -inf
    %1691 = vmax.xlane.f32.xlu0 %v1690
    %v1692 = vpop.xlane.xlu0 %1691
    %v1693 = vsub.f32 %v1679, %v1689
    %v1694 = vsub.f32 %v1684, %v1692
    %v1695 = vmul.f32 %v1693, 1.442695
    %v1696 = vpow.pop %v1695
    %v1697 = vmul.f32 %v1694, 1.442695
    %v1698 = vpow.pop %v1697
    %v1699 = vsel %vm299, %v1696, 0.0
    %1700 = vadd.xlane.f32.xlu0 %v1699
    %v1701 = vpop.xlane.xlu0 %1700
    %v1702 = vsel %vm299, %v1698, 0.0
    %1703 = vadd.xlane.f32.xlu0 %v1702
    %v1704 = vpop.xlane.xlu0 %1703
    %v1705 = vrcp.pop %v1701
    %v1706 = vmul.f32 %v1696, %v1705
    %v1707 = vrcp.pop %v1704
    %v1708 = vmul.f32 %v1698, %v1707
    %1709 = vrot.lane.b32.xlu0 %v1592, 96
    %v1710 = vpop.permute.xlu0 %1709
    %1711 = vrot.lane.b32.xlu0 %v1597, 96
    %v1712 = vpop.permute.xlu0 %1711
    %v1716 = vsel %vm299, %v1706, 0
    %v1719 = vsel %vm299, %v1708, 0
    %1721 = vmatprep.subr.mxu0 0.0
    %1722 = vmatpush1.msra.mxu0 0.0
    %1723 = vmatprep.subr.mxu0 0.0
    %1724 = vmatpush1.msra.mxu0 0.0
    %1725 = vmatprep.subr.mxu0 0.0
    %1726 = vmatpush1.msra.mxu0 0.0
    %1727 = vmatprep.subr.mxu0 0.0
    %1728 = vmatpush1.msra.mxu0 0.0
    %1729 = vmatprep.subr.mxu0 0.0
    %1730 = vmatpush1.msra.mxu0 0.0
    %1731 = vmatprep.subr.mxu0 0.0
    %1732 = vmatpush1.msra.mxu0 0.0
    %1733 = vmatprep.subr.mxu0 0.0
    %1734 = vmatpush1.msra.mxu0 0.0
    %1735 = vmatprep.subr.mxu0 0.0
    %1736 = vmatpush1.msra.mxu0 0.0
    %1737 = vmatprep.subr.mxu0 0.0
    %1738 = vmatpush1.msra.mxu0 0.0
    %1739 = vmatprep.subr.mxu0 0.0
    %1740 = vmatpush1.msra.mxu0 0.0
    %1741 = vmatprep.subr.mxu0 0.0
    %1742 = vmatpush1.msra.mxu0 0.0
    %1743 = vmatprep.subr.mxu0 0.0
    %1744 = vmatpush1.msra.mxu0 0.0
    %1745 = vmatprep.subr.mxu0 0.0
    %1746 = vmatpush1.msra.mxu0 0.0
    %1747 = vmatprep.subr.mxu0 0.0
    %1748 = vmatpush1.msra.mxu0 0.0
    %1749 = vmatprep.subr.mxu0 0.0
    %1750 = vmatpush1.msra.mxu0 %v1712
    %1751 = vmatprep.subr.mxu0 0.0
    %1752 = vmatpush1.msra.mxu0 %v1710
    %1753 = vmatprep.subr.mxu0 0.0
    %1754 = vmatpush2.msra.mxu0 0.0
    %1755 = vmatprep.subr.mxu0 0.0
    %1756 = vmatpush2.msra.mxu0 0.0
    %1757 = vmatprep.subr.mxu0 0.0
    %1758 = vmatpush2.msra.mxu0 0.0
    %1759 = vmatprep.subr.mxu0 0.0
    %1760 = vmatpush2.msra.mxu0 0.0
    %1761 = vmatprep.subr.mxu0 0.0
    %1762 = vmatpush2.msra.mxu0 0.0
    %1763 = vmatprep.subr.mxu0 0.0
    %1764 = vmatpush2.msra.mxu0 0.0
    %1765 = vmatprep.subr.mxu0 0.0
    %1766 = vmatpush2.msra.mxu0 0.0
    %1767 = vmatprep.subr.mxu0 0.0
    %1768 = vmatpush2.msra.mxu0 0.0
    %1769 = vmatprep.subr.mxu0 0.0
    %1770 = vmatpush2.msra.mxu0 0.0
    %1771 = vmatprep.subr.mxu0 0.0
    %1772 = vmatpush2.msra.mxu0 0.0
    %1773 = vmatprep.subr.mxu0 0.0
    %1774 = vmatpush2.msra.mxu0 0.0
    %1775 = vmatprep.subr.mxu0 0.0
    %1776 = vmatpush2.msra.mxu0 0.0
    %1777 = vmatprep.subr.mxu0 0.0
    %1778 = vmatpush2.msra.mxu0 0.0
    %1779 = vmatprep.subr.mxu0 0.0
    %1780 = vmatpush2.msra.mxu0 0.0
    %1781 = vmatprep.subr.mxu0 0.0
    %1782 = vmatpush2.msra.mxu0 0.0
    %1783 = vmatprep.subr.mxu0 0.0
    %1784 = vmatpush2.msra.mxu0 0.0
    %1785 = vmatprep.mubr.f32.mxu0 0.0
    %1786 = vmatmul.mubr.f32.gmra.mxu0 %v1716
    %v1787 = vpop.f32.mrf.mxu0
    %v1788 = vadd.f32 0.0, %v1787
    %v1789 = vpop.f32.mrf.mxu0
    %1790 = vmatprep.mubr.f32.mxu0 0.0
    %1791 = vmatmul.mubr.f32.gmra.mxu0 %v1719
    %v1792 = vpop.f32.mrf.mxu0
    %v1793 = vadd.f32 0.0, %v1792
    %v1794 = vpop.f32.mrf.mxu0
    %1795 = vdwg.mxu0
    %v1796 = vld [vmem:[#allocation10 + $0x8] sm:$0xff]
    %1797 = vrot.lane.b32.xlu0 %v1491, 120
    %v1798 = vpop.permute.xlu0 %1797
    %1799 = vrot.lane.b32.xlu0 %v1496, 120
    %v1800 = vpop.permute.xlu0 %1799
    %1801 = vrot.lane.b32.xlu0 %v1592, 120
    %v1802 = vpop.permute.xlu0 %1801
    %1803 = vrot.lane.b32.xlu0 %v1597, 120
    %v1804 = vpop.permute.xlu0 %1803
    %v1805 = vsel %vm215, %v1798, 0
    %v1807 = vsel %vm215, %v1800, 0
    %v1809 = vsel %vm215, %v1802, 0
    %v1811 = vsel %vm215, %v1804, 0
    %1813 = vmatprep.subr.mxu0 0.0
    %1814 = vmatpush1.xpose.msra.mxu0 0.0
    %1815 = vmatprep.subr.mxu0 0.0
    %1816 = vmatpush1.xpose.msra.mxu0 0.0
    %1817 = vmatprep.subr.mxu0 0.0
    %1818 = vmatpush1.xpose.msra.mxu0 0.0
    %1819 = vmatprep.subr.mxu0 0.0
    %1820 = vmatpush1.xpose.msra.mxu0 0.0
    %1821 = vmatprep.subr.mxu0 0.0
    %1822 = vmatpush1.xpose.msra.mxu0 0.0
    %1823 = vmatprep.subr.mxu0 0.0
    %1824 = vmatpush1.xpose.msra.mxu0 0.0
    %1825 = vmatprep.subr.mxu0 0.0
    %1826 = vmatpush1.xpose.msra.mxu0 0.0
    %1827 = vmatprep.subr.mxu0 0.0
    %1828 = vmatpush1.xpose.msra.mxu0 0.0
    %1829 = vmatprep.subr.mxu0 0.0
    %1830 = vmatpush1.xpose.msra.mxu0 0.0
    %1831 = vmatprep.subr.mxu0 0.0
    %1832 = vmatpush1.xpose.msra.mxu0 0.0
    %1833 = vmatprep.subr.mxu0 0.0
    %1834 = vmatpush1.xpose.msra.mxu0 0.0
    %1835 = vmatprep.subr.mxu0 0.0
    %1836 = vmatpush1.xpose.msra.mxu0 0.0
    %1837 = vmatprep.subr.mxu0 0.0
    %1838 = vmatpush1.xpose.msra.mxu0 0.0
    %1839 = vmatprep.subr.mxu0 0.0
    %1840 = vmatpush1.xpose.msra.mxu0 0.0
    %1841 = vmatprep.subr.mxu0 0.0
    %1842 = vmatpush1.xpose.msra.mxu0 %v1811
    %1843 = vmatprep.subr.mxu0 0.0
    %1844 = vmatpush1.xpose.msra.mxu0 %v1809
    %1845 = vmatprep.subr.mxu0 0.0
    %1846 = vmatpush2.xpose.msra.mxu0 0.0
    %1847 = vmatprep.subr.mxu0 0.0
    %1848 = vmatpush2.xpose.msra.mxu0 0.0
    %1849 = vmatprep.subr.mxu0 0.0
    %1850 = vmatpush2.xpose.msra.mxu0 0.0
    %1851 = vmatprep.subr.mxu0 0.0
    %1852 = vmatpush2.xpose.msra.mxu0 0.0
    %1853 = vmatprep.subr.mxu0 0.0
    %1854 = vmatpush2.xpose.msra.mxu0 0.0
    %1855 = vmatprep.subr.mxu0 0.0
    %1856 = vmatpush2.xpose.msra.mxu0 0.0
    %1857 = vmatprep.subr.mxu0 0.0
    %1858 = vmatpush2.xpose.msra.mxu0 0.0
    %1859 = vmatprep.subr.mxu0 0.0
    %1860 = vmatpush2.xpose.msra.mxu0 0.0
    %1861 = vmatprep.subr.mxu0 0.0
    %1862 = vmatpush2.xpose.msra.mxu0 0.0
    %1863 = vmatprep.subr.mxu0 0.0
    %1864 = vmatpush2.xpose.msra.mxu0 0.0
    %1865 = vmatprep.subr.mxu0 0.0
    %1866 = vmatpush2.xpose.msra.mxu0 0.0
    %1867 = vmatprep.subr.mxu0 0.0
    %1868 = vmatpush2.xpose.msra.mxu0 0.0
    %1869 = vmatprep.subr.mxu0 0.0
    %1870 = vmatpush2.xpose.msra.mxu0 0.0
    %1871 = vmatprep.subr.mxu0 0.0
    %1872 = vmatpush2.xpose.msra.mxu0 0.0
    %1873 = vmatprep.subr.mxu0 0.0
    %1874 = vmatpush2.xpose.msra.mxu0 0.0
    %1875 = vmatprep.subr.mxu0 0.0
    %1876 = vmatpush2.xpose.msra.mxu0 0.0
    %1877 = vmatprep.mubr.f32.mxu0 0.0
    %1878 = vmatmul.mubr.f32.gmra.mxu0 %v1805
    %v1879 = vpop.f32.mrf.mxu0
    %v1880 = vadd.f32 %v115, %v1879
    %v1881 = vpop.f32.mrf.mxu0
    %1882 = vmatprep.mubr.f32.mxu0 0.0
    %1883 = vmatmul.mubr.f32.gmra.mxu0 %v1807
    %v1884 = vpop.f32.mrf.mxu0
    %v1885 = vadd.f32 %v116, %v1884
    %v1886 = vpop.f32.mrf.mxu0
    %1887 = vdwg.mxu0
    %v1888 = vsel %vm299, %v1880, -inf
    %1889 = vmax.xlane.f32.xlu0 %v1888
    %v1890 = vpop.xlane.xlu0 %1889
    %v1891 = vsel %vm299, %v1885, -inf
    %1892 = vmax.xlane.f32.xlu0 %v1891
    %v1893 = vpop.xlane.xlu0 %1892
    %v1894 = vsub.f32 %v1880, %v1890
    %v1895 = vsub.f32 %v1885, %v1893
    %v1896 = vmul.f32 %v1894, 1.442695
    %v1897 = vpow.pop %v1896
    %v1898 = vmul.f32 %v1895, 1.442695
    %v1899 = vpow.pop %v1898
    %v1900 = vsel %vm299, %v1897, 0.0
    %1901 = vadd.xlane.f32.xlu0 %v1900
    %v1902 = vpop.xlane.xlu0 %1901
    %v1903 = vsel %vm299, %v1899, 0.0
    %1904 = vadd.xlane.f32.xlu0 %v1903
    %v1905 = vpop.xlane.xlu0 %1904
    %v1906 = vrcp.pop %v1902
    %v1907 = vmul.f32 %v1897, %v1906
    %v1908 = vrcp.pop %v1905
    %v1909 = vmul.f32 %v1899, %v1908
    %1910 = vrot.lane.b32.xlu0 %v1592, 88
    %v1911 = vpop.permute.xlu0 %1910
    %1912 = vrot.lane.b32.xlu0 %v1597, 88
    %v1913 = vpop.permute.xlu0 %1912
    %v1917 = vsel %vm299, %v1907, 0
    %v1920 = vsel %vm299, %v1909, 0
    %1922 = vmatprep.subr.mxu0 0.0
    %1923 = vmatpush1.msra.mxu0 0.0
    %1924 = vmatprep.subr.mxu0 0.0
    %1925 = vmatpush1.msra.mxu0 0.0
    %1926 = vmatprep.subr.mxu0 0.0
    %1927 = vmatpush1.msra.mxu0 0.0
    %1928 = vmatprep.subr.mxu0 0.0
    %1929 = vmatpush1.msra.mxu0 0.0
    %1930 = vmatprep.subr.mxu0 0.0
    %1931 = vmatpush1.msra.mxu0 0.0
    %1932 = vmatprep.subr.mxu0 0.0
    %1933 = vmatpush1.msra.mxu0 0.0
    %1934 = vmatprep.subr.mxu0 0.0
    %1935 = vmatpush1.msra.mxu0 0.0
    %1936 = vmatprep.subr.mxu0 0.0
    %1937 = vmatpush1.msra.mxu0 0.0
    %1938 = vmatprep.subr.mxu0 0.0
    %1939 = vmatpush1.msra.mxu0 0.0
    %1940 = vmatprep.subr.mxu0 0.0
    %1941 = vmatpush1.msra.mxu0 0.0
    %1942 = vmatprep.subr.mxu0 0.0
    %1943 = vmatpush1.msra.mxu0 0.0
    %1944 = vmatprep.subr.mxu0 0.0
    %1945 = vmatpush1.msra.mxu0 0.0
    %1946 = vmatprep.subr.mxu0 0.0
    %1947 = vmatpush1.msra.mxu0 0.0
    %1948 = vmatprep.subr.mxu0 0.0
    %1949 = vmatpush1.msra.mxu0 0.0
    %1950 = vmatprep.subr.mxu0 0.0
    %1951 = vmatpush1.msra.mxu0 %v1913
    %1952 = vmatprep.subr.mxu0 0.0
    %1953 = vmatpush1.msra.mxu0 %v1911
    %1954 = vmatprep.subr.mxu0 0.0
    %1955 = vmatpush2.msra.mxu0 0.0
    %1956 = vmatprep.subr.mxu0 0.0
    %1957 = vmatpush2.msra.mxu0 0.0
    %1958 = vmatprep.subr.mxu0 0.0
    %1959 = vmatpush2.msra.mxu0 0.0
    %1960 = vmatprep.subr.mxu0 0.0
    %1961 = vmatpush2.msra.mxu0 0.0
    %1962 = vmatprep.subr.mxu0 0.0
    %1963 = vmatpush2.msra.mxu0 0.0
    %1964 = vmatprep.subr.mxu0 0.0
    %1965 = vmatpush2.msra.mxu0 0.0
    %1966 = vmatprep.subr.mxu0 0.0
    %1967 = vmatpush2.msra.mxu0 0.0
    %1968 = vmatprep.subr.mxu0 0.0
    %1969 = vmatpush2.msra.mxu0 0.0
    %1970 = vmatprep.subr.mxu0 0.0
    %1971 = vmatpush2.msra.mxu0 0.0
    %1972 = vmatprep.subr.mxu0 0.0
    %1973 = vmatpush2.msra.mxu0 0.0
    %1974 = vmatprep.subr.mxu0 0.0
    %1975 = vmatpush2.msra.mxu0 0.0
    %1976 = vmatprep.subr.mxu0 0.0
    %1977 = vmatpush2.msra.mxu0 0.0
    %1978 = vmatprep.subr.mxu0 0.0
    %1979 = vmatpush2.msra.mxu0 0.0
    %1980 = vmatprep.subr.mxu0 0.0
    %1981 = vmatpush2.msra.mxu0 0.0
    %1982 = vmatprep.subr.mxu0 0.0
    %1983 = vmatpush2.msra.mxu0 0.0
    %1984 = vmatprep.subr.mxu0 0.0
    %1985 = vmatpush2.msra.mxu0 0.0
    %1986 = vmatprep.mubr.f32.mxu0 0.0
    %1987 = vmatmul.mubr.f32.gmra.mxu0 %v1917
    %v1988 = vpop.f32.mrf.mxu0
    %v1989 = vadd.f32 0.0, %v1988
    %v1990 = vpop.f32.mrf.mxu0
    %1991 = vmatprep.mubr.f32.mxu0 0.0
    %1992 = vmatmul.mubr.f32.gmra.mxu0 %v1920
    %v1993 = vpop.f32.mrf.mxu0
    %v1994 = vadd.f32 0.0, %v1993
    %v1995 = vpop.f32.mrf.mxu0
    %1996 = vdwg.mxu0
    %v1997 = vld [vmem:[#allocation10 + $0x18] sm:$0xff]
    %1999 = vrot.lane.b32.xlu0 %v1997, 32
    %v2000 = vpop.permute.xlu0 %1999
    %v2003 = vsel %vm215, %v1989, 0
    %v2006 = vsel %vm215, %v1994, 0
    %2008 = vmatprep.subr.mxu0 0.0
    %2009 = vmatpush1.msra.mxu0 0.0
    %2010 = vmatprep.subr.mxu0 0.0
    %2011 = vmatpush1.msra.mxu0 0.0
    %2012 = vmatprep.subr.mxu0 0.0
    %2013 = vmatpush1.msra.mxu0 0.0
    %2014 = vmatprep.subr.mxu0 0.0
    %2015 = vmatpush1.msra.mxu0 0.0
    %2016 = vmatprep.subr.mxu0 0.0
    %2017 = vmatpush1.msra.mxu0 0.0
    %2018 = vmatprep.subr.mxu0 0.0
    %2019 = vmatpush1.msra.mxu0 0.0
    %2020 = vmatprep.subr.mxu0 0.0
    %2021 = vmatpush1.msra.mxu0 0.0
    %2022 = vmatprep.subr.mxu0 0.0
    %2023 = vmatpush1.msra.mxu0 0.0
    %2024 = vmatprep.subr.mxu0 0.0
    %2025 = vmatpush1.msra.mxu0 0.0
    %2026 = vmatprep.subr.mxu0 0.0
    %2027 = vmatpush1.msra.mxu0 0.0
    %2028 = vmatprep.subr.mxu0 0.0
    %2029 = vmatpush1.msra.mxu0 0.0
    %2030 = vmatprep.subr.mxu0 0.0
    %2031 = vmatpush1.msra.mxu0 0.0
    %2032 = vmatprep.subr.mxu0 0.0
    %2033 = vmatpush1.msra.mxu0 0.0
    %2034 = vmatprep.subr.mxu0 0.0
    %2035 = vmatpush1.msra.mxu0 0.0
    %2036 = vmatprep.subr.mxu0 0.0
    %2037 = vmatpush1.msra.mxu0 0.0
    %2038 = vmatprep.subr.mxu0 0.0
    %2039 = vmatpush1.msra.mxu0 %v2000
    %2040 = vmatprep.subr.mxu0 0.0
    %2041 = vmatpush2.msra.mxu0 0.0
    %2042 = vmatprep.subr.mxu0 0.0
    %2043 = vmatpush2.msra.mxu0 0.0
    %2044 = vmatprep.subr.mxu0 0.0
    %2045 = vmatpush2.msra.mxu0 0.0
    %2046 = vmatprep.subr.mxu0 0.0
    %2047 = vmatpush2.msra.mxu0 0.0
    %2048 = vmatprep.subr.mxu0 0.0
    %2049 = vmatpush2.msra.mxu0 0.0
    %2050 = vmatprep.subr.mxu0 0.0
    %2051 = vmatpush2.msra.mxu0 0.0
    %2052 = vmatprep.subr.mxu0 0.0
    %2053 = vmatpush2.msra.mxu0 0.0
    %2054 = vmatprep.subr.mxu0 0.0
    %2055 = vmatpush2.msra.mxu0 0.0
    %2056 = vmatprep.subr.mxu0 0.0
    %2057 = vmatpush2.msra.mxu0 0.0
    %2058 = vmatprep.subr.mxu0 0.0
    %2059 = vmatpush2.msra.mxu0 0.0
    %2060 = vmatprep.subr.mxu0 0.0
    %2061 = vmatpush2.msra.mxu0 0.0
    %2062 = vmatprep.subr.mxu0 0.0
    %2063 = vmatpush2.msra.mxu0 0.0
    %2064 = vmatprep.subr.mxu0 0.0
    %2065 = vmatpush2.msra.mxu0 0.0
    %2066 = vmatprep.subr.mxu0 0.0
    %2067 = vmatpush2.msra.mxu0 0.0
    %2068 = vmatprep.subr.mxu0 0.0
    %2069 = vmatpush2.msra.mxu0 0.0
    %2070 = vmatprep.subr.mxu0 0.0
    %2071 = vmatpush2.msra.mxu0 0.0
    %2072 = vmatprep.mubr.f32.mxu0 0.0
    %2073 = vmatmul.mubr.f32.gmra.mxu0 %v2003
    %v2074 = vpop.f32.mrf.mxu0
    %v2075 = vadd.f32 0.0, %v2074
    %v2076 = vpop.f32.mrf.mxu0
    %2077 = vmatprep.mubr.f32.mxu0 0.0
    %2078 = vmatmul.mubr.f32.gmra.mxu0 %v2006
    %v2079 = vpop.f32.mrf.mxu0
    %v2080 = vadd.f32 0.0, %v2079
    %v2081 = vpop.f32.mrf.mxu0
    %2082 = vdwg.mxu0
    %2084 = vrot.lane.b32.xlu0 %v1796, 32
    %v2085 = vpop.permute.xlu0 %2084
    %v2088 = vsel %vm215, %v1788, 0
    %v2091 = vsel %vm215, %v1793, 0
    %2093 = vmatprep.subr.mxu0 0.0
    %2094 = vmatpush1.msra.mxu0 0.0
    %2095 = vmatprep.subr.mxu0 0.0
    %2096 = vmatpush1.msra.mxu0 0.0
    %2097 = vmatprep.subr.mxu0 0.0
    %2098 = vmatpush1.msra.mxu0 0.0
    %2099 = vmatprep.subr.mxu0 0.0
    %2100 = vmatpush1.msra.mxu0 0.0
    %2101 = vmatprep.subr.mxu0 0.0
    %2102 = vmatpush1.msra.mxu0 0.0
    %2103 = vmatprep.subr.mxu0 0.0
    %2104 = vmatpush1.msra.mxu0 0.0
    %2105 = vmatprep.subr.mxu0 0.0
    %2106 = vmatpush1.msra.mxu0 0.0
    %2107 = vmatprep.subr.mxu0 0.0
    %2108 = vmatpush1.msra.mxu0 0.0
    %2109 = vmatprep.subr.mxu0 0.0
    %2110 = vmatpush1.msra.mxu0 0.0
    %2111 = vmatprep.subr.mxu0 0.0
    %2112 = vmatpush1.msra.mxu0 0.0
    %2113 = vmatprep.subr.mxu0 0.0
    %2114 = vmatpush1.msra.mxu0 0.0
    %2115 = vmatprep.subr.mxu0 0.0
    %2116 = vmatpush1.msra.mxu0 0.0
    %2117 = vmatprep.subr.mxu0 0.0
    %2118 = vmatpush1.msra.mxu0 0.0
    %2119 = vmatprep.subr.mxu0 0.0
    %2120 = vmatpush1.msra.mxu0 0.0
    %2121 = vmatprep.subr.mxu0 0.0
    %2122 = vmatpush1.msra.mxu0 0.0
    %2123 = vmatprep.subr.mxu0 0.0
    %2124 = vmatpush1.msra.mxu0 %v2085
    %2125 = vmatprep.subr.mxu0 0.0
    %2126 = vmatpush2.msra.mxu0 0.0
    %2127 = vmatprep.subr.mxu0 0.0
    %2128 = vmatpush2.msra.mxu0 0.0
    %2129 = vmatprep.subr.mxu0 0.0
    %2130 = vmatpush2.msra.mxu0 0.0
    %2131 = vmatprep.subr.mxu0 0.0
    %2132 = vmatpush2.msra.mxu0 0.0
    %2133 = vmatprep.subr.mxu0 0.0
    %2134 = vmatpush2.msra.mxu0 0.0
    %2135 = vmatprep.subr.mxu0 0.0
    %2136 = vmatpush2.msra.mxu0 0.0
    %2137 = vmatprep.subr.mxu0 0.0
    %2138 = vmatpush2.msra.mxu0 0.0
    %2139 = vmatprep.subr.mxu0 0.0
    %2140 = vmatpush2.msra.mxu0 0.0
    %2141 = vmatprep.subr.mxu0 0.0
    %2142 = vmatpush2.msra.mxu0 0.0
    %2143 = vmatprep.subr.mxu0 0.0
    %2144 = vmatpush2.msra.mxu0 0.0
    %2145 = vmatprep.subr.mxu0 0.0
    %2146 = vmatpush2.msra.mxu0 0.0
    %2147 = vmatprep.subr.mxu0 0.0
    %2148 = vmatpush2.msra.mxu0 0.0
    %2149 = vmatprep.subr.mxu0 0.0
    %2150 = vmatpush2.msra.mxu0 0.0
    %2151 = vmatprep.subr.mxu0 0.0
    %2152 = vmatpush2.msra.mxu0 0.0
    %2153 = vmatprep.subr.mxu0 0.0
    %2154 = vmatpush2.msra.mxu0 0.0
    %2155 = vmatprep.subr.mxu0 0.0
    %2156 = vmatpush2.msra.mxu0 0.0
    %2157 = vmatprep.mubr.f32.mxu0 0.0
    %2158 = vmatmul.mubr.f32.gmra.mxu0 %v2088
    %v2159 = vpop.f32.mrf.mxu0
    %v2160 = vadd.f32 %v2075, %v2159
    %v2161 = vpop.f32.mrf.mxu0
    %2162 = vmatprep.mubr.f32.mxu0 0.0
    %2163 = vmatmul.mubr.f32.gmra.mxu0 %v2091
    %v2164 = vpop.f32.mrf.mxu0
    %v2165 = vadd.f32 %v2080, %v2164
    %v2166 = vpop.f32.mrf.mxu0
    %2167 = vdwg.mxu0
    %2168 = vrot.lane.b32.xlu0 %v1491, 112
    %v2169 = vpop.permute.xlu0 %2168
    %2170 = vrot.lane.b32.xlu0 %v1496, 112
    %v2171 = vpop.permute.xlu0 %2170
    %2172 = vrot.lane.b32.xlu0 %v1592, 112
    %v2173 = vpop.permute.xlu0 %2172
    %2174 = vrot.lane.b32.xlu0 %v1597, 112
    %v2175 = vpop.permute.xlu0 %2174
    %v2176 = vsel %vm215, %v2169, 0
    %v2178 = vsel %vm215, %v2171, 0
    %v2180 = vsel %vm215, %v2173, 0
    %v2182 = vsel %vm215, %v2175, 0
    %2184 = vmatprep.subr.mxu0 0.0
    %2185 = vmatpush1.xpose.msra.mxu0 0.0
    %2186 = vmatprep.subr.mxu0 0.0
    %2187 = vmatpush1.xpose.msra.mxu0 0.0
    %2188 = vmatprep.subr.mxu0 0.0
    %2189 = vmatpush1.xpose.msra.mxu0 0.0
    %2190 = vmatprep.subr.mxu0 0.0
    %2191 = vmatpush1.xpose.msra.mxu0 0.0
    %2192 = vmatprep.subr.mxu0 0.0
    %2193 = vmatpush1.xpose.msra.mxu0 0.0
    %2194 = vmatprep.subr.mxu0 0.0
    %2195 = vmatpush1.xpose.msra.mxu0 0.0
    %2196 = vmatprep.subr.mxu0 0.0
    %2197 = vmatpush1.xpose.msra.mxu0 0.0
    %2198 = vmatprep.subr.mxu0 0.0
    %2199 = vmatpush1.xpose.msra.mxu0 0.0
    %2200 = vmatprep.subr.mxu0 0.0
    %2201 = vmatpush1.xpose.msra.mxu0 0.0
    %2202 = vmatprep.subr.mxu0 0.0
    %2203 = vmatpush1.xpose.msra.mxu0 0.0
    %2204 = vmatprep.subr.mxu0 0.0
    %2205 = vmatpush1.xpose.msra.mxu0 0.0
    %2206 = vmatprep.subr.mxu0 0.0
    %2207 = vmatpush1.xpose.msra.mxu0 0.0
    %2208 = vmatprep.subr.mxu0 0.0
    %2209 = vmatpush1.xpose.msra.mxu0 0.0
    %2210 = vmatprep.subr.mxu0 0.0
    %2211 = vmatpush1.xpose.msra.mxu0 0.0
    %2212 = vmatprep.subr.mxu0 0.0
    %2213 = vmatpush1.xpose.msra.mxu0 %v2182
    %2214 = vmatprep.subr.mxu0 0.0
    %2215 = vmatpush1.xpose.msra.mxu0 %v2180
    %2216 = vmatprep.subr.mxu0 0.0
    %2217 = vmatpush2.xpose.msra.mxu0 0.0
    %2218 = vmatprep.subr.mxu0 0.0
    %2219 = vmatpush2.xpose.msra.mxu0 0.0
    %2220 = vmatprep.subr.mxu0 0.0
    %2221 = vmatpush2.xpose.msra.mxu0 0.0
    %2222 = vmatprep.subr.mxu0 0.0
    %2223 = vmatpush2.xpose.msra.mxu0 0.0
    %2224 = vmatprep.subr.mxu0 0.0
    %2225 = vmatpush2.xpose.msra.mxu0 0.0
    %2226 = vmatprep.subr.mxu0 0.0
    %2227 = vmatpush2.xpose.msra.mxu0 0.0
    %2228 = vmatprep.subr.mxu0 0.0
    %2229 = vmatpush2.xpose.msra.mxu0 0.0
    %2230 = vmatprep.subr.mxu0 0.0
    %2231 = vmatpush2.xpose.msra.mxu0 0.0
    %2232 = vmatprep.subr.mxu0 0.0
    %2233 = vmatpush2.xpose.msra.mxu0 0.0
    %2234 = vmatprep.subr.mxu0 0.0
    %2235 = vmatpush2.xpose.msra.mxu0 0.0
    %2236 = vmatprep.subr.mxu0 0.0
    %2237 = vmatpush2.xpose.msra.mxu0 0.0
    %2238 = vmatprep.subr.mxu0 0.0
    %2239 = vmatpush2.xpose.msra.mxu0 0.0
    %2240 = vmatprep.subr.mxu0 0.0
    %2241 = vmatpush2.xpose.msra.mxu0 0.0
    %2242 = vmatprep.subr.mxu0 0.0
    %2243 = vmatpush2.xpose.msra.mxu0 0.0
    %2244 = vmatprep.subr.mxu0 0.0
    %2245 = vmatpush2.xpose.msra.mxu0 0.0
    %2246 = vmatprep.subr.mxu0 0.0
    %2247 = vmatpush2.xpose.msra.mxu0 0.0
    %2248 = vmatprep.mubr.f32.mxu0 0.0
    %2249 = vmatmul.mubr.f32.gmra.mxu0 %v2176
    %v2250 = vpop.f32.mrf.mxu0
    %v2251 = vadd.f32 %v115, %v2250
    %v2252 = vpop.f32.mrf.mxu0
    %2253 = vmatprep.mubr.f32.mxu0 0.0
    %2254 = vmatmul.mubr.f32.gmra.mxu0 %v2178
    %v2255 = vpop.f32.mrf.mxu0
    %v2256 = vadd.f32 %v116, %v2255
    %v2257 = vpop.f32.mrf.mxu0
    %2258 = vdwg.mxu0
    %v2259 = vsel %vm299, %v2251, -inf
    %2260 = vmax.xlane.f32.xlu0 %v2259
    %v2261 = vpop.xlane.xlu0 %2260
    %v2262 = vsel %vm299, %v2256, -inf
    %2263 = vmax.xlane.f32.xlu0 %v2262
    %v2264 = vpop.xlane.xlu0 %2263
    %v2265 = vsub.f32 %v2251, %v2261
    %v2266 = vsub.f32 %v2256, %v2264
    %v2267 = vmul.f32 %v2265, 1.442695
    %v2268 = vpow.pop %v2267
    %v2269 = vmul.f32 %v2266, 1.442695
    %v2270 = vpow.pop %v2269
    %v2271 = vsel %vm299, %v2268, 0.0
    %2272 = vadd.xlane.f32.xlu0 %v2271
    %v2273 = vpop.xlane.xlu0 %2272
    %v2274 = vsel %vm299, %v2270, 0.0
    %2275 = vadd.xlane.f32.xlu0 %v2274
    %v2276 = vpop.xlane.xlu0 %2275
    %v2277 = vrcp.pop %v2273
    %v2278 = vmul.f32 %v2268, %v2277
    %v2279 = vrcp.pop %v2276
    %v2280 = vmul.f32 %v2270, %v2279
    %2281 = vrot.lane.b32.xlu0 %v1592, 80
    %v2282 = vpop.permute.xlu0 %2281
    %2283 = vrot.lane.b32.xlu0 %v1597, 80
    %v2284 = vpop.permute.xlu0 %2283
    %v2288 = vsel %vm299, %v2278, 0
    %v2291 = vsel %vm299, %v2280, 0
    %2293 = vmatprep.subr.mxu0 0.0
    %2294 = vmatpush1.msra.mxu0 0.0
    %2295 = vmatprep.subr.mxu0 0.0
    %2296 = vmatpush1.msra.mxu0 0.0
    %2297 = vmatprep.subr.mxu0 0.0
    %2298 = vmatpush1.msra.mxu0 0.0
    %2299 = vmatprep.subr.mxu0 0.0
    %2300 = vmatpush1.msra.mxu0 0.0
    %2301 = vmatprep.subr.mxu0 0.0
    %2302 = vmatpush1.msra.mxu0 0.0
    %2303 = vmatprep.subr.mxu0 0.0
    %2304 = vmatpush1.msra.mxu0 0.0
    %2305 = vmatprep.subr.mxu0 0.0
    %2306 = vmatpush1.msra.mxu0 0.0
    %2307 = vmatprep.subr.mxu0 0.0
    %2308 = vmatpush1.msra.mxu0 0.0
    %2309 = vmatprep.subr.mxu0 0.0
    %2310 = vmatpush1.msra.mxu0 0.0
    %2311 = vmatprep.subr.mxu0 0.0
    %2312 = vmatpush1.msra.mxu0 0.0
    %2313 = vmatprep.subr.mxu0 0.0
    %2314 = vmatpush1.msra.mxu0 0.0
    %2315 = vmatprep.subr.mxu0 0.0
    %2316 = vmatpush1.msra.mxu0 0.0
    %2317 = vmatprep.subr.mxu0 0.0
    %2318 = vmatpush1.msra.mxu0 0.0
    %2319 = vmatprep.subr.mxu0 0.0
    %2320 = vmatpush1.msra.mxu0 0.0
    %2321 = vmatprep.subr.mxu0 0.0
    %2322 = vmatpush1.msra.mxu0 %v2284
    %2323 = vmatprep.subr.mxu0 0.0
    %2324 = vmatpush1.msra.mxu0 %v2282
    %2325 = vmatprep.subr.mxu0 0.0
    %2326 = vmatpush2.msra.mxu0 0.0
    %2327 = vmatprep.subr.mxu0 0.0
    %2328 = vmatpush2.msra.mxu0 0.0
    %2329 = vmatprep.subr.mxu0 0.0
    %2330 = vmatpush2.msra.mxu0 0.0
    %2331 = vmatprep.subr.mxu0 0.0
    %2332 = vmatpush2.msra.mxu0 0.0
    %2333 = vmatprep.subr.mxu0 0.0
    %2334 = vmatpush2.msra.mxu0 0.0
    %2335 = vmatprep.subr.mxu0 0.0
    %2336 = vmatpush2.msra.mxu0 0.0
    %2337 = vmatprep.subr.mxu0 0.0
    %2338 = vmatpush2.msra.mxu0 0.0
    %2339 = vmatprep.subr.mxu0 0.0
    %2340 = vmatpush2.msra.mxu0 0.0
    %2341 = vmatprep.subr.mxu0 0.0
    %2342 = vmatpush2.msra.mxu0 0.0
    %2343 = vmatprep.subr.mxu0 0.0
    %2344 = vmatpush2.msra.mxu0 0.0
    %2345 = vmatprep.subr.mxu0 0.0
    %2346 = vmatpush2.msra.mxu0 0.0
    %2347 = vmatprep.subr.mxu0 0.0
    %2348 = vmatpush2.msra.mxu0 0.0
    %2349 = vmatprep.subr.mxu0 0.0
    %2350 = vmatpush2.msra.mxu0 0.0
    %2351 = vmatprep.subr.mxu0 0.0
    %2352 = vmatpush2.msra.mxu0 0.0
    %2353 = vmatprep.subr.mxu0 0.0
    %2354 = vmatpush2.msra.mxu0 0.0
    %2355 = vmatprep.subr.mxu0 0.0
    %2356 = vmatpush2.msra.mxu0 0.0
    %2357 = vmatprep.mubr.f32.mxu0 0.0
    %2358 = vmatmul.mubr.f32.gmra.mxu0 %v2288
    %v2359 = vpop.f32.mrf.mxu0
    %v2360 = vadd.f32 0.0, %v2359
    %v2361 = vpop.f32.mrf.mxu0
    %2362 = vmatprep.mubr.f32.mxu0 0.0
    %2363 = vmatmul.mubr.f32.gmra.mxu0 %v2291
    %v2364 = vpop.f32.mrf.mxu0
    %v2365 = vadd.f32 0.0, %v2364
    %v2366 = vpop.f32.mrf.mxu0
    %2367 = vdwg.mxu0
    %v2368 = vld [vmem:[#allocation10 + $0x28] sm:$0xff]
    %2370 = vrot.lane.b32.xlu0 %v2368, 32
    %v2371 = vpop.permute.xlu0 %2370
    %v2374 = vsel %vm215, %v2360, 0
    %v2377 = vsel %vm215, %v2365, 0
    %2379 = vmatprep.subr.mxu0 0.0
    %2380 = vmatpush1.msra.mxu0 0.0
    %2381 = vmatprep.subr.mxu0 0.0
    %2382 = vmatpush1.msra.mxu0 0.0
    %2383 = vmatprep.subr.mxu0 0.0
    %2384 = vmatpush1.msra.mxu0 0.0
    %2385 = vmatprep.subr.mxu0 0.0
    %2386 = vmatpush1.msra.mxu0 0.0
    %2387 = vmatprep.subr.mxu0 0.0
    %2388 = vmatpush1.msra.mxu0 0.0
    %2389 = vmatprep.subr.mxu0 0.0
    %2390 = vmatpush1.msra.mxu0 0.0
    %2391 = vmatprep.subr.mxu0 0.0
    %2392 = vmatpush1.msra.mxu0 0.0
    %2393 = vmatprep.subr.mxu0 0.0
    %2394 = vmatpush1.msra.mxu0 0.0
    %2395 = vmatprep.subr.mxu0 0.0
    %2396 = vmatpush1.msra.mxu0 0.0
    %2397 = vmatprep.subr.mxu0 0.0
    %2398 = vmatpush1.msra.mxu0 0.0
    %2399 = vmatprep.subr.mxu0 0.0
    %2400 = vmatpush1.msra.mxu0 0.0
    %2401 = vmatprep.subr.mxu0 0.0
    %2402 = vmatpush1.msra.mxu0 0.0
    %2403 = vmatprep.subr.mxu0 0.0
    %2404 = vmatpush1.msra.mxu0 0.0
    %2405 = vmatprep.subr.mxu0 0.0
    %2406 = vmatpush1.msra.mxu0 0.0
    %2407 = vmatprep.subr.mxu0 0.0
    %2408 = vmatpush1.msra.mxu0 0.0
    %2409 = vmatprep.subr.mxu0 0.0
    %2410 = vmatpush1.msra.mxu0 %v2371
    %2411 = vmatprep.subr.mxu0 0.0
    %2412 = vmatpush2.msra.mxu0 0.0
    %2413 = vmatprep.subr.mxu0 0.0
    %2414 = vmatpush2.msra.mxu0 0.0
    %2415 = vmatprep.subr.mxu0 0.0
    %2416 = vmatpush2.msra.mxu0 0.0
    %2417 = vmatprep.subr.mxu0 0.0
    %2418 = vmatpush2.msra.mxu0 0.0
    %2419 = vmatprep.subr.mxu0 0.0
    %2420 = vmatpush2.msra.mxu0 0.0
    %2421 = vmatprep.subr.mxu0 0.0
    %2422 = vmatpush2.msra.mxu0 0.0
    %2423 = vmatprep.subr.mxu0 0.0
    %2424 = vmatpush2.msra.mxu0 0.0
    %2425 = vmatprep.subr.mxu0 0.0
    %2426 = vmatpush2.msra.mxu0 0.0
    %2427 = vmatprep.subr.mxu0 0.0
    %2428 = vmatpush2.msra.mxu0 0.0
    %2429 = vmatprep.subr.mxu0 0.0
    %2430 = vmatpush2.msra.mxu0 0.0
    %2431 = vmatprep.subr.mxu0 0.0
    %2432 = vmatpush2.msra.mxu0 0.0
    %2433 = vmatprep.subr.mxu0 0.0
    %2434 = vmatpush2.msra.mxu0 0.0
    %2435 = vmatprep.subr.mxu0 0.0
    %2436 = vmatpush2.msra.mxu0 0.0
    %2437 = vmatprep.subr.mxu0 0.0
    %2438 = vmatpush2.msra.mxu0 0.0
    %2439 = vmatprep.subr.mxu0 0.0
    %2440 = vmatpush2.msra.mxu0 0.0
    %2441 = vmatprep.subr.mxu0 0.0
    %2442 = vmatpush2.msra.mxu0 0.0
    %2443 = vmatprep.mubr.f32.mxu0 0.0
    %2444 = vmatmul.mubr.f32.gmra.mxu0 %v2374
    %v2445 = vpop.f32.mrf.mxu0
    %v2446 = vadd.f32 0.0, %v2445
    %v2447 = vpop.f32.mrf.mxu0
    %2448 = vmatprep.mubr.f32.mxu0 0.0
    %2449 = vmatmul.mubr.f32.gmra.mxu0 %v2377
    %v2450 = vpop.f32.mrf.mxu0
    %v2451 = vadd.f32 0.0, %v2450
    %v2452 = vpop.f32.mrf.mxu0
    %2453 = vdwg.mxu0
    %v2454 = vadd.f32 %v2160, %v2446
    %v2455 = vadd.f32 %v2165, %v2451
    %2456 = vrot.lane.b32.xlu0 %v1491, 104
    %v2457 = vpop.permute.xlu0 %2456
    %2458 = vrot.lane.b32.xlu0 %v1496, 104
    %v2459 = vpop.permute.xlu0 %2458
    %2460 = vrot.lane.b32.xlu0 %v1592, 104
    %v2461 = vpop.permute.xlu0 %2460
    %2462 = vrot.lane.b32.xlu0 %v1597, 104
    %v2463 = vpop.permute.xlu0 %2462
    %v2464 = vsel %vm215, %v2457, 0
    %v2466 = vsel %vm215, %v2459, 0
    %v2468 = vsel %vm215, %v2461, 0
    %v2470 = vsel %vm215, %v2463, 0
    %2472 = vmatprep.subr.mxu0 0.0
    %2473 = vmatpush1.xpose.msra.mxu0 0.0
    %2474 = vmatprep.subr.mxu0 0.0
    %2475 = vmatpush1.xpose.msra.mxu0 0.0
    %2476 = vmatprep.subr.mxu0 0.0
    %2477 = vmatpush1.xpose.msra.mxu0 0.0
    %2478 = vmatprep.subr.mxu0 0.0
    %2479 = vmatpush1.xpose.msra.mxu0 0.0
    %2480 = vmatprep.subr.mxu0 0.0
    %2481 = vmatpush1.xpose.msra.mxu0 0.0
    %2482 = vmatprep.subr.mxu0 0.0
    %2483 = vmatpush1.xpose.msra.mxu0 0.0
    %2484 = vmatprep.subr.mxu0 0.0
    %2485 = vmatpush1.xpose.msra.mxu0 0.0
    %2486 = vmatprep.subr.mxu0 0.0
    %2487 = vmatpush1.xpose.msra.mxu0 0.0
    %2488 = vmatprep.subr.mxu0 0.0
    %2489 = vmatpush1.xpose.msra.mxu0 0.0
    %2490 = vmatprep.subr.mxu0 0.0
    %2491 = vmatpush1.xpose.msra.mxu0 0.0
    %2492 = vmatprep.subr.mxu0 0.0
    %2493 = vmatpush1.xpose.msra.mxu0 0.0
    %2494 = vmatprep.subr.mxu0 0.0
    %2495 = vmatpush1.xpose.msra.mxu0 0.0
    %2496 = vmatprep.subr.mxu0 0.0
    %2497 = vmatpush1.xpose.msra.mxu0 0.0
    %2498 = vmatprep.subr.mxu0 0.0
    %2499 = vmatpush1.xpose.msra.mxu0 0.0
    %2500 = vmatprep.subr.mxu0 0.0
    %2501 = vmatpush1.xpose.msra.mxu0 %v2470
    %2502 = vmatprep.subr.mxu0 0.0
    %2503 = vmatpush1.xpose.msra.mxu0 %v2468
    %2504 = vmatprep.subr.mxu0 0.0
    %2505 = vmatpush2.xpose.msra.mxu0 0.0
    %2506 = vmatprep.subr.mxu0 0.0
    %2507 = vmatpush2.xpose.msra.mxu0 0.0
    %2508 = vmatprep.subr.mxu0 0.0
    %2509 = vmatpush2.xpose.msra.mxu0 0.0
    %2510 = vmatprep.subr.mxu0 0.0
    %2511 = vmatpush2.xpose.msra.mxu0 0.0
    %2512 = vmatprep.subr.mxu0 0.0
    %2513 = vmatpush2.xpose.msra.mxu0 0.0
    %2514 = vmatprep.subr.mxu0 0.0
    %2515 = vmatpush2.xpose.msra.mxu0 0.0
    %2516 = vmatprep.subr.mxu0 0.0
    %2517 = vmatpush2.xpose.msra.mxu0 0.0
    %2518 = vmatprep.subr.mxu0 0.0
    %2519 = vmatpush2.xpose.msra.mxu0 0.0
    %2520 = vmatprep.subr.mxu0 0.0
    %2521 = vmatpush2.xpose.msra.mxu0 0.0
    %2522 = vmatprep.subr.mxu0 0.0
    %2523 = vmatpush2.xpose.msra.mxu0 0.0
    %2524 = vmatprep.subr.mxu0 0.0
    %2525 = vmatpush2.xpose.msra.mxu0 0.0
    %2526 = vmatprep.subr.mxu0 0.0
    %2527 = vmatpush2.xpose.msra.mxu0 0.0
    %2528 = vmatprep.subr.mxu0 0.0
    %2529 = vmatpush2.xpose.msra.mxu0 0.0
    %2530 = vmatprep.subr.mxu0 0.0
    %2531 = vmatpush2.xpose.msra.mxu0 0.0
    %2532 = vmatprep.subr.mxu0 0.0
    %2533 = vmatpush2.xpose.msra.mxu0 0.0
    %2534 = vmatprep.subr.mxu0 0.0
    %2535 = vmatpush2.xpose.msra.mxu0 0.0
    %2536 = vmatprep.mubr.f32.mxu0 0.0
    %2537 = vmatmul.mubr.f32.gmra.mxu0 %v2464
    %v2538 = vpop.f32.mrf.mxu0
    %v2539 = vadd.f32 %v115, %v2538
    %v2540 = vpop.f32.mrf.mxu0
    %2541 = vmatprep.mubr.f32.mxu0 0.0
    %2542 = vmatmul.mubr.f32.gmra.mxu0 %v2466
    %v2543 = vpop.f32.mrf.mxu0
    %v2544 = vadd.f32 %v116, %v2543
    %v2545 = vpop.f32.mrf.mxu0
    %2546 = vdwg.mxu0
    %v2547 = vsel %vm299, %v2539, -inf
    %2548 = vmax.xlane.f32.xlu0 %v2547
    %v2549 = vpop.xlane.xlu0 %2548
    %v2550 = vsel %vm299, %v2544, -inf
    %2551 = vmax.xlane.f32.xlu0 %v2550
    %v2552 = vpop.xlane.xlu0 %2551
    %v2553 = vsub.f32 %v2539, %v2549
    %v2554 = vsub.f32 %v2544, %v2552
    %v2555 = vmul.f32 %v2553, 1.442695
    %v2556 = vpow.pop %v2555
    %v2557 = vmul.f32 %v2554, 1.442695
    %v2558 = vpow.pop %v2557
    %v2559 = vsel %vm299, %v2556, 0.0
    %2560 = vadd.xlane.f32.xlu0 %v2559
    %v2561 = vpop.xlane.xlu0 %2560
    %v2562 = vsel %vm299, %v2558, 0.0
    %2563 = vadd.xlane.f32.xlu0 %v2562
    %v2564 = vpop.xlane.xlu0 %2563
    %v2565 = vrcp.pop %v2561
    %v2566 = vmul.f32 %v2556, %v2565
    %v2567 = vrcp.pop %v2564
    %v2568 = vmul.f32 %v2558, %v2567
    %2569 = vrot.lane.b32.xlu0 %v1592, 72
    %v2570 = vpop.permute.xlu0 %2569
    %2571 = vrot.lane.b32.xlu0 %v1597, 72
    %v2572 = vpop.permute.xlu0 %2571
    %v2576 = vsel %vm299, %v2566, 0
    %v2579 = vsel %vm299, %v2568, 0
    %2581 = vmatprep.subr.mxu0 0.0
    %2582 = vmatpush1.msra.mxu0 0.0
    %2583 = vmatprep.subr.mxu0 0.0
    %2584 = vmatpush1.msra.mxu0 0.0
    %2585 = vmatprep.subr.mxu0 0.0
    %2586 = vmatpush1.msra.mxu0 0.0
    %2587 = vmatprep.subr.mxu0 0.0
    %2588 = vmatpush1.msra.mxu0 0.0
    %2589 = vmatprep.subr.mxu0 0.0
    %2590 = vmatpush1.msra.mxu0 0.0
    %2591 = vmatprep.subr.mxu0 0.0
    %2592 = vmatpush1.msra.mxu0 0.0
    %2593 = vmatprep.subr.mxu0 0.0
    %2594 = vmatpush1.msra.mxu0 0.0
    %2595 = vmatprep.subr.mxu0 0.0
    %2596 = vmatpush1.msra.mxu0 0.0
    %2597 = vmatprep.subr.mxu0 0.0
    %2598 = vmatpush1.msra.mxu0 0.0
    %2599 = vmatprep.subr.mxu0 0.0
    %2600 = vmatpush1.msra.mxu0 0.0
    %2601 = vmatprep.subr.mxu0 0.0
    %2602 = vmatpush1.msra.mxu0 0.0
    %2603 = vmatprep.subr.mxu0 0.0
    %2604 = vmatpush1.msra.mxu0 0.0
    %2605 = vmatprep.subr.mxu0 0.0
    %2606 = vmatpush1.msra.mxu0 0.0
    %2607 = vmatprep.subr.mxu0 0.0
    %2608 = vmatpush1.msra.mxu0 0.0
    %2609 = vmatprep.subr.mxu0 0.0
    %2610 = vmatpush1.msra.mxu0 %v2572
    %2611 = vmatprep.subr.mxu0 0.0
    %2612 = vmatpush1.msra.mxu0 %v2570
    %2613 = vmatprep.subr.mxu0 0.0
    %2614 = vmatpush2.msra.mxu0 0.0
    %2615 = vmatprep.subr.mxu0 0.0
    %2616 = vmatpush2.msra.mxu0 0.0
    %2617 = vmatprep.subr.mxu0 0.0
    %2618 = vmatpush2.msra.mxu0 0.0
    %2619 = vmatprep.subr.mxu0 0.0
    %2620 = vmatpush2.msra.mxu0 0.0
    %2621 = vmatprep.subr.mxu0 0.0
    %2622 = vmatpush2.msra.mxu0 0.0
    %2623 = vmatprep.subr.mxu0 0.0
    %2624 = vmatpush2.msra.mxu0 0.0
    %2625 = vmatprep.subr.mxu0 0.0
    %2626 = vmatpush2.msra.mxu0 0.0
    %2627 = vmatprep.subr.mxu0 0.0
    %2628 = vmatpush2.msra.mxu0 0.0
    %2629 = vmatprep.subr.mxu0 0.0
    %2630 = vmatpush2.msra.mxu0 0.0
    %2631 = vmatprep.subr.mxu0 0.0
    %2632 = vmatpush2.msra.mxu0 0.0
    %2633 = vmatprep.subr.mxu0 0.0
    %2634 = vmatpush2.msra.mxu0 0.0
    %2635 = vmatprep.subr.mxu0 0.0
    %2636 = vmatpush2.msra.mxu0 0.0
    %2637 = vmatprep.subr.mxu0 0.0
    %2638 = vmatpush2.msra.mxu0 0.0
    %2639 = vmatprep.subr.mxu0 0.0
    %2640 = vmatpush2.msra.mxu0 0.0
    %2641 = vmatprep.subr.mxu0 0.0
    %2642 = vmatpush2.msra.mxu0 0.0
    %2643 = vmatprep.subr.mxu0 0.0
    %2644 = vmatpush2.msra.mxu0 0.0
    %2645 = vmatprep.mubr.f32.mxu0 0.0
    %2646 = vmatmul.mubr.f32.gmra.mxu0 %v2576
    %v2647 = vpop.f32.mrf.mxu0
    %v2648 = vadd.f32 0.0, %v2647
    %v2649 = vpop.f32.mrf.mxu0
    %2650 = vmatprep.mubr.f32.mxu0 0.0
    %2651 = vmatmul.mubr.f32.gmra.mxu0 %v2579
    %v2652 = vpop.f32.mrf.mxu0
    %v2653 = vadd.f32 0.0, %v2652
    %v2654 = vpop.f32.mrf.mxu0
    %2655 = vdwg.mxu0
    %2656 = vrot.lane.b32.xlu0 %v1412, 32
    %v2657 = vpop.permute.xlu0 %2656
    %v2660 = vsel %vm215, %v2648, 0
    %v2663 = vsel %vm215, %v2653, 0
    %2665 = vmatprep.subr.mxu0 0.0
    %2666 = vmatpush1.msra.mxu0 0.0
    %2667 = vmatprep.subr.mxu0 0.0
    %2668 = vmatpush1.msra.mxu0 0.0
    %2669 = vmatprep.subr.mxu0 0.0
    %2670 = vmatpush1.msra.mxu0 0.0
    %2671 = vmatprep.subr.mxu0 0.0
    %2672 = vmatpush1.msra.mxu0 0.0
    %2673 = vmatprep.subr.mxu0 0.0
    %2674 = vmatpush1.msra.mxu0 0.0
    %2675 = vmatprep.subr.mxu0 0.0
    %2676 = vmatpush1.msra.mxu0 0.0
    %2677 = vmatprep.subr.mxu0 0.0
    %2678 = vmatpush1.msra.mxu0 0.0
    %2679 = vmatprep.subr.mxu0 0.0
    %2680 = vmatpush1.msra.mxu0 0.0
    %2681 = vmatprep.subr.mxu0 0.0
    %2682 = vmatpush1.msra.mxu0 0.0
    %2683 = vmatprep.subr.mxu0 0.0
    %2684 = vmatpush1.msra.mxu0 0.0
    %2685 = vmatprep.subr.mxu0 0.0
    %2686 = vmatpush1.msra.mxu0 0.0
    %2687 = vmatprep.subr.mxu0 0.0
    %2688 = vmatpush1.msra.mxu0 0.0
    %2689 = vmatprep.subr.mxu0 0.0
    %2690 = vmatpush1.msra.mxu0 0.0
    %2691 = vmatprep.subr.mxu0 0.0
    %2692 = vmatpush1.msra.mxu0 0.0
    %2693 = vmatprep.subr.mxu0 0.0
    %2694 = vmatpush1.msra.mxu0 0.0
    %2695 = vmatprep.subr.mxu0 0.0
    %2696 = vmatpush1.msra.mxu0 %v2657
    %2697 = vmatprep.subr.mxu0 0.0
    %2698 = vmatpush2.msra.mxu0 0.0
    %2699 = vmatprep.subr.mxu0 0.0
    %2700 = vmatpush2.msra.mxu0 0.0
    %2701 = vmatprep.subr.mxu0 0.0
    %2702 = vmatpush2.msra.mxu0 0.0
    %2703 = vmatprep.subr.mxu0 0.0
    %2704 = vmatpush2.msra.mxu0 0.0
    %2705 = vmatprep.subr.mxu0 0.0
    %2706 = vmatpush2.msra.mxu0 0.0
    %2707 = vmatprep.subr.mxu0 0.0
    %2708 = vmatpush2.msra.mxu0 0.0
    %2709 = vmatprep.subr.mxu0 0.0
    %2710 = vmatpush2.msra.mxu0 0.0
    %2711 = vmatprep.subr.mxu0 0.0
    %2712 = vmatpush2.msra.mxu0 0.0
    %2713 = vmatprep.subr.mxu0 0.0
    %2714 = vmatpush2.msra.mxu0 0.0
    %2715 = vmatprep.subr.mxu0 0.0
    %2716 = vmatpush2.msra.mxu0 0.0
    %2717 = vmatprep.subr.mxu0 0.0
    %2718 = vmatpush2.msra.mxu0 0.0
    %2719 = vmatprep.subr.mxu0 0.0
    %2720 = vmatpush2.msra.mxu0 0.0
    %2721 = vmatprep.subr.mxu0 0.0
    %2722 = vmatpush2.msra.mxu0 0.0
    %2723 = vmatprep.subr.mxu0 0.0
    %2724 = vmatpush2.msra.mxu0 0.0
    %2725 = vmatprep.subr.mxu0 0.0
    %2726 = vmatpush2.msra.mxu0 0.0
    %2727 = vmatprep.subr.mxu0 0.0
    %2728 = vmatpush2.msra.mxu0 0.0
    %2729 = vmatprep.mubr.f32.mxu0 0.0
    %2730 = vmatmul.mubr.f32.gmra.mxu0 %v2660
    %v2731 = vpop.f32.mrf.mxu0
    %v2732 = vadd.f32 0.0, %v2731
    %v2733 = vpop.f32.mrf.mxu0
    %2734 = vmatprep.mubr.f32.mxu0 0.0
    %2735 = vmatmul.mubr.f32.gmra.mxu0 %v2663
    %v2736 = vpop.f32.mrf.mxu0
    %v2737 = vadd.f32 0.0, %v2736
    %v2738 = vpop.f32.mrf.mxu0
    %2739 = vdwg.mxu0
    %v2740 = vadd.f32 %v2454, %v2732
    %v2741 = vadd.f32 %v2455, %v2737
    %2743 = vrot.lane.b32.xlu0 %v1359, 96
    %v2744 = vpop.permute.xlu0 %2743
    %v2746 = vadd.f32 %v2740, %v2744
    %v2747 = vadd.f32 %v2741, %v2744
    %v2748 = vadd.f32 %v2746, %v1407
    %v2749 = vadd.f32 %v2747, %v1408
    %v2750 = vsel %vm126, %v2748, 0.0
    %2751 = vadd.xlane.f32.xlu0 %v2750
    %v2752 = vpop.xlane.xlu0 %2751
    %v2753 = vsel %vm126, %v2749, 0.0
    %2754 = vadd.xlane.f32.xlu0 %v2753
    %v2755 = vpop.xlane.xlu0 %2754
    %v2756 = vmul.f32 %v2752, %v1372
    %v2757 = vmul.f32 %v2755, %v1372
    %v2758 = vmul.f32 %v2748, %v2748
    %v2759 = vmul.f32 %v2749, %v2749
    %v2760 = vsel %vm126, %v2758, 0.0
    %2761 = vadd.xlane.f32.xlu0 %v2760
    %v2762 = vpop.xlane.xlu0 %2761
    %v2763 = vsel %vm126, %v2759, 0.0
    %2764 = vadd.xlane.f32.xlu0 %v2763
    %v2765 = vpop.xlane.xlu0 %2764
    %v2766 = vmul.f32 %v2762, %v1372
    %v2767 = vmul.f32 %v2765, %v1372
    %v2768 = vmul.f32 %v2756, %v2756
    %v2769 = vmul.f32 %v2757, %v2757
    %v2770 = vsub.f32 %v2766, %v2768
    %v2771 = vsub.f32 %v2767, %v2769
    %v2772 = vsub.f32 %v2748, %v2756
    %v2773 = vsub.f32 %v2749, %v2757
    %v2774 = vadd.f32 %v2770, 1e-05
    %v2775 = vadd.f32 %v2771, 1e-05
    %v2776 = vrsqrt.pop %v2774
    %v2777 = vrsqrt.pop %v2775
    %v2778 = vmul.f32 %v2772, %v2776
    %v2779 = vmul.f32 %v2773, %v2777
    %2781 = vrot.lane.b32.xlu0 %v1400, 96
    %v2782 = vpop.permute.xlu0 %2781
    %v2784 = vmul.f32 %v2778, %v2782
    %v2785 = vmul.f32 %v2779, %v2782
    %2787 = vrot.lane.b32.xlu0 %v1406, 96
    %v2788 = vpop.permute.xlu0 %2787
    %v2790 = vadd.f32 %v2784, %v2788
    %v2791 = vadd.f32 %v2785, %v2788
    %v2792 = vld [vmem:[#allocation11] sm:$0xff]
    %v2793 = vld [vmem:[#allocation11 + $0x8] sm:$0xff]
    %v2794 = vld [vmem:[#allocation11 + $0x10] sm:$0xff]
    %v2795 = vld [vmem:[#allocation11 + $0x18] sm:$0xff]
    %v2796 = vld [vmem:[%s6 + $0x3] sm:$0x1]
    %v2797 = vlaneseq
    %v2798 = vshrl.u32 %v2797, 7
    %v2799 = vsub.s32 0, %v2798
    %v2800 = vrot.slane %v2796, %v2799
    %v2802 = vsel %vm126, %v2790, 0
    %v2805 = vsel %vm126, %v2791, 0
    %2807 = vmatprep.subr.mxu0 0.0
    %2808 = vmatpush1.msra.mxu0 0.0
    %2809 = vmatprep.subr.mxu0 0.0
    %2810 = vmatpush1.msra.mxu0 0.0
    %2811 = vmatprep.subr.mxu0 0.0
    %2812 = vmatpush1.msra.mxu0 0.0
    %2813 = vmatprep.subr.mxu0 0.0
    %2814 = vmatpush1.msra.mxu0 0.0
    %2815 = vmatprep.subr.mxu0 0.0
    %2816 = vmatpush1.msra.mxu0 0.0
    %2817 = vmatprep.subr.mxu0 0.0
    %2818 = vmatpush1.msra.mxu0 0.0
    %2819 = vmatprep.subr.mxu0 0.0
    %2820 = vmatpush1.msra.mxu0 0.0
    %2821 = vmatprep.subr.mxu0 0.0
    %2822 = vmatpush1.msra.mxu0 0.0
    %2823 = vmatprep.subr.mxu0 0.0
    %2824 = vmatpush1.msra.mxu0 0.0
    %2825 = vmatprep.subr.mxu0 0.0
    %2826 = vmatpush1.msra.mxu0 0.0
    %2827 = vmatprep.subr.mxu0 0.0
    %2828 = vmatpush1.msra.mxu0 0.0
    %2829 = vmatprep.subr.mxu0 0.0
    %2830 = vmatpush1.msra.mxu0 0.0
    %2831 = vmatprep.subr.mxu0 0.0
    %2832 = vmatpush1.msra.mxu0 %v2795
    %2833 = vmatprep.subr.mxu0 0.0
    %2834 = vmatpush1.msra.mxu0 %v2794
    %2835 = vmatprep.subr.mxu0 0.0
    %2836 = vmatpush1.msra.mxu0 %v2793
    %2837 = vmatprep.subr.mxu0 0.0
    %2838 = vmatpush1.msra.mxu0 %v2792
    %2839 = vmatprep.subr.mxu0 0.0
    %2840 = vmatpush2.msra.mxu0 0.0
    %2841 = vmatprep.subr.mxu0 0.0
    %2842 = vmatpush2.msra.mxu0 0.0
    %2843 = vmatprep.subr.mxu0 0.0
    %2844 = vmatpush2.msra.mxu0 0.0
    %2845 = vmatprep.subr.mxu0 0.0
    %2846 = vmatpush2.msra.mxu0 0.0
    %2847 = vmatprep.subr.mxu0 0.0
    %2848 = vmatpush2.msra.mxu0 0.0
    %2849 = vmatprep.subr.mxu0 0.0
    %2850 = vmatpush2.msra.mxu0 0.0
    %2851 = vmatprep.subr.mxu0 0.0
    %2852 = vmatpush2.msra.mxu0 0.0
    %2853 = vmatprep.subr.mxu0 0.0
    %2854 = vmatpush2.msra.mxu0 0.0
    %2855 = vmatprep.subr.mxu0 0.0
    %2856 = vmatpush2.msra.mxu0 0.0
    %2857 = vmatprep.subr.mxu0 0.0
    %2858 = vmatpush2.msra.mxu0 0.0
    %2859 = vmatprep.subr.mxu0 0.0
    %2860 = vmatpush2.msra.mxu0 0.0
    %2861 = vmatprep.subr.mxu0 0.0
    %2862 = vmatpush2.msra.mxu0 0.0
    %2863 = vmatprep.subr.mxu0 0.0
    %2864 = vmatpush2.msra.mxu0 0.0
    %2865 = vmatprep.subr.mxu0 0.0
    %2866 = vmatpush2.msra.mxu0 0.0
    %2867 = vmatprep.subr.mxu0 0.0
    %2868 = vmatpush2.msra.mxu0 0.0
    %2869 = vmatprep.subr.mxu0 0.0
    %2870 = vmatpush2.msra.mxu0 0.0
    %2871 = vmatprep.mubr.f32.mxu0 0.0
    %2872 = vmatmul.mubr.f32.gmra.mxu0 %v2802
    %v2873 = vpop.f32.mrf.mxu0
    %v2874 = vadd.f32 %v2800, %v2873
    %v2875 = vpop.f32.mrf.mxu0
    %2876 = vmatprep.mubr.f32.mxu0 0.0
    %2877 = vmatmul.mubr.f32.gmra.mxu0 %v2805
    %v2878 = vpop.f32.mrf.mxu0
    %v2879 = vadd.f32 %v2800, %v2878
    %v2880 = vpop.f32.mrf.mxu0
    %2881 = vdwg.mxu0
    %v2882 = vxor.u32 %v2874, 2147483648
    %v2883 = vxor.u32 %v2879, 2147483648
    %v2884 = vmul.f32 %v2882, 1.442695
    %v2885 = vpow.pop %v2884
    %v2886 = vmul.f32 %v2883, 1.442695
    %v2887 = vpow.pop %v2886
    %v2888 = vadd.f32 %v2885, 1.0
    %v2889 = vadd.f32 %v2887, 1.0
    %v2890 = vrcp.pop %v2888
    %v2891 = vmul.f32 1.0, %v2890
    %v2892 = vrcp.pop %v2889
    %v2893 = vmul.f32 1.0, %v2892
    %v2894 = vmul.f32 %v2874, %v2891
    %v2895 = vmul.f32 %v2879, %v2893
    %v2896 = vld [vmem:[#allocation11] sm:$0xff]
    %v2897 = vld [vmem:[#allocation11 + $0x8] sm:$0xff]
    %v2898 = vld [vmem:[#allocation11 + $0x10] sm:$0xff]
    %v2899 = vld [vmem:[#allocation11 + $0x18] sm:$0xff]
    %v2900 = vld [vmem:[#allocation11 + $0x20] sm:$0xff]
    %v2901 = vld [vmem:[#allocation11 + $0x28] sm:$0xff]
    %v2902 = vld [vmem:[#allocation11 + $0x30] sm:$0xff]
    %v2903 = vld [vmem:[#allocation11 + $0x38] sm:$0xff]
    %2912 = vrot.lane.b32.xlu0 %v2896, 64
    %v2913 = vpop.permute.xlu0 %2912
    %2914 = vrot.lane.b32.xlu0 %v2897, 64
    %v2915 = vpop.permute.xlu0 %2914
    %2916 = vrot.lane.b32.xlu0 %v2898, 64
    %v2917 = vpop.permute.xlu0 %2916
    %2918 = vrot.lane.b32.xlu0 %v2899, 64
    %v2919 = vpop.permute.xlu0 %2918
    %2920 = vrot.lane.b32.xlu0 %v2900, 64
    %v2921 = vpop.permute.xlu0 %2920
    %2922 = vrot.lane.b32.xlu0 %v2901, 64
    %v2923 = vpop.permute.xlu0 %2922
    %2924 = vrot.lane.b32.xlu0 %v2902, 64
    %v2925 = vpop.permute.xlu0 %2924
    %2926 = vrot.lane.b32.xlu0 %v2903, 64
    %v2927 = vpop.permute.xlu0 %2926
    %2936 = vrot.lane.b32.xlu0 %v1359, 64
    %v2937 = vpop.permute.xlu0 %2936
    %vm2939 = vcmask 523264
    %v2941 = vsel %vm2939, %v2894, 0
    %v2944 = vsel %vm2939, %v2895, 0
    %2946 = vmatprep.subr.mxu0 0.0
    %2947 = vmatpush1.msra.mxu0 0.0
    %2948 = vmatprep.subr.mxu0 0.0
    %2949 = vmatpush1.msra.mxu0 0.0
    %2950 = vmatprep.subr.mxu0 0.0
    %2951 = vmatpush1.msra.mxu0 0.0
    %2952 = vmatprep.subr.mxu0 0.0
    %2953 = vmatpush1.msra.mxu0 0.0
    %2954 = vmatprep.subr.mxu0 0.0
    %2955 = vmatpush1.msra.mxu0 0.0
    %2956 = vmatprep.subr.mxu0 0.0
    %2957 = vmatpush1.msra.mxu0 0.0
    %2958 = vmatprep.subr.mxu0 0.0
    %2959 = vmatpush1.msra.mxu0 0.0
    %2960 = vmatprep.subr.mxu0 0.0
    %2961 = vmatpush1.msra.mxu0 0.0
    %2962 = vmatprep.subr.mxu0 0.0
    %2963 = vmatpush1.msra.mxu0 %v2927
    %2964 = vmatprep.subr.mxu0 0.0
    %2965 = vmatpush1.msra.mxu0 %v2925
    %2966 = vmatprep.subr.mxu0 0.0
    %2967 = vmatpush1.msra.mxu0 %v2923
    %2968 = vmatprep.subr.mxu0 0.0
    %2969 = vmatpush1.msra.mxu0 %v2921
    %2970 = vmatprep.subr.mxu0 0.0
    %2971 = vmatpush1.msra.mxu0 %v2919
    %2972 = vmatprep.subr.mxu0 0.0
    %2973 = vmatpush1.msra.mxu0 %v2917
    %2974 = vmatprep.subr.mxu0 0.0
    %2975 = vmatpush1.msra.mxu0 %v2915
    %2976 = vmatprep.subr.mxu0 0.0
    %2977 = vmatpush1.msra.mxu0 %v2913
    %2978 = vmatprep.subr.mxu0 0.0
    %2979 = vmatpush2.msra.mxu0 0.0
    %2980 = vmatprep.subr.mxu0 0.0
    %2981 = vmatpush2.msra.mxu0 0.0
    %2982 = vmatprep.subr.mxu0 0.0
    %2983 = vmatpush2.msra.mxu0 0.0
    %2984 = vmatprep.subr.mxu0 0.0
    %2985 = vmatpush2.msra.mxu0 0.0
    %2986 = vmatprep.subr.mxu0 0.0
    %2987 = vmatpush2.msra.mxu0 0.0
    %2988 = vmatprep.subr.mxu0 0.0
    %2989 = vmatpush2.msra.mxu0 0.0
    %2990 = vmatprep.subr.mxu0 0.0
    %2991 = vmatpush2.msra.mxu0 0.0
    %2992 = vmatprep.subr.mxu0 0.0
    %2993 = vmatpush2.msra.mxu0 0.0
    %2994 = vmatprep.subr.mxu0 0.0
    %2995 = vmatpush2.msra.mxu0 0.0
    %2996 = vmatprep.subr.mxu0 0.0
    %2997 = vmatpush2.msra.mxu0 0.0
    %2998 = vmatprep.subr.mxu0 0.0
    %2999 = vmatpush2.msra.mxu0 0.0
    %3000 = vmatprep.subr.mxu0 0.0
    %3001 = vmatpush2.msra.mxu0 0.0
    %3002 = vmatprep.subr.mxu0 0.0
    %3003 = vmatpush2.msra.mxu0 0.0
    %3004 = vmatprep.subr.mxu0 0.0
    %3005 = vmatpush2.msra.mxu0 0.0
    %3006 = vmatprep.subr.mxu0 0.0
    %3007 = vmatpush2.msra.mxu0 0.0
    %3008 = vmatprep.subr.mxu0 0.0
    %3009 = vmatpush2.msra.mxu0 0.0
    %3010 = vmatprep.mubr.f32.mxu0 0.0
    %3011 = vmatmul.mubr.f32.gmra.mxu0 %v2941
    %v3012 = vpop.f32.mrf.mxu0
    %v3013 = vadd.f32 %v2937, %v3012
    %v3014 = vpop.f32.mrf.mxu0
    %3015 = vmatprep.mubr.f32.mxu0 0.0
    %3016 = vmatmul.mubr.f32.gmra.mxu0 %v2944
    %v3017 = vpop.f32.mrf.mxu0
    %v3018 = vadd.f32 %v2937, %v3017
    %v3019 = vpop.f32.mrf.mxu0
    %3020 = vdwg.mxu0
    %v3021 = vadd.f32 %v3013, %v2790
    %v3022 = vadd.f32 %v3018, %v2791
    %v3023 = vsel %vm126, %v3021, 0.0
    %3024 = vadd.xlane.f32.xlu0 %v3023
    %v3025 = vpop.xlane.xlu0 %3024
    %v3026 = vsel %vm126, %v3022, 0.0
    %3027 = vadd.xlane.f32.xlu0 %v3026
    %v3028 = vpop.xlane.xlu0 %3027
    %v3029 = vmul.f32 %v3025, %v1372
    %v3030 = vmul.f32 %v3028, %v1372
    %v3031 = vmul.f32 %v3021, %v3021
    %v3032 = vmul.f32 %v3022, %v3022
    %v3033 = vsel %vm126, %v3031, 0.0
    %3034 = vadd.xlane.f32.xlu0 %v3033
    %v3035 = vpop.xlane.xlu0 %3034
    %v3036 = vsel %vm126, %v3032, 0.0
    %3037 = vadd.xlane.f32.xlu0 %v3036
    %v3038 = vpop.xlane.xlu0 %3037
    %v3039 = vmul.f32 %v3035, %v1372
    %v3040 = vmul.f32 %v3038, %v1372
    %v3041 = vmul.f32 %v3029, %v3029
    %v3042 = vmul.f32 %v3030, %v3030
    %v3043 = vsub.f32 %v3039, %v3041
    %v3044 = vsub.f32 %v3040, %v3042
    %v3045 = vsub.f32 %v3021, %v3029
    %v3046 = vsub.f32 %v3022, %v3030
    %v3047 = vadd.f32 %v3043, 1e-05
    %v3048 = vadd.f32 %v3044, 1e-05
    %v3049 = vrsqrt.pop %v3047
    %v3050 = vrsqrt.pop %v3048
    %v3051 = vmul.f32 %v3045, %v3049
    %v3052 = vmul.f32 %v3046, %v3050
    %3053 = vrot.lane.b32.xlu0 %v1400, 64
    %v3054 = vpop.permute.xlu0 %3053
    %v3056 = vmul.f32 %v3051, %v3054
    %v3057 = vmul.f32 %v3052, %v3054
    %3058 = vrot.lane.b32.xlu0 %v1406, 64
    %v3059 = vpop.permute.xlu0 %3058
    %v3061 = vadd.f32 %v3056, %v3059
    %v3062 = vadd.f32 %v3057, %v3059
    %3063 = vst.msk [vmem:[#allocation13] sm:$0xff] %vm126, %v3061
    %3064 = vst.msk [vmem:[#allocation13 + $0x8] sm:$0xff] %vm126, %v3062
    // Predicated region
    $region54: #{tpu_custom_call.1} parent=1 // pred_check
      _
    $region55: #{tpu_custom_call.1} parent=1 // pred_check_branch
      %3066 = sbr.rel (0) target = $region57
    $region56: #{tpu_custom_call.1} parent=1 // pred_region
      %s3068 = ssub.s32 256, 256
      %3069 = vsyncadd [#allocation4], %s3068
      %s3070 = sshll.u32 [#allocation13], 4
      %s3071 = int_to_ptr.vmem [resolvable:$true] %s3070
      %3076 = dma.vmem_to_hbm [thread:$0]  %s3071, 256, %s7, [#allocation4], 128, 128, 8
    $region57: #{tpu_custom_call.1} parent=1 // pred_fallthru
      _
    // Predicated region
    $region58: #{tpu_custom_call.1} parent=1 // pred_check
      _
    $region59: #{tpu_custom_call.1} parent=1 // pred_check_branch
      %3078 = sbr.rel (0) target = $region61
    $region60: #{tpu_custom_call.1} parent=1 // pred_region
      %3079 = dma.done [#allocation4], 256
    $region61: #{tpu_custom_call.1} parent=1 // pred_fallthru
      _
    %3080 = vsyncpa [#allocation3], 1
    %3081 = vsyncpa [#allocation6], 1
    %3082 = vsyncpa [#allocation9], 1
    %3083 = vsyncpa [#allocation12], 1
    %3084 = vsyncpa [#allocation4], 1

</llo_original>
